<compile_context>
chip_gen: v7x
topology: tpu7x:2x2x1
jax: 0.10.0
libtpu: 0.0.40
codegen_flags: <defaults>
</compile_context>

<pallas_src>
import jax
import jax.numpy as jnp
from jax.experimental import pallas as pl
from jax.experimental.pallas import tpu as pltpu


# ----------------------------- in-kernel helpers -----------------------------


def _dot(a, b):
    return jnp.dot(a, b, preferred_element_type=jnp.float32)


def _attentive_pool(f_a, f_b, w_ta, w_tb, w_ba, w_bb, wm_a, wm_b,
                    scale, shift, n_points, k_neigh):
    """AttentivePooling on concat([f_a; f_b], channels) with pre-split weights.

    f_a, f_b: (d_half, K*N), k-major lanes (lane j = k*N + n).
    Returns relu((Wm_a @ agg_a + Wm_b @ agg_b) * scale + shift), shape (rows_out, N).
    """
    # fc (no bias): scores for the f_a channel rows / f_b channel rows.
    act_t = _dot(w_ta, f_a) + _dot(w_tb, f_b)            # (d_half, NK)
    act_b = _dot(w_ba, f_a) + _dot(w_bb, f_b)            # (d_half, NK)

    def chunk(x, k):
        return x[:, k * n_points:(k + 1) * n_points]     # static lane slice

    # per-point max over the K neighbours (stable softmax)
    m_t = chunk(act_t, 0)
    m_b = chunk(act_b, 0)
    for k in range(1, k_neigh):
        m_t = jnp.maximum(m_t, chunk(act_t, k))
        m_b = jnp.maximum(m_b, chunk(act_b, k))

    # numerator / denominator form: never materialize normalized scores over NK lanes
    den_t = jnp.zeros_like(m_t)
    den_b = jnp.zeros_like(m_b)
    num_a = jnp.zeros_like(m_t)
    num_b = jnp.zeros_like(m_b)
    for k in range(k_neigh):
        e_t = jnp.exp(chunk(act_t, k) - m_t)
        e_b = jnp.exp(chunk(act_b, k) - m_b)
        den_t = den_t + e_t
        den_b = den_b + e_b
        num_a = num_a + chunk(f_a, k) * e_t
        num_b = num_b + chunk(f_b, k) * e_b

    agg_a = num_a * pl.reciprocal(den_t, approx=False)   # (d_half, N)
    agg_b = num_b * pl.reciprocal(den_b, approx=False)   # (d_half, N)

    y = _dot(wm_a, agg_a) + _dot(wm_b, agg_b)            # (rows_out, N)
    return jnp.maximum(y * scale + shift, 0.0)


# --------------------------------- the kernel --------------------------------


def _lse_fused_kernel(coords_ref, feat_ref, idx_ref, pid_ref,
                      pe_w_ref, wd1_ref, st1_ref,
                      w2_ref, st2_ref,
                      fc1_ref, m1_ref, stm1_ref,
                      fc2_ref, m2_ref, stm2_ref,
                      out_ref):
    coords = coords_ref[0]            # (3, N)
    feat = feat_ref[0]                # (d_half, N)
    idx = idx_ref[0]                  # (1, N*K) int32, k-major: idx[k*N+n] = indices[n,k]
    pid = pid_ref[...]                # (1, N*K) int32, pid[j] = j % N

    n_points = coords.shape[1]
    nk = idx.shape[1]
    k_neigh = nk // n_points

    # One-hot matrices: every gather / tile becomes an MXU matmul (built once per step).
    rows = jax.lax.broadcasted_iota(jnp.int32, (n_points, nk), 0)
    gmat = (rows == idx).astype(jnp.float32)   # x(., N) @ gmat -> x gathered to (., N*K)
    tmat = (rows == pid).astype(jnp.float32)   # x(., N) @ tmat -> x tiled K times (k-major)

    tile = _dot(coords, tmat)                  # (3, NK)  coords repeated per neighbour
    neigh = _dot(coords, gmat)                 # (3, NK)  gathered neighbour coords
    rel = tile - neigh
    dist = jnp.sqrt(rel[0:1] * rel[0:1] + rel[1:2] * rel[1:2] + rel[2:3] * rel[2:3])

    # mlp1 (10->d_half 1x1 conv + BN + ReLU); the `rel` weight was folded into the
    # tile/neigh weights in the wrapper, so only two small matmuls + one bcast mul.
    x1 = _dot(pe_w_ref[0], tile) + _dot(pe_w_ref[1], neigh) + wd1_ref[...] * dist
    f_coords1 = jnp.maximum(x1 * st1_ref[0] + st1_ref[1], 0.0)          # (d_half, NK)

    # gathered input features
    f_neigh = _dot(feat, gmat)                                          # (d_half, NK)

    # pool1: AttentivePooling(d_out -> d_half)
    pool1 = _attentive_pool(f_neigh, f_coords1,
                            fc1_ref[0], fc1_ref[1], fc1_ref[2], fc1_ref[3],
                            m1_ref[0], m1_ref[1], stm1_ref[0], stm1_ref[1],
                            n_points, k_neigh)                          # (d_half, N)

    # mlp2 on f_coords1
    f_coords2 = jnp.maximum(_dot(w2_ref[...], f_coords1) * st2_ref[0] + st2_ref[1], 0.0)

    # in-kernel gather of the pool1 result (this is what fuses the two stages)
    f_neigh2 = _dot(pool1, gmat)                                        # (d_half, NK)

    # pool2: AttentivePooling(d_out -> d_out)
    out_ref[0] = _attentive_pool(f_neigh2, f_coords2,
                                 fc2_ref[0], fc2_ref[1], fc2_ref[2], fc2_ref[3],
                                 m2_ref[0], m2_ref[1], stm2_ref[0], stm2_ref[1],
                                 n_points, k_neigh)                     # (d_out, N)


# ------------------------------- JAX wrapper ----------------------------------


def _fold_bn(gamma, beta, mean, var, eps=1e-5):
    scale = gamma / jnp.sqrt(var + eps)
    shift = beta - mean * scale
    return jnp.stack([scale.reshape(-1, 1), shift.reshape(-1, 1)])      # (2, C, 1)


def _batch_spec(shape):
    nd = len(shape)
    return pl.BlockSpec((1,) + shape, lambda b: (b,) + (0,) * nd)


def _full_spec(shape):
    nd = len(shape)
    return pl.BlockSpec(shape, lambda b: (0,) * nd)


def local_spatial_encoding(coords, feature, indices, params):
    """coords (B,N,3), feature (B,d_half,N,1), indices (B,N,K) -> (B,d_out,N,1)."""
    B, N, _ = coords.shape
    K = indices.shape[-1]
    NK = N * K
    d_half = params["w_mlp1"].shape[0]
    d_out = 2 * d_half
    f32 = jnp.float32

    # ---- layout: channels-first; neighbour axis flattened k-major ----
    coords_cf = jnp.transpose(coords, (0, 2, 1)).astype(f32)            # (B, 3, N)
    feat_cf = feature[..., 0].astype(f32)                               # (B, d_half, N)
    idx_kmaj = jnp.transpose(indices, (0, 2, 1)).reshape(B, 1, NK).astype(jnp.int32)
    pid_row = jnp.tile(jnp.arange(N, dtype=jnp.int32), K).reshape(1, NK)

    # ---- fold BN, pre-split / pre-fold weights (no in-kernel slicing) ----
    st1 = _fold_bn(*params["bn_mlp1"])
    st2 = _fold_bn(*params["bn_mlp2"])
    stm1 = _fold_bn(*params["bn_m1"])
    stm2 = _fold_bn(*params["bn_m2"])

    w1 = params["w_mlp1"].astype(f32)       # (d_half, 10): [dist, rel(3), tile(3), neigh(3)]
    wd1 = w1[:, 0:1]
    w_rel, w_tile, w_neigh = w1[:, 1:4], w1[:, 4:7], w1[:, 7:10]
    pe_w = jnp.stack([w_tile + w_rel, w_neigh - w_rel])                 # (2, d_half, 3)

    def split4(w):    # (2h, 2h) -> (4, h, h): [top|a, top|b, bot|a, bot|b]
        return jnp.stack([w[:d_half, :d_half], w[:d_half, d_half:],
                          w[d_half:, :d_half], w[d_half:, d_half:]])

    def split_cols(w):  # (r, 2h) -> (2, r, h)
        return jnp.stack([w[:, :d_half], w[:, d_half:]])

    fc1 = split4(params["w_fc1"].astype(f32))
    fc2 = split4(params["w_fc2"].astype(f32))
    m1 = split_cols(params["w_m1"].astype(f32))
    m2 = split_cols(params["w_m2"].astype(f32))
    w2 = params["w_mlp2"].astype(f32)

    # ---- advisory cost estimate for the XLA scheduler ----
    mm_flops = (4 * 3 * N * NK                      # tile + neigh gathers
                + 4 * 3 * d_half * NK               # mlp1 matmuls
                + 4 * d_half * N * NK               # feature + pool1 gathers
                + 2 * d_half * d_half * NK * 9      # mlp2 + 2x fc (4 dots each)
                + 4 * d_half * d_half * N + 4 * d_out * d_half * N)
    cost = pl.CostEstimate(
        flops=int(B * (mm_flops + 40 * d_out * NK)),
        transcendentals=int(B * (NK + 2 * d_out * NK + 2 * d_out * N)),
        bytes_accessed=int(4 * (coords_cf.size + feat_cf.size + idx_kmaj.size
                                + pid_row.size + pe_w.size + wd1.size + st1.size
                                + w2.size + st2.size + fc1.size + m1.size + stm1.size
                                + fc2.size + m2.size + stm2.size + B * d_out * N)))

    out = pl.pallas_call(
        _lse_fused_kernel,
        grid=(B,),
        in_specs=[
            _batch_spec((3, N)),
            _batch_spec((d_half, N)),
            _batch_spec((1, NK)),
            _full_spec((1, NK)),
            _full_spec(tuple(pe_w.shape)),
            _full_spec(tuple(wd1.shape)),
            _full_spec(tuple(st1.shape)),
            _full_spec(tuple(w2.shape)),
            _full_spec(tuple(st2.shape)),
            _full_spec(tuple(fc1.shape)),
            _full_spec(tuple(m1.shape)),
            _full_spec(tuple(stm1.shape)),
            _full_spec(tuple(fc2.shape)),
            _full_spec(tuple(m2.shape)),
            _full_spec(tuple(stm2.shape)),
        ],
        out_specs=_batch_spec((d_out, N)),
        out_shape=jax.ShapeDtypeStruct((B, d_out, N), f32),
        compiler_params=pltpu.CompilerParams(dimension_semantics=("parallel",)),
        cost_estimate=cost,
    )(coords_cf, feat_cf, idx_kmaj, pid_row,
      pe_w, wd1, st1, w2, st2, fc1, m1, stm1, fc2, m2, stm2)

    return out[..., None]   # (B, d_out, N, 1) — matches PyTorch NCHW output


# -------------------------- parameters & reference ---------------------------


def init_params(key, d_out):
    d_half = d_out // 2
    ks = jax.random.split(key, 6)

    def w(k, co, ci):
        return 0.3 * jax.random.normal(k, (co, ci), jnp.float32)

    def bn(c, g0, b0):
        return (jnp.full((c,), g0, jnp.float32), jnp.full((c,), b0, jnp.float32),
                jnp.zeros((c,), jnp.float32), jnp.ones((c,), jnp.float32))

    return dict(
        w_mlp1=w(ks[0], d_half, 10), bn_mlp1=bn(d_half, 1.0, 0.10),
        w_mlp2=w(ks[1], d_half, d_half), bn_mlp2=bn(d_half, 0.9, -0.05),
        w_fc1=w(ks[2], d_out, d_out),
        w_m1=w(ks[3], d_half, d_out), bn_m1=bn(d_half, 1.1, 0.20),
        w_fc2=w(ks[4], d_out, d_out),
        w_m2=w(ks[5], d_out, d_out), bn_m2=bn(d_out, 1.0, 0.00),
    )


def _reference(coords, feature, indices, params):
    """Pure-JAX mirror of the PyTorch forward (for numerical validation)."""
    B, N, _ = coords.shape
    K = indices.shape[-1]
    hi = jax.lax.Precision.HIGHEST

    def gather(points, idx):
        flat = idx.reshape(B, -1)
        g = jnp.take_along_axis(points, flat[:, :, None], axis=1)
        return g.reshape(B, N, K, points.shape[-1])

    def conv_bn_relu(x, w, bn):
        gm, bt, mn, vr = bn
        y = jnp.einsum('oc,bcnk->bonk', w, x, precision=hi)
        s = gm / jnp.sqrt(vr + 1e-5)
        t = bt - mn * s
        return jnp.maximum(y * s[None, :, None, None] + t[None, :, None, None], 0.0)

    def att_pool(x, wfc, wm, bn):
        act = jnp.einsum('oc,bcnk->bonk', wfc, x, precision=hi)
        scores = jax.nn.softmax(act, axis=3)
        agg = jnp.sum(x * scores, axis=3, keepdims=True)
        return conv_bn_relu(agg, wm, bn)

    nc = gather(coords, indices)
    tile = jnp.broadcast_to(coords[:, :, None, :], nc.shape)
    rel = tile - nc
    dist = jnp.sqrt(jnp.sum(rel ** 2, -1, keepdims=True))
    pe = jnp.transpose(jnp.concatenate([dist, rel, tile, nc], -1), (0, 3, 1, 2))
    f_coords = conv_bn_relu(pe, params["w_mlp1"], params["bn_mlp1"])

    fpts = jnp.transpose(feature[..., 0], (0, 2, 1))
    f_nb = jnp.transpose(gather(fpts, indices), (0, 3, 1, 2))
    f_cat = jnp.concatenate([f_nb, f_coords], axis=1)
    p1 = att_pool(f_cat, params["w_fc1"], params["w_m1"], params["bn_m1"])

    f_coords = conv_bn_relu(f_coords, params["w_mlp2"], params["bn_mlp2"])
    p1pts = jnp.transpose(p1[..., 0], (0, 2, 1))
    f_nb2 = jnp.transpose(gather(p1pts, indices), (0, 3, 1, 2))
    f_cat2 = jnp.concatenate([f_nb2, f_coords], axis=1)
    return att_pool(f_cat2, params["w_fc2"], params["w_m2"], params["bn_m2"])


# ----------------------------------- main -------------------------------------


if __name__ == "__main__":
    d_out = 6                      # d_out//2 == 3, so `feature` has 3 channels
    B, N, K = 2, 16, 8

    key = jax.random.PRNGKey(0)
    k_c, k_f, k_i, k_p = jax.random.split(key, 4)
    coords = jax.random.normal(k_c, (B, N, 3), jnp.float32)
    feature = jax.random.normal(k_f, (B, d_out // 2, N, 1), jnp.float32)
    indices = jax.random.randint(k_i, (B, N, K), 0, N, jnp.int32)
    params = init_params(k_p, d_out)

    out = jax.jit(local_spatial_encoding)(coords, feature, indices, params)
    out = jax.block_until_ready(out)
    assert out.shape == (B, d_out, N, 1), out.shape

    ref = jax.block_until_ready(_reference(coords, feature, indices, params))
    assert jnp.allclose(out, ref, rtol=1e-3, atol=1e-3), float(jnp.max(jnp.abs(out - ref)))

    print("KERNEL_OK")
</pallas_src>

<mosaic_0001>
module attributes {stable_mosaic.version = 11 : i64} {
  func.func @_lse_fused_kernel(%arg0: i32, %arg1: memref<1x3x16xf32, #tpu.memory_space<vmem>>, %arg2: memref<1x3x16xf32, #tpu.memory_space<vmem>>, %arg3: memref<1x1x128xi32, #tpu.memory_space<vmem>>, %arg4: memref<1x128xi32, #tpu.memory_space<vmem>>, %arg5: memref<2x3x3xf32, #tpu.memory_space<vmem>>, %arg6: memref<3x1xf32, #tpu.memory_space<vmem>>, %arg7: memref<2x3x1xf32, #tpu.memory_space<vmem>>, %arg8: memref<3x3xf32, #tpu.memory_space<vmem>>, %arg9: memref<2x3x1xf32, #tpu.memory_space<vmem>>, %arg10: memref<4x3x3xf32, #tpu.memory_space<vmem>>, %arg11: memref<2x3x3xf32, #tpu.memory_space<vmem>>, %arg12: memref<2x3x1xf32, #tpu.memory_space<vmem>>, %arg13: memref<4x3x3xf32, #tpu.memory_space<vmem>>, %arg14: memref<2x6x3xf32, #tpu.memory_space<vmem>>, %arg15: memref<2x6x1xf32, #tpu.memory_space<vmem>>, %arg16: memref<1x6x16xf32, #tpu.memory_space<vmem>>) attributes {dimension_semantics = [#tpu.dimension_semantics<parallel>], iteration_bounds = array<i64: 2>, scalar_prefetch = 0 : i64, scratch_operands = 0 : i64, tpu.core_type = #tpu.core_type<tc>, window_params = [{transform_indices = @transform_0, window_bounds = array<i64: 1, 3, 16>}, {transform_indices = @transform_1, window_bounds = array<i64: 1, 3, 16>}, {transform_indices = @transform_2, window_bounds = array<i64: 1, 1, 128>}, {pipeline_mode = #tpu.pipeline_mode<synchronous>, transform_indices = @transform_3, window_bounds = array<i64: 1, 128>}, {pipeline_mode = #tpu.pipeline_mode<synchronous>, transform_indices = @transform_4, window_bounds = array<i64: 2, 3, 3>}, {pipeline_mode = #tpu.pipeline_mode<synchronous>, transform_indices = @transform_5, window_bounds = array<i64: 3, 1>}, {pipeline_mode = #tpu.pipeline_mode<synchronous>, transform_indices = @transform_6, window_bounds = array<i64: 2, 3, 1>}, {pipeline_mode = #tpu.pipeline_mode<synchronous>, transform_indices = @transform_7, window_bounds = array<i64: 3, 3>}, {pipeline_mode = #tpu.pipeline_mode<synchronous>, transform_indices = @transform_8, window_bounds = array<i64: 2, 3, 1>}, {pipeline_mode = #tpu.pipeline_mode<synchronous>, transform_indices = @transform_9, window_bounds = array<i64: 4, 3, 3>}, {pipeline_mode = #tpu.pipeline_mode<synchronous>, transform_indices = @transform_10, window_bounds = array<i64: 2, 3, 3>}, {pipeline_mode = #tpu.pipeline_mode<synchronous>, transform_indices = @transform_11, window_bounds = array<i64: 2, 3, 1>}, {pipeline_mode = #tpu.pipeline_mode<synchronous>, transform_indices = @transform_12, window_bounds = array<i64: 4, 3, 3>}, {pipeline_mode = #tpu.pipeline_mode<synchronous>, transform_indices = @transform_13, window_bounds = array<i64: 2, 6, 3>}, {pipeline_mode = #tpu.pipeline_mode<synchronous>, transform_indices = @transform_14, window_bounds = array<i64: 2, 6, 1>}, {transform_indices = @transform_15, window_bounds = array<i64: 1, 6, 16>}]} {
    %c0 = arith.constant 0 : index
    %c0_0 = arith.constant 0 : index
    %c0_1 = arith.constant 0 : index
    %0 = vector.load %arg1[%c0, %c0_0, %c0_1] : memref<1x3x16xf32, #tpu.memory_space<vmem>>, vector<1x3x16xf32>
    %1 = vector.shape_cast %0 : vector<1x3x16xf32> to vector<3x16xf32>
    %c0_2 = arith.constant 0 : index
    %c0_3 = arith.constant 0 : index
    %c0_4 = arith.constant 0 : index
    %2 = vector.load %arg2[%c0_2, %c0_3, %c0_4] : memref<1x3x16xf32, #tpu.memory_space<vmem>>, vector<1x3x16xf32>
    %3 = vector.shape_cast %2 : vector<1x3x16xf32> to vector<3x16xf32>
    %c0_5 = arith.constant 0 : index
    %c0_6 = arith.constant 0 : index
    %c0_7 = arith.constant 0 : index
    %4 = vector.load %arg3[%c0_5, %c0_6, %c0_7] : memref<1x1x128xi32, #tpu.memory_space<vmem>>, vector<1x1x128xi32>
    %5 = vector.shape_cast %4 : vector<1x1x128xi32> to vector<1x128xi32>
    %c0_8 = arith.constant 0 : index
    %c0_9 = arith.constant 0 : index
    %6 = vector.load %arg4[%c0_8, %c0_9] : memref<1x128xi32, #tpu.memory_space<vmem>>, vector<1x128xi32>
    %7 = tpu.iota {dimensions = array<i32: 0>} : vector<16x128xi32>
    %8 = vector.broadcast %5 : vector<1x128xi32> to vector<16x128xi32>
    %9 = arith.cmpi eq, %7, %8 : vector<16x128xi32>
    %10 = arith.extui %9 : vector<16x128xi1> to vector<16x128xi32>
    %11 = arith.sitofp %10 : vector<16x128xi32> to vector<16x128xf32>
    %12 = vector.broadcast %6 : vector<1x128xi32> to vector<16x128xi32>
    %13 = arith.cmpi eq, %7, %12 : vector<16x128xi32>
    %14 = arith.extui %13 : vector<16x128xi1> to vector<16x128xi32>
    %15 = arith.sitofp %14 : vector<16x128xi32> to vector<16x128xf32>
    %cst = arith.constant dense<0.000000e+00> : vector<3x128xf32>
    %16 = tpu.matmul %1, %15, %cst {dimension_numbers = #tpu.dot_dimension_numbers<[1], [0], [0], [1], [0, 0, 1, 1], [], []>} : vector<3x16xf32>, vector<16x128xf32>, vector<3x128xf32> -> vector<3x128xf32>
    %cst_10 = arith.constant dense<0.000000e+00> : vector<3x128xf32>
    %17 = tpu.matmul %1, %11, %cst_10 {dimension_numbers = #tpu.dot_dimension_numbers<[1], [0], [0], [1], [0, 0, 1, 1], [], []>} : vector<3x16xf32>, vector<16x128xf32>, vector<3x128xf32> -> vector<3x128xf32>
    %18 = arith.subf %16, %17 : vector<3x128xf32>
    %19 = vector.extract_strided_slice %18 {offsets = [0, 0], sizes = [1, 128], strides = [1, 1]} : vector<3x128xf32> to vector<1x128xf32>
    %20 = vector.extract_strided_slice %18 {offsets = [0, 0], sizes = [1, 128], strides = [1, 1]} : vector<3x128xf32> to vector<1x128xf32>
    %21 = arith.mulf %19, %20 : vector<1x128xf32>
    %22 = vector.extract_strided_slice %18 {offsets = [1, 0], sizes = [1, 128], strides = [1, 1]} : vector<3x128xf32> to vector<1x128xf32>
    %23 = vector.extract_strided_slice %18 {offsets = [1, 0], sizes = [1, 128], strides = [1, 1]} : vector<3x128xf32> to vector<1x128xf32>
    %24 = arith.mulf %22, %23 : vector<1x128xf32>
    %25 = arith.addf %21, %24 : vector<1x128xf32>
    %26 = vector.extract_strided_slice %18 {offsets = [2, 0], sizes = [1, 128], strides = [1, 1]} : vector<3x128xf32> to vector<1x128xf32>
    %27 = vector.extract_strided_slice %18 {offsets = [2, 0], sizes = [1, 128], strides = [1, 1]} : vector<3x128xf32> to vector<1x128xf32>
    %28 = arith.mulf %26, %27 : vector<1x128xf32>
    %29 = arith.addf %25, %28 : vector<1x128xf32>
    %30 = math.sqrt %29 : vector<1x128xf32>
    %c0_11 = arith.constant 0 : index
    %c0_12 = arith.constant 0 : index
    %c0_13 = arith.constant 0 : index
    %31 = vector.load %arg5[%c0_11, %c0_12, %c0_13] : memref<2x3x3xf32, #tpu.memory_space<vmem>>, vector<1x3x3xf32>
    %32 = vector.shape_cast %31 : vector<1x3x3xf32> to vector<3x3xf32>
    %cst_14 = arith.constant dense<0.000000e+00> : vector<3x128xf32>
    %33 = tpu.matmul %32, %16, %cst_14 {dimension_numbers = #tpu.dot_dimension_numbers<[1], [0], [0], [1], [0, 0, 1, 1], [], []>} : vector<3x3xf32>, vector<3x128xf32>, vector<3x128xf32> -> vector<3x128xf32>
    %c1 = arith.constant 1 : index
    %c0_15 = arith.constant 0 : index
    %c0_16 = arith.constant 0 : index
    %34 = vector.load %arg5[%c1, %c0_15, %c0_16] : memref<2x3x3xf32, #tpu.memory_space<vmem>>, vector<1x3x3xf32>
    %35 = vector.shape_cast %34 : vector<1x3x3xf32> to vector<3x3xf32>
    %cst_17 = arith.constant dense<0.000000e+00> : vector<3x128xf32>
    %36 = tpu.matmul %35, %17, %cst_17 {dimension_numbers = #tpu.dot_dimension_numbers<[1], [0], [0], [1], [0, 0, 1, 1], [], []>} : vector<3x3xf32>, vector<3x128xf32>, vector<3x128xf32> -> vector<3x128xf32>
    %37 = arith.addf %33, %36 : vector<3x128xf32>
    %c0_18 = arith.constant 0 : index
    %c0_19 = arith.constant 0 : index
    %38 = vector.load %arg6[%c0_18, %c0_19] : memref<3x1xf32, #tpu.memory_space<vmem>>, vector<3x1xf32>
    %39 = vector.broadcast %38 : vector<3x1xf32> to vector<3x128xf32>
    %40 = vector.broadcast %30 : vector<1x128xf32> to vector<3x128xf32>
    %41 = arith.mulf %39, %40 : vector<3x128xf32>
    %42 = arith.addf %37, %41 : vector<3x128xf32>
    %c0_20 = arith.constant 0 : index
    %c0_21 = arith.constant 0 : index
    %c0_22 = arith.constant 0 : index
    %43 = vector.load %arg7[%c0_20, %c0_21, %c0_22] : memref<2x3x1xf32, #tpu.memory_space<vmem>>, vector<1x3x1xf32>
    %44 = vector.shape_cast %43 : vector<1x3x1xf32> to vector<3x1xf32>
    %45 = vector.broadcast %44 : vector<3x1xf32> to vector<3x128xf32>
    %46 = arith.mulf %42, %45 : vector<3x128xf32>
    %c1_23 = arith.constant 1 : index
    %c0_24 = arith.constant 0 : index
    %c0_25 = arith.constant 0 : index
    %47 = vector.load %arg7[%c1_23, %c0_24, %c0_25] : memref<2x3x1xf32, #tpu.memory_space<vmem>>, vector<1x3x1xf32>
    %48 = vector.shape_cast %47 : vector<1x3x1xf32> to vector<3x1xf32>
    %49 = vector.broadcast %48 : vector<3x1xf32> to vector<3x128xf32>
    %50 = arith.addf %46, %49 : vector<3x128xf32>
    %cst_26 = arith.constant 0.000000e+00 : f32
    %51 = vector.broadcast %cst_26 : f32 to vector<3x128xf32>
    %52 = arith.maximumf %50, %51 : vector<3x128xf32>
    %cst_27 = arith.constant dense<0.000000e+00> : vector<3x128xf32>
    %53 = tpu.matmul %3, %11, %cst_27 {dimension_numbers = #tpu.dot_dimension_numbers<[1], [0], [0], [1], [0, 0, 1, 1], [], []>} : vector<3x16xf32>, vector<16x128xf32>, vector<3x128xf32> -> vector<3x128xf32>
    %c0_28 = arith.constant 0 : index
    %c0_29 = arith.constant 0 : index
    %c0_30 = arith.constant 0 : index
    %54 = vector.load %arg10[%c0_28, %c0_29, %c0_30] : memref<4x3x3xf32, #tpu.memory_space<vmem>>, vector<1x3x3xf32>
    %55 = vector.shape_cast %54 : vector<1x3x3xf32> to vector<3x3xf32>
    %c1_31 = arith.constant 1 : index
    %c0_32 = arith.constant 0 : index
    %c0_33 = arith.constant 0 : index
    %56 = vector.load %arg10[%c1_31, %c0_32, %c0_33] : memref<4x3x3xf32, #tpu.memory_space<vmem>>, vector<1x3x3xf32>
    %57 = vector.shape_cast %56 : vector<1x3x3xf32> to vector<3x3xf32>
    %c2 = arith.constant 2 : index
    %c0_34 = arith.constant 0 : index
    %c0_35 = arith.constant 0 : index
    %58 = vector.load %arg10[%c2, %c0_34, %c0_35] : memref<4x3x3xf32, #tpu.memory_space<vmem>>, vector<1x3x3xf32>
    %59 = vector.shape_cast %58 : vector<1x3x3xf32> to vector<3x3xf32>
    %c3 = arith.constant 3 : index
    %c0_36 = arith.constant 0 : index
    %c0_37 = arith.constant 0 : index
    %60 = vector.load %arg10[%c3, %c0_36, %c0_37] : memref<4x3x3xf32, #tpu.memory_space<vmem>>, vector<1x3x3xf32>
    %61 = vector.shape_cast %60 : vector<1x3x3xf32> to vector<3x3xf32>
    %c0_38 = arith.constant 0 : index
    %c0_39 = arith.constant 0 : index
    %c0_40 = arith.constant 0 : index
    %62 = vector.load %arg11[%c0_38, %c0_39, %c0_40] : memref<2x3x3xf32, #tpu.memory_space<vmem>>, vector<1x3x3xf32>
    %63 = vector.shape_cast %62 : vector<1x3x3xf32> to vector<3x3xf32>
    %c1_41 = arith.constant 1 : index
    %c0_42 = arith.constant 0 : index
    %c0_43 = arith.constant 0 : index
    %64 = vector.load %arg11[%c1_41, %c0_42, %c0_43] : memref<2x3x3xf32, #tpu.memory_space<vmem>>, vector<1x3x3xf32>
    %65 = vector.shape_cast %64 : vector<1x3x3xf32> to vector<3x3xf32>
    %c0_44 = arith.constant 0 : index
    %c0_45 = arith.constant 0 : index
    %c0_46 = arith.constant 0 : index
    %66 = vector.load %arg12[%c0_44, %c0_45, %c0_46] : memref<2x3x1xf32, #tpu.memory_space<vmem>>, vector<1x3x1xf32>
    %67 = vector.shape_cast %66 : vector<1x3x1xf32> to vector<3x1xf32>
    %c1_47 = arith.constant 1 : index
    %c0_48 = arith.constant 0 : index
    %c0_49 = arith.constant 0 : index
    %68 = vector.load %arg12[%c1_47, %c0_48, %c0_49] : memref<2x3x1xf32, #tpu.memory_space<vmem>>, vector<1x3x1xf32>
    %69 = vector.shape_cast %68 : vector<1x3x1xf32> to vector<3x1xf32>
    %cst_50 = arith.constant dense<0.000000e+00> : vector<3x128xf32>
    %70 = tpu.matmul %55, %53, %cst_50 {dimension_numbers = #tpu.dot_dimension_numbers<[1], [0], [0], [1], [0, 0, 1, 1], [], []>} : vector<3x3xf32>, vector<3x128xf32>, vector<3x128xf32> -> vector<3x128xf32>
    %cst_51 = arith.constant dense<0.000000e+00> : vector<3x128xf32>
    %71 = tpu.matmul %57, %52, %cst_51 {dimension_numbers = #tpu.dot_dimension_numbers<[1], [0], [0], [1], [0, 0, 1, 1], [], []>} : vector<3x3xf32>, vector<3x128xf32>, vector<3x128xf32> -> vector<3x128xf32>
    %72 = arith.addf %70, %71 : vector<3x128xf32>
    %cst_52 = arith.constant dense<0.000000e+00> : vector<3x128xf32>
    %73 = tpu.matmul %59, %53, %cst_52 {dimension_numbers = #tpu.dot_dimension_numbers<[1], [0], [0], [1], [0, 0, 1, 1], [], []>} : vector<3x3xf32>, vector<3x128xf32>, vector<3x128xf32> -> vector<3x128xf32>
    %cst_53 = arith.constant dense<0.000000e+00> : vector<3x128xf32>
    %74 = tpu.matmul %61, %52, %cst_53 {dimension_numbers = #tpu.dot_dimension_numbers<[1], [0], [0], [1], [0, 0, 1, 1], [], []>} : vector<3x3xf32>, vector<3x128xf32>, vector<3x128xf32> -> vector<3x128xf32>
    %75 = arith.addf %73, %74 : vector<3x128xf32>
    %76 = vector.extract_strided_slice %72 {offsets = [0, 0], sizes = [3, 16], strides = [1, 1]} : vector<3x128xf32> to vector<3x16xf32>
    %77 = vector.extract_strided_slice %75 {offsets = [0, 0], sizes = [3, 16], strides = [1, 1]} : vector<3x128xf32> to vector<3x16xf32>
    %78 = vector.extract_strided_slice %72 {offsets = [0, 16], sizes = [3, 16], strides = [1, 1]} : vector<3x128xf32> to vector<3x16xf32>
    %79 = arith.maximumf %76, %78 : vector<3x16xf32>
    %80 = vector.extract_strided_slice %75 {offsets = [0, 16], sizes = [3, 16], strides = [1, 1]} : vector<3x128xf32> to vector<3x16xf32>
    %81 = arith.maximumf %77, %80 : vector<3x16xf32>
    %82 = vector.extract_strided_slice %72 {offsets = [0, 32], sizes = [3, 16], strides = [1, 1]} : vector<3x128xf32> to vector<3x16xf32>
    %83 = arith.maximumf %79, %82 : vector<3x16xf32>
    %84 = vector.extract_strided_slice %75 {offsets = [0, 32], sizes = [3, 16], strides = [1, 1]} : vector<3x128xf32> to vector<3x16xf32>
    %85 = arith.maximumf %81, %84 : vector<3x16xf32>
    %86 = vector.extract_strided_slice %72 {offsets = [0, 48], sizes = [3, 16], strides = [1, 1]} : vector<3x128xf32> to vector<3x16xf32>
    %87 = arith.maximumf %83, %86 : vector<3x16xf32>
    %88 = vector.extract_strided_slice %75 {offsets = [0, 48], sizes = [3, 16], strides = [1, 1]} : vector<3x128xf32> to vector<3x16xf32>
    %89 = arith.maximumf %85, %88 : vector<3x16xf32>
    %90 = vector.extract_strided_slice %72 {offsets = [0, 64], sizes = [3, 16], strides = [1, 1]} : vector<3x128xf32> to vector<3x16xf32>
    %91 = arith.maximumf %87, %90 : vector<3x16xf32>
    %92 = vector.extract_strided_slice %75 {offsets = [0, 64], sizes = [3, 16], strides = [1, 1]} : vector<3x128xf32> to vector<3x16xf32>
    %93 = arith.maximumf %89, %92 : vector<3x16xf32>
    %94 = vector.extract_strided_slice %72 {offsets = [0, 80], sizes = [3, 16], strides = [1, 1]} : vector<3x128xf32> to vector<3x16xf32>
    %95 = arith.maximumf %91, %94 : vector<3x16xf32>
    %96 = vector.extract_strided_slice %75 {offsets = [0, 80], sizes = [3, 16], strides = [1, 1]} : vector<3x128xf32> to vector<3x16xf32>
    %97 = arith.maximumf %93, %96 : vector<3x16xf32>
    %98 = vector.extract_strided_slice %72 {offsets = [0, 96], sizes = [3, 16], strides = [1, 1]} : vector<3x128xf32> to vector<3x16xf32>
    %99 = arith.maximumf %95, %98 : vector<3x16xf32>
    %100 = vector.extract_strided_slice %75 {offsets = [0, 96], sizes = [3, 16], strides = [1, 1]} : vector<3x128xf32> to vector<3x16xf32>
    %101 = arith.maximumf %97, %100 : vector<3x16xf32>
    %102 = vector.extract_strided_slice %72 {offsets = [0, 112], sizes = [3, 16], strides = [1, 1]} : vector<3x128xf32> to vector<3x16xf32>
    %103 = arith.maximumf %99, %102 : vector<3x16xf32>
    %104 = vector.extract_strided_slice %75 {offsets = [0, 112], sizes = [3, 16], strides = [1, 1]} : vector<3x128xf32> to vector<3x16xf32>
    %105 = arith.maximumf %101, %104 : vector<3x16xf32>
    %cst_54 = arith.constant 0.000000e+00 : f32
    %106 = vector.broadcast %cst_54 : f32 to vector<3x16xf32>
    %cst_55 = arith.constant 0.000000e+00 : f32
    %107 = vector.broadcast %cst_55 : f32 to vector<3x16xf32>
    %cst_56 = arith.constant 0.000000e+00 : f32
    %108 = vector.broadcast %cst_56 : f32 to vector<3x16xf32>
    %cst_57 = arith.constant 0.000000e+00 : f32
    %109 = vector.broadcast %cst_57 : f32 to vector<3x16xf32>
    %110 = vector.extract_strided_slice %72 {offsets = [0, 0], sizes = [3, 16], strides = [1, 1]} : vector<3x128xf32> to vector<3x16xf32>
    %111 = arith.subf %110, %103 : vector<3x16xf32>
    %112 = math.exp %111 : vector<3x16xf32>
    %113 = vector.extract_strided_slice %75 {offsets = [0, 0], sizes = [3, 16], strides = [1, 1]} : vector<3x128xf32> to vector<3x16xf32>
    %114 = arith.subf %113, %105 : vector<3x16xf32>
    %115 = math.exp %114 : vector<3x16xf32>
    %116 = arith.addf %106, %112 : vector<3x16xf32>
    %117 = arith.addf %107, %115 : vector<3x16xf32>
    %118 = vector.extract_strided_slice %53 {offsets = [0, 0], sizes = [3, 16], strides = [1, 1]} : vector<3x128xf32> to vector<3x16xf32>
    %119 = arith.mulf %118, %112 : vector<3x16xf32>
    %120 = arith.addf %108, %119 : vector<3x16xf32>
    %121 = vector.extract_strided_slice %52 {offsets = [0, 0], sizes = [3, 16], strides = [1, 1]} : vector<3x128xf32> to vector<3x16xf32>
    %122 = arith.mulf %121, %115 : vector<3x16xf32>
    %123 = arith.addf %109, %122 : vector<3x16xf32>
    %124 = vector.extract_strided_slice %72 {offsets = [0, 16], sizes = [3, 16], strides = [1, 1]} : vector<3x128xf32> to vector<3x16xf32>
    %125 = arith.subf %124, %103 : vector<3x16xf32>
    %126 = math.exp %125 : vector<3x16xf32>
    %127 = vector.extract_strided_slice %75 {offsets = [0, 16], sizes = [3, 16], strides = [1, 1]} : vector<3x128xf32> to vector<3x16xf32>
    %128 = arith.subf %127, %105 : vector<3x16xf32>
    %129 = math.exp %128 : vector<3x16xf32>
    %130 = arith.addf %116, %126 : vector<3x16xf32>
    %131 = arith.addf %117, %129 : vector<3x16xf32>
    %132 = vector.extract_strided_slice %53 {offsets = [0, 16], sizes = [3, 16], strides = [1, 1]} : vector<3x128xf32> to vector<3x16xf32>
    %133 = arith.mulf %132, %126 : vector<3x16xf32>
    %134 = arith.addf %120, %133 : vector<3x16xf32>
    %135 = vector.extract_strided_slice %52 {offsets = [0, 16], sizes = [3, 16], strides = [1, 1]} : vector<3x128xf32> to vector<3x16xf32>
    %136 = arith.mulf %135, %129 : vector<3x16xf32>
    %137 = arith.addf %123, %136 : vector<3x16xf32>
    %138 = vector.extract_strided_slice %72 {offsets = [0, 32], sizes = [3, 16], strides = [1, 1]} : vector<3x128xf32> to vector<3x16xf32>
    %139 = arith.subf %138, %103 : vector<3x16xf32>
    %140 = math.exp %139 : vector<3x16xf32>
    %141 = vector.extract_strided_slice %75 {offsets = [0, 32], sizes = [3, 16], strides = [1, 1]} : vector<3x128xf32> to vector<3x16xf32>
    %142 = arith.subf %141, %105 : vector<3x16xf32>
    %143 = math.exp %142 : vector<3x16xf32>
    %144 = arith.addf %130, %140 : vector<3x16xf32>
    %145 = arith.addf %131, %143 : vector<3x16xf32>
    %146 = vector.extract_strided_slice %53 {offsets = [0, 32], sizes = [3, 16], strides = [1, 1]} : vector<3x128xf32> to vector<3x16xf32>
    %147 = arith.mulf %146, %140 : vector<3x16xf32>
    %148 = arith.addf %134, %147 : vector<3x16xf32>
    %149 = vector.extract_strided_slice %52 {offsets = [0, 32], sizes = [3, 16], strides = [1, 1]} : vector<3x128xf32> to vector<3x16xf32>
    %150 = arith.mulf %149, %143 : vector<3x16xf32>
    %151 = arith.addf %137, %150 : vector<3x16xf32>
    %152 = vector.extract_strided_slice %72 {offsets = [0, 48], sizes = [3, 16], strides = [1, 1]} : vector<3x128xf32> to vector<3x16xf32>
    %153 = arith.subf %152, %103 : vector<3x16xf32>
    %154 = math.exp %153 : vector<3x16xf32>
    %155 = vector.extract_strided_slice %75 {offsets = [0, 48], sizes = [3, 16], strides = [1, 1]} : vector<3x128xf32> to vector<3x16xf32>
    %156 = arith.subf %155, %105 : vector<3x16xf32>
    %157 = math.exp %156 : vector<3x16xf32>
    %158 = arith.addf %144, %154 : vector<3x16xf32>
    %159 = arith.addf %145, %157 : vector<3x16xf32>
    %160 = vector.extract_strided_slice %53 {offsets = [0, 48], sizes = [3, 16], strides = [1, 1]} : vector<3x128xf32> to vector<3x16xf32>
    %161 = arith.mulf %160, %154 : vector<3x16xf32>
    %162 = arith.addf %148, %161 : vector<3x16xf32>
    %163 = vector.extract_strided_slice %52 {offsets = [0, 48], sizes = [3, 16], strides = [1, 1]} : vector<3x128xf32> to vector<3x16xf32>
    %164 = arith.mulf %163, %157 : vector<3x16xf32>
    %165 = arith.addf %151, %164 : vector<3x16xf32>
    %166 = vector.extract_strided_slice %72 {offsets = [0, 64], sizes = [3, 16], strides = [1, 1]} : vector<3x128xf32> to vector<3x16xf32>
    %167 = arith.subf %166, %103 : vector<3x16xf32>
    %168 = math.exp %167 : vector<3x16xf32>
    %169 = vector.extract_strided_slice %75 {offsets = [0, 64], sizes = [3, 16], strides = [1, 1]} : vector<3x128xf32> to vector<3x16xf32>
    %170 = arith.subf %169, %105 : vector<3x16xf32>
    %171 = math.exp %170 : vector<3x16xf32>
    %172 = arith.addf %158, %168 : vector<3x16xf32>
    %173 = arith.addf %159, %171 : vector<3x16xf32>
    %174 = vector.extract_strided_slice %53 {offsets = [0, 64], sizes = [3, 16], strides = [1, 1]} : vector<3x128xf32> to vector<3x16xf32>
    %175 = arith.mulf %174, %168 : vector<3x16xf32>
    %176 = arith.addf %162, %175 : vector<3x16xf32>
    %177 = vector.extract_strided_slice %52 {offsets = [0, 64], sizes = [3, 16], strides = [1, 1]} : vector<3x128xf32> to vector<3x16xf32>
    %178 = arith.mulf %177, %171 : vector<3x16xf32>
    %179 = arith.addf %165, %178 : vector<3x16xf32>
    %180 = vector.extract_strided_slice %72 {offsets = [0, 80], sizes = [3, 16], strides = [1, 1]} : vector<3x128xf32> to vector<3x16xf32>
    %181 = arith.subf %180, %103 : vector<3x16xf32>
    %182 = math.exp %181 : vector<3x16xf32>
    %183 = vector.extract_strided_slice %75 {offsets = [0, 80], sizes = [3, 16], strides = [1, 1]} : vector<3x128xf32> to vector<3x16xf32>
    %184 = arith.subf %183, %105 : vector<3x16xf32>
    %185 = math.exp %184 : vector<3x16xf32>
    %186 = arith.addf %172, %182 : vector<3x16xf32>
    %187 = arith.addf %173, %185 : vector<3x16xf32>
    %188 = vector.extract_strided_slice %53 {offsets = [0, 80], sizes = [3, 16], strides = [1, 1]} : vector<3x128xf32> to vector<3x16xf32>
    %189 = arith.mulf %188, %182 : vector<3x16xf32>
    %190 = arith.addf %176, %189 : vector<3x16xf32>
    %191 = vector.extract_strided_slice %52 {offsets = [0, 80], sizes = [3, 16], strides = [1, 1]} : vector<3x128xf32> to vector<3x16xf32>
    %192 = arith.mulf %191, %185 : vector<3x16xf32>
    %193 = arith.addf %179, %192 : vector<3x16xf32>
    %194 = vector.extract_strided_slice %72 {offsets = [0, 96], sizes = [3, 16], strides = [1, 1]} : vector<3x128xf32> to vector<3x16xf32>
    %195 = arith.subf %194, %103 : vector<3x16xf32>
    %196 = math.exp %195 : vector<3x16xf32>
    %197 = vector.extract_strided_slice %75 {offsets = [0, 96], sizes = [3, 16], strides = [1, 1]} : vector<3x128xf32> to vector<3x16xf32>
    %198 = arith.subf %197, %105 : vector<3x16xf32>
    %199 = math.exp %198 : vector<3x16xf32>
    %200 = arith.addf %186, %196 : vector<3x16xf32>
    %201 = arith.addf %187, %199 : vector<3x16xf32>
    %202 = vector.extract_strided_slice %53 {offsets = [0, 96], sizes = [3, 16], strides = [1, 1]} : vector<3x128xf32> to vector<3x16xf32>
    %203 = arith.mulf %202, %196 : vector<3x16xf32>
    %204 = arith.addf %190, %203 : vector<3x16xf32>
    %205 = vector.extract_strided_slice %52 {offsets = [0, 96], sizes = [3, 16], strides = [1, 1]} : vector<3x128xf32> to vector<3x16xf32>
    %206 = arith.mulf %205, %199 : vector<3x16xf32>
    %207 = arith.addf %193, %206 : vector<3x16xf32>
    %208 = vector.extract_strided_slice %72 {offsets = [0, 112], sizes = [3, 16], strides = [1, 1]} : vector<3x128xf32> to vector<3x16xf32>
    %209 = arith.subf %208, %103 : vector<3x16xf32>
    %210 = math.exp %209 : vector<3x16xf32>
    %211 = vector.extract_strided_slice %75 {offsets = [0, 112], sizes = [3, 16], strides = [1, 1]} : vector<3x128xf32> to vector<3x16xf32>
    %212 = arith.subf %211, %105 : vector<3x16xf32>
    %213 = math.exp %212 : vector<3x16xf32>
    %214 = arith.addf %200, %210 : vector<3x16xf32>
    %215 = arith.addf %201, %213 : vector<3x16xf32>
    %216 = vector.extract_strided_slice %53 {offsets = [0, 112], sizes = [3, 16], strides = [1, 1]} : vector<3x128xf32> to vector<3x16xf32>
    %217 = arith.mulf %216, %210 : vector<3x16xf32>
    %218 = arith.addf %204, %217 : vector<3x16xf32>
    %219 = vector.extract_strided_slice %52 {offsets = [0, 112], sizes = [3, 16], strides = [1, 1]} : vector<3x128xf32> to vector<3x16xf32>
    %220 = arith.mulf %219, %213 : vector<3x16xf32>
    %221 = arith.addf %207, %220 : vector<3x16xf32>
    %222 = tpu.reciprocal %214 : vector<3x16xf32> -> vector<3x16xf32>
    %223 = arith.mulf %218, %222 : vector<3x16xf32>
    %224 = tpu.reciprocal %215 : vector<3x16xf32> -> vector<3x16xf32>
    %225 = arith.mulf %221, %224 : vector<3x16xf32>
    %cst_58 = arith.constant dense<0.000000e+00> : vector<3x16xf32>
    %226 = tpu.matmul %63, %223, %cst_58 {dimension_numbers = #tpu.dot_dimension_numbers<[1], [0], [0], [1], [0, 0, 1, 1], [], []>} : vector<3x3xf32>, vector<3x16xf32>, vector<3x16xf32> -> vector<3x16xf32>
    %cst_59 = arith.constant dense<0.000000e+00> : vector<3x16xf32>
    %227 = tpu.matmul %65, %225, %cst_59 {dimension_numbers = #tpu.dot_dimension_numbers<[1], [0], [0], [1], [0, 0, 1, 1], [], []>} : vector<3x3xf32>, vector<3x16xf32>, vector<3x16xf32> -> vector<3x16xf32>
    %228 = arith.addf %226, %227 : vector<3x16xf32>
    %229 = vector.broadcast %67 : vector<3x1xf32> to vector<3x16xf32>
    %230 = arith.mulf %228, %229 : vector<3x16xf32>
    %231 = vector.broadcast %69 : vector<3x1xf32> to vector<3x16xf32>
    %232 = arith.addf %230, %231 : vector<3x16xf32>
    %cst_60 = arith.constant 0.000000e+00 : f32
    %233 = vector.broadcast %cst_60 : f32 to vector<3x16xf32>
    %234 = arith.maximumf %232, %233 : vector<3x16xf32>
    %c0_61 = arith.constant 0 : index
    %c0_62 = arith.constant 0 : index
    %235 = vector.load %arg8[%c0_61, %c0_62] : memref<3x3xf32, #tpu.memory_space<vmem>>, vector<3x3xf32>
    %cst_63 = arith.constant dense<0.000000e+00> : vector<3x128xf32>
    %236 = tpu.matmul %235, %52, %cst_63 {dimension_numbers = #tpu.dot_dimension_numbers<[1], [0], [0], [1], [0, 0, 1, 1], [], []>} : vector<3x3xf32>, vector<3x128xf32>, vector<3x128xf32> -> vector<3x128xf32>
    %c0_64 = arith.constant 0 : index
    %c0_65 = arith.constant 0 : index
    %c0_66 = arith.constant 0 : index
    %237 = vector.load %arg9[%c0_64, %c0_65, %c0_66] : memref<2x3x1xf32, #tpu.memory_space<vmem>>, vector<1x3x1xf32>
    %238 = vector.shape_cast %237 : vector<1x3x1xf32> to vector<3x1xf32>
    %239 = vector.broadcast %238 : vector<3x1xf32> to vector<3x128xf32>
    %240 = arith.mulf %236, %239 : vector<3x128xf32>
    %c1_67 = arith.constant 1 : index
    %c0_68 = arith.constant 0 : index
    %c0_69 = arith.constant 0 : index
    %241 = vector.load %arg9[%c1_67, %c0_68, %c0_69] : memref<2x3x1xf32, #tpu.memory_space<vmem>>, vector<1x3x1xf32>
    %242 = vector.shape_cast %241 : vector<1x3x1xf32> to vector<3x1xf32>
    %243 = vector.broadcast %242 : vector<3x1xf32> to vector<3x128xf32>
    %244 = arith.addf %240, %243 : vector<3x128xf32>
    %cst_70 = arith.constant 0.000000e+00 : f32
    %245 = vector.broadcast %cst_70 : f32 to vector<3x128xf32>
    %246 = arith.maximumf %244, %245 : vector<3x128xf32>
    %cst_71 = arith.constant dense<0.000000e+00> : vector<3x128xf32>
    %247 = tpu.matmul %234, %11, %cst_71 {dimension_numbers = #tpu.dot_dimension_numbers<[1], [0], [0], [1], [0, 0, 1, 1], [], []>} : vector<3x16xf32>, vector<16x128xf32>, vector<3x128xf32> -> vector<3x128xf32>
    %c0_72 = arith.constant 0 : index
    %c0_73 = arith.constant 0 : index
    %c0_74 = arith.constant 0 : index
    %248 = vector.load %arg13[%c0_72, %c0_73, %c0_74] : memref<4x3x3xf32, #tpu.memory_space<vmem>>, vector<1x3x3xf32>
    %249 = vector.shape_cast %248 : vector<1x3x3xf32> to vector<3x3xf32>
    %c1_75 = arith.constant 1 : index
    %c0_76 = arith.constant 0 : index
    %c0_77 = arith.constant 0 : index
    %250 = vector.load %arg13[%c1_75, %c0_76, %c0_77] : memref<4x3x3xf32, #tpu.memory_space<vmem>>, vector<1x3x3xf32>
    %251 = vector.shape_cast %250 : vector<1x3x3xf32> to vector<3x3xf32>
    %c2_78 = arith.constant 2 : index
    %c0_79 = arith.constant 0 : index
    %c0_80 = arith.constant 0 : index
    %252 = vector.load %arg13[%c2_78, %c0_79, %c0_80] : memref<4x3x3xf32, #tpu.memory_space<vmem>>, vector<1x3x3xf32>
    %253 = vector.shape_cast %252 : vector<1x3x3xf32> to vector<3x3xf32>
    %c3_81 = arith.constant 3 : index
    %c0_82 = arith.constant 0 : index
    %c0_83 = arith.constant 0 : index
    %254 = vector.load %arg13[%c3_81, %c0_82, %c0_83] : memref<4x3x3xf32, #tpu.memory_space<vmem>>, vector<1x3x3xf32>
    %255 = vector.shape_cast %254 : vector<1x3x3xf32> to vector<3x3xf32>
    %c0_84 = arith.constant 0 : index
    %c0_85 = arith.constant 0 : index
    %c0_86 = arith.constant 0 : index
    %256 = vector.load %arg14[%c0_84, %c0_85, %c0_86] : memref<2x6x3xf32, #tpu.memory_space<vmem>>, vector<1x6x3xf32>
    %257 = vector.shape_cast %256 : vector<1x6x3xf32> to vector<6x3xf32>
    %c1_87 = arith.constant 1 : index
    %c0_88 = arith.constant 0 : index
    %c0_89 = arith.constant 0 : index
    %258 = vector.load %arg14[%c1_87, %c0_88, %c0_89] : memref<2x6x3xf32, #tpu.memory_space<vmem>>, vector<1x6x3xf32>
    %259 = vector.shape_cast %258 : vector<1x6x3xf32> to vector<6x3xf32>
    %c0_90 = arith.constant 0 : index
    %c0_91 = arith.constant 0 : index
    %c0_92 = arith.constant 0 : index
    %260 = vector.load %arg15[%c0_90, %c0_91, %c0_92] : memref<2x6x1xf32, #tpu.memory_space<vmem>>, vector<1x6x1xf32>
    %261 = vector.shape_cast %260 : vector<1x6x1xf32> to vector<6x1xf32>
    %c1_93 = arith.constant 1 : index
    %c0_94 = arith.constant 0 : index
    %c0_95 = arith.constant 0 : index
    %262 = vector.load %arg15[%c1_93, %c0_94, %c0_95] : memref<2x6x1xf32, #tpu.memory_space<vmem>>, vector<1x6x1xf32>
    %263 = vector.shape_cast %262 : vector<1x6x1xf32> to vector<6x1xf32>
    %cst_96 = arith.constant dense<0.000000e+00> : vector<3x128xf32>
    %264 = tpu.matmul %249, %247, %cst_96 {dimension_numbers = #tpu.dot_dimension_numbers<[1], [0], [0], [1], [0, 0, 1, 1], [], []>} : vector<3x3xf32>, vector<3x128xf32>, vector<3x128xf32> -> vector<3x128xf32>
    %cst_97 = arith.constant dense<0.000000e+00> : vector<3x128xf32>
    %265 = tpu.matmul %251, %246, %cst_97 {dimension_numbers = #tpu.dot_dimension_numbers<[1], [0], [0], [1], [0, 0, 1, 1], [], []>} : vector<3x3xf32>, vector<3x128xf32>, vector<3x128xf32> -> vector<3x128xf32>
    %266 = arith.addf %264, %265 : vector<3x128xf32>
    %cst_98 = arith.constant dense<0.000000e+00> : vector<3x128xf32>
    %267 = tpu.matmul %253, %247, %cst_98 {dimension_numbers = #tpu.dot_dimension_numbers<[1], [0], [0], [1], [0, 0, 1, 1], [], []>} : vector<3x3xf32>, vector<3x128xf32>, vector<3x128xf32> -> vector<3x128xf32>
    %cst_99 = arith.constant dense<0.000000e+00> : vector<3x128xf32>
    %268 = tpu.matmul %255, %246, %cst_99 {dimension_numbers = #tpu.dot_dimension_numbers<[1], [0], [0], [1], [0, 0, 1, 1], [], []>} : vector<3x3xf32>, vector<3x128xf32>, vector<3x128xf32> -> vector<3x128xf32>
    %269 = arith.addf %267, %268 : vector<3x128xf32>
    %270 = vector.extract_strided_slice %266 {offsets = [0, 0], sizes = [3, 16], strides = [1, 1]} : vector<3x128xf32> to vector<3x16xf32>
    %271 = vector.extract_strided_slice %269 {offsets = [0, 0], sizes = [3, 16], strides = [1, 1]} : vector<3x128xf32> to vector<3x16xf32>
    %272 = vector.extract_strided_slice %266 {offsets = [0, 16], sizes = [3, 16], strides = [1, 1]} : vector<3x128xf32> to vector<3x16xf32>
    %273 = arith.maximumf %270, %272 : vector<3x16xf32>
    %274 = vector.extract_strided_slice %269 {offsets = [0, 16], sizes = [3, 16], strides = [1, 1]} : vector<3x128xf32> to vector<3x16xf32>
    %275 = arith.maximumf %271, %274 : vector<3x16xf32>
    %276 = vector.extract_strided_slice %266 {offsets = [0, 32], sizes = [3, 16], strides = [1, 1]} : vector<3x128xf32> to vector<3x16xf32>
    %277 = arith.maximumf %273, %276 : vector<3x16xf32>
    %278 = vector.extract_strided_slice %269 {offsets = [0, 32], sizes = [3, 16], strides = [1, 1]} : vector<3x128xf32> to vector<3x16xf32>
    %279 = arith.maximumf %275, %278 : vector<3x16xf32>
    %280 = vector.extract_strided_slice %266 {offsets = [0, 48], sizes = [3, 16], strides = [1, 1]} : vector<3x128xf32> to vector<3x16xf32>
    %281 = arith.maximumf %277, %280 : vector<3x16xf32>
    %282 = vector.extract_strided_slice %269 {offsets = [0, 48], sizes = [3, 16], strides = [1, 1]} : vector<3x128xf32> to vector<3x16xf32>
    %283 = arith.maximumf %279, %282 : vector<3x16xf32>
    %284 = vector.extract_strided_slice %266 {offsets = [0, 64], sizes = [3, 16], strides = [1, 1]} : vector<3x128xf32> to vector<3x16xf32>
    %285 = arith.maximumf %281, %284 : vector<3x16xf32>
    %286 = vector.extract_strided_slice %269 {offsets = [0, 64], sizes = [3, 16], strides = [1, 1]} : vector<3x128xf32> to vector<3x16xf32>
    %287 = arith.maximumf %283, %286 : vector<3x16xf32>
    %288 = vector.extract_strided_slice %266 {offsets = [0, 80], sizes = [3, 16], strides = [1, 1]} : vector<3x128xf32> to vector<3x16xf32>
    %289 = arith.maximumf %285, %288 : vector<3x16xf32>
    %290 = vector.extract_strided_slice %269 {offsets = [0, 80], sizes = [3, 16], strides = [1, 1]} : vector<3x128xf32> to vector<3x16xf32>
    %291 = arith.maximumf %287, %290 : vector<3x16xf32>
    %292 = vector.extract_strided_slice %266 {offsets = [0, 96], sizes = [3, 16], strides = [1, 1]} : vector<3x128xf32> to vector<3x16xf32>
    %293 = arith.maximumf %289, %292 : vector<3x16xf32>
    %294 = vector.extract_strided_slice %269 {offsets = [0, 96], sizes = [3, 16], strides = [1, 1]} : vector<3x128xf32> to vector<3x16xf32>
    %295 = arith.maximumf %291, %294 : vector<3x16xf32>
    %296 = vector.extract_strided_slice %266 {offsets = [0, 112], sizes = [3, 16], strides = [1, 1]} : vector<3x128xf32> to vector<3x16xf32>
    %297 = arith.maximumf %293, %296 : vector<3x16xf32>
    %298 = vector.extract_strided_slice %269 {offsets = [0, 112], sizes = [3, 16], strides = [1, 1]} : vector<3x128xf32> to vector<3x16xf32>
    %299 = arith.maximumf %295, %298 : vector<3x16xf32>
    %cst_100 = arith.constant 0.000000e+00 : f32
    %300 = vector.broadcast %cst_100 : f32 to vector<3x16xf32>
    %cst_101 = arith.constant 0.000000e+00 : f32
    %301 = vector.broadcast %cst_101 : f32 to vector<3x16xf32>
    %cst_102 = arith.constant 0.000000e+00 : f32
    %302 = vector.broadcast %cst_102 : f32 to vector<3x16xf32>
    %cst_103 = arith.constant 0.000000e+00 : f32
    %303 = vector.broadcast %cst_103 : f32 to vector<3x16xf32>
    %304 = vector.extract_strided_slice %266 {offsets = [0, 0], sizes = [3, 16], strides = [1, 1]} : vector<3x128xf32> to vector<3x16xf32>
    %305 = arith.subf %304, %297 : vector<3x16xf32>
    %306 = math.exp %305 : vector<3x16xf32>
    %307 = vector.extract_strided_slice %269 {offsets = [0, 0], sizes = [3, 16], strides = [1, 1]} : vector<3x128xf32> to vector<3x16xf32>
    %308 = arith.subf %307, %299 : vector<3x16xf32>
    %309 = math.exp %308 : vector<3x16xf32>
    %310 = arith.addf %300, %306 : vector<3x16xf32>
    %311 = arith.addf %301, %309 : vector<3x16xf32>
    %312 = vector.extract_strided_slice %247 {offsets = [0, 0], sizes = [3, 16], strides = [1, 1]} : vector<3x128xf32> to vector<3x16xf32>
    %313 = arith.mulf %312, %306 : vector<3x16xf32>
    %314 = arith.addf %302, %313 : vector<3x16xf32>
    %315 = vector.extract_strided_slice %246 {offsets = [0, 0], sizes = [3, 16], strides = [1, 1]} : vector<3x128xf32> to vector<3x16xf32>
    %316 = arith.mulf %315, %309 : vector<3x16xf32>
    %317 = arith.addf %303, %316 : vector<3x16xf32>
    %318 = vector.extract_strided_slice %266 {offsets = [0, 16], sizes = [3, 16], strides = [1, 1]} : vector<3x128xf32> to vector<3x16xf32>
    %319 = arith.subf %318, %297 : vector<3x16xf32>
    %320 = math.exp %319 : vector<3x16xf32>
    %321 = vector.extract_strided_slice %269 {offsets = [0, 16], sizes = [3, 16], strides = [1, 1]} : vector<3x128xf32> to vector<3x16xf32>
    %322 = arith.subf %321, %299 : vector<3x16xf32>
    %323 = math.exp %322 : vector<3x16xf32>
    %324 = arith.addf %310, %320 : vector<3x16xf32>
    %325 = arith.addf %311, %323 : vector<3x16xf32>
    %326 = vector.extract_strided_slice %247 {offsets = [0, 16], sizes = [3, 16], strides = [1, 1]} : vector<3x128xf32> to vector<3x16xf32>
    %327 = arith.mulf %326, %320 : vector<3x16xf32>
    %328 = arith.addf %314, %327 : vector<3x16xf32>
    %329 = vector.extract_strided_slice %246 {offsets = [0, 16], sizes = [3, 16], strides = [1, 1]} : vector<3x128xf32> to vector<3x16xf32>
    %330 = arith.mulf %329, %323 : vector<3x16xf32>
    %331 = arith.addf %317, %330 : vector<3x16xf32>
    %332 = vector.extract_strided_slice %266 {offsets = [0, 32], sizes = [3, 16], strides = [1, 1]} : vector<3x128xf32> to vector<3x16xf32>
    %333 = arith.subf %332, %297 : vector<3x16xf32>
    %334 = math.exp %333 : vector<3x16xf32>
    %335 = vector.extract_strided_slice %269 {offsets = [0, 32], sizes = [3, 16], strides = [1, 1]} : vector<3x128xf32> to vector<3x16xf32>
    %336 = arith.subf %335, %299 : vector<3x16xf32>
    %337 = math.exp %336 : vector<3x16xf32>
    %338 = arith.addf %324, %334 : vector<3x16xf32>
    %339 = arith.addf %325, %337 : vector<3x16xf32>
    %340 = vector.extract_strided_slice %247 {offsets = [0, 32], sizes = [3, 16], strides = [1, 1]} : vector<3x128xf32> to vector<3x16xf32>
    %341 = arith.mulf %340, %334 : vector<3x16xf32>
    %342 = arith.addf %328, %341 : vector<3x16xf32>
    %343 = vector.extract_strided_slice %246 {offsets = [0, 32], sizes = [3, 16], strides = [1, 1]} : vector<3x128xf32> to vector<3x16xf32>
    %344 = arith.mulf %343, %337 : vector<3x16xf32>
    %345 = arith.addf %331, %344 : vector<3x16xf32>
    %346 = vector.extract_strided_slice %266 {offsets = [0, 48], sizes = [3, 16], strides = [1, 1]} : vector<3x128xf32> to vector<3x16xf32>
    %347 = arith.subf %346, %297 : vector<3x16xf32>
    %348 = math.exp %347 : vector<3x16xf32>
    %349 = vector.extract_strided_slice %269 {offsets = [0, 48], sizes = [3, 16], strides = [1, 1]} : vector<3x128xf32> to vector<3x16xf32>
    %350 = arith.subf %349, %299 : vector<3x16xf32>
    %351 = math.exp %350 : vector<3x16xf32>
    %352 = arith.addf %338, %348 : vector<3x16xf32>
    %353 = arith.addf %339, %351 : vector<3x16xf32>
    %354 = vector.extract_strided_slice %247 {offsets = [0, 48], sizes = [3, 16], strides = [1, 1]} : vector<3x128xf32> to vector<3x16xf32>
    %355 = arith.mulf %354, %348 : vector<3x16xf32>
    %356 = arith.addf %342, %355 : vector<3x16xf32>
    %357 = vector.extract_strided_slice %246 {offsets = [0, 48], sizes = [3, 16], strides = [1, 1]} : vector<3x128xf32> to vector<3x16xf32>
    %358 = arith.mulf %357, %351 : vector<3x16xf32>
    %359 = arith.addf %345, %358 : vector<3x16xf32>
    %360 = vector.extract_strided_slice %266 {offsets = [0, 64], sizes = [3, 16], strides = [1, 1]} : vector<3x128xf32> to vector<3x16xf32>
    %361 = arith.subf %360, %297 : vector<3x16xf32>
    %362 = math.exp %361 : vector<3x16xf32>
    %363 = vector.extract_strided_slice %269 {offsets = [0, 64], sizes = [3, 16], strides = [1, 1]} : vector<3x128xf32> to vector<3x16xf32>
    %364 = arith.subf %363, %299 : vector<3x16xf32>
    %365 = math.exp %364 : vector<3x16xf32>
    %366 = arith.addf %352, %362 : vector<3x16xf32>
    %367 = arith.addf %353, %365 : vector<3x16xf32>
    %368 = vector.extract_strided_slice %247 {offsets = [0, 64], sizes = [3, 16], strides = [1, 1]} : vector<3x128xf32> to vector<3x16xf32>
    %369 = arith.mulf %368, %362 : vector<3x16xf32>
    %370 = arith.addf %356, %369 : vector<3x16xf32>
    %371 = vector.extract_strided_slice %246 {offsets = [0, 64], sizes = [3, 16], strides = [1, 1]} : vector<3x128xf32> to vector<3x16xf32>
    %372 = arith.mulf %371, %365 : vector<3x16xf32>
    %373 = arith.addf %359, %372 : vector<3x16xf32>
    %374 = vector.extract_strided_slice %266 {offsets = [0, 80], sizes = [3, 16], strides = [1, 1]} : vector<3x128xf32> to vector<3x16xf32>
    %375 = arith.subf %374, %297 : vector<3x16xf32>
    %376 = math.exp %375 : vector<3x16xf32>
    %377 = vector.extract_strided_slice %269 {offsets = [0, 80], sizes = [3, 16], strides = [1, 1]} : vector<3x128xf32> to vector<3x16xf32>
    %378 = arith.subf %377, %299 : vector<3x16xf32>
    %379 = math.exp %378 : vector<3x16xf32>
    %380 = arith.addf %366, %376 : vector<3x16xf32>
    %381 = arith.addf %367, %379 : vector<3x16xf32>
    %382 = vector.extract_strided_slice %247 {offsets = [0, 80], sizes = [3, 16], strides = [1, 1]} : vector<3x128xf32> to vector<3x16xf32>
    %383 = arith.mulf %382, %376 : vector<3x16xf32>
    %384 = arith.addf %370, %383 : vector<3x16xf32>
    %385 = vector.extract_strided_slice %246 {offsets = [0, 80], sizes = [3, 16], strides = [1, 1]} : vector<3x128xf32> to vector<3x16xf32>
    %386 = arith.mulf %385, %379 : vector<3x16xf32>
    %387 = arith.addf %373, %386 : vector<3x16xf32>
    %388 = vector.extract_strided_slice %266 {offsets = [0, 96], sizes = [3, 16], strides = [1, 1]} : vector<3x128xf32> to vector<3x16xf32>
    %389 = arith.subf %388, %297 : vector<3x16xf32>
    %390 = math.exp %389 : vector<3x16xf32>
    %391 = vector.extract_strided_slice %269 {offsets = [0, 96], sizes = [3, 16], strides = [1, 1]} : vector<3x128xf32> to vector<3x16xf32>
    %392 = arith.subf %391, %299 : vector<3x16xf32>
    %393 = math.exp %392 : vector<3x16xf32>
    %394 = arith.addf %380, %390 : vector<3x16xf32>
    %395 = arith.addf %381, %393 : vector<3x16xf32>
    %396 = vector.extract_strided_slice %247 {offsets = [0, 96], sizes = [3, 16], strides = [1, 1]} : vector<3x128xf32> to vector<3x16xf32>
    %397 = arith.mulf %396, %390 : vector<3x16xf32>
    %398 = arith.addf %384, %397 : vector<3x16xf32>
    %399 = vector.extract_strided_slice %246 {offsets = [0, 96], sizes = [3, 16], strides = [1, 1]} : vector<3x128xf32> to vector<3x16xf32>
    %400 = arith.mulf %399, %393 : vector<3x16xf32>
    %401 = arith.addf %387, %400 : vector<3x16xf32>
    %402 = vector.extract_strided_slice %266 {offsets = [0, 112], sizes = [3, 16], strides = [1, 1]} : vector<3x128xf32> to vector<3x16xf32>
    %403 = arith.subf %402, %297 : vector<3x16xf32>
    %404 = math.exp %403 : vector<3x16xf32>
    %405 = vector.extract_strided_slice %269 {offsets = [0, 112], sizes = [3, 16], strides = [1, 1]} : vector<3x128xf32> to vector<3x16xf32>
    %406 = arith.subf %405, %299 : vector<3x16xf32>
    %407 = math.exp %406 : vector<3x16xf32>
    %408 = arith.addf %394, %404 : vector<3x16xf32>
    %409 = arith.addf %395, %407 : vector<3x16xf32>
    %410 = vector.extract_strided_slice %247 {offsets = [0, 112], sizes = [3, 16], strides = [1, 1]} : vector<3x128xf32> to vector<3x16xf32>
    %411 = arith.mulf %410, %404 : vector<3x16xf32>
    %412 = arith.addf %398, %411 : vector<3x16xf32>
    %413 = vector.extract_strided_slice %246 {offsets = [0, 112], sizes = [3, 16], strides = [1, 1]} : vector<3x128xf32> to vector<3x16xf32>
    %414 = arith.mulf %413, %407 : vector<3x16xf32>
    %415 = arith.addf %401, %414 : vector<3x16xf32>
    %416 = tpu.reciprocal %408 : vector<3x16xf32> -> vector<3x16xf32>
    %417 = arith.mulf %412, %416 : vector<3x16xf32>
    %418 = tpu.reciprocal %409 : vector<3x16xf32> -> vector<3x16xf32>
    %419 = arith.mulf %415, %418 : vector<3x16xf32>
    %cst_104 = arith.constant dense<0.000000e+00> : vector<6x16xf32>
    %420 = tpu.matmul %257, %417, %cst_104 {dimension_numbers = #tpu.dot_dimension_numbers<[1], [0], [0], [1], [0, 0, 1, 1], [], []>} : vector<6x3xf32>, vector<3x16xf32>, vector<6x16xf32> -> vector<6x16xf32>
    %cst_105 = arith.constant dense<0.000000e+00> : vector<6x16xf32>
    %421 = tpu.matmul %259, %419, %cst_105 {dimension_numbers = #tpu.dot_dimension_numbers<[1], [0], [0], [1], [0, 0, 1, 1], [], []>} : vector<6x3xf32>, vector<3x16xf32>, vector<6x16xf32> -> vector<6x16xf32>
    %422 = arith.addf %420, %421 : vector<6x16xf32>
    %423 = vector.broadcast %261 : vector<6x1xf32> to vector<6x16xf32>
    %424 = arith.mulf %422, %423 : vector<6x16xf32>
    %425 = vector.broadcast %263 : vector<6x1xf32> to vector<6x16xf32>
    %426 = arith.addf %424, %425 : vector<6x16xf32>
    %cst_106 = arith.constant 0.000000e+00 : f32
    %427 = vector.broadcast %cst_106 : f32 to vector<6x16xf32>
    %428 = arith.maximumf %426, %427 : vector<6x16xf32>
    %c0_107 = arith.constant 0 : index
    %c0_108 = arith.constant 0 : index
    %c0_109 = arith.constant 0 : index
    %429 = vector.load %arg16[%c0_107, %c0_108, %c0_109] : memref<1x6x16xf32, #tpu.memory_space<vmem>>, vector<1x6x16xf32>
    %430 = vector.shape_cast %429 : vector<1x6x16xf32> to vector<6x16xf32>
    %431 = vector.shape_cast %428 : vector<6x16xf32> to vector<1x6x16xf32>
    tpu.vector_store %arg16[%c0_107, %c0_108, %c0_109], %431 {strides = array<i32>} : memref<1x6x16xf32, #tpu.memory_space<vmem>>, vector<1x6x16xf32>,
    return
  }
  func.func @transform_0(%arg0: i32) -> (i32, i32, i32) {
    %c0_i32 = arith.constant 0 : i32
    %c0_i32_0 = arith.constant 0 : i32
    %c0_i32_1 = arith.constant 0 : i32
    return %arg0, %c0_i32, %c0_i32_0 : i32, i32, i32
  }
  func.func @transform_1(%arg0: i32) -> (i32, i32, i32) {
    %c0_i32 = arith.constant 0 : i32
    %c0_i32_0 = arith.constant 0 : i32
    %c0_i32_1 = arith.constant 0 : i32
    return %arg0, %c0_i32, %c0_i32_0 : i32, i32, i32
  }
  func.func @transform_2(%arg0: i32) -> (i32, i32, i32) {
    %c0_i32 = arith.constant 0 : i32
    %c0_i32_0 = arith.constant 0 : i32
    %c0_i32_1 = arith.constant 0 : i32
    return %arg0, %c0_i32, %c0_i32_0 : i32, i32, i32
  }
  func.func @transform_3(%arg0: i32) -> (i32, i32) {
    %c0_i32 = arith.constant 0 : i32
    %c0_i32_0 = arith.constant 0 : i32
    %c0_i32_1 = arith.constant 0 : i32
    return %c0_i32, %c0_i32_0 : i32, i32
  }
  func.func @transform_4(%arg0: i32) -> (i32, i32, i32) {
    %c0_i32 = arith.constant 0 : i32
    %c0_i32_0 = arith.constant 0 : i32
    %c0_i32_1 = arith.constant 0 : i32
    %c0_i32_2 = arith.constant 0 : i32
    return %c0_i32, %c0_i32_0, %c0_i32_1 : i32, i32, i32
  }
  func.func @transform_5(%arg0: i32) -> (i32, i32) {
    %c0_i32 = arith.constant 0 : i32
    %c0_i32_0 = arith.constant 0 : i32
    %c0_i32_1 = arith.constant 0 : i32
    return %c0_i32, %c0_i32_0 : i32, i32
  }
  func.func @transform_6(%arg0: i32) -> (i32, i32, i32) {
    %c0_i32 = arith.constant 0 : i32
    %c0_i32_0 = arith.constant 0 : i32
    %c0_i32_1 = arith.constant 0 : i32
    %c0_i32_2 = arith.constant 0 : i32
    return %c0_i32, %c0_i32_0, %c0_i32_1 : i32, i32, i32
  }
  func.func @transform_7(%arg0: i32) -> (i32, i32) {
    %c0_i32 = arith.constant 0 : i32
    %c0_i32_0 = arith.constant 0 : i32
    %c0_i32_1 = arith.constant 0 : i32
    return %c0_i32, %c0_i32_0 : i32, i32
  }
  func.func @transform_8(%arg0: i32) -> (i32, i32, i32) {
    %c0_i32 = arith.constant 0 : i32
    %c0_i32_0 = arith.constant 0 : i32
    %c0_i32_1 = arith.constant 0 : i32
    %c0_i32_2 = arith.constant 0 : i32
    return %c0_i32, %c0_i32_0, %c0_i32_1 : i32, i32, i32
  }
  func.func @transform_9(%arg0: i32) -> (i32, i32, i32) {
    %c0_i32 = arith.constant 0 : i32
    %c0_i32_0 = arith.constant 0 : i32
    %c0_i32_1 = arith.constant 0 : i32
    %c0_i32_2 = arith.constant 0 : i32
    return %c0_i32, %c0_i32_0, %c0_i32_1 : i32, i32, i32
  }
  func.func @transform_10(%arg0: i32) -> (i32, i32, i32) {
    %c0_i32 = arith.constant 0 : i32
    %c0_i32_0 = arith.constant 0 : i32
    %c0_i32_1 = arith.constant 0 : i32
    %c0_i32_2 = arith.constant 0 : i32
    return %c0_i32, %c0_i32_0, %c0_i32_1 : i32, i32, i32
  }
  func.func @transform_11(%arg0: i32) -> (i32, i32, i32) {
    %c0_i32 = arith.constant 0 : i32
    %c0_i32_0 = arith.constant 0 : i32
    %c0_i32_1 = arith.constant 0 : i32
    %c0_i32_2 = arith.constant 0 : i32
    return %c0_i32, %c0_i32_0, %c0_i32_1 : i32, i32, i32
  }
  func.func @transform_12(%arg0: i32) -> (i32, i32, i32) {
    %c0_i32 = arith.constant 0 : i32
    %c0_i32_0 = arith.constant 0 : i32
    %c0_i32_1 = arith.constant 0 : i32
    %c0_i32_2 = arith.constant 0 : i32
    return %c0_i32, %c0_i32_0, %c0_i32_1 : i32, i32, i32
  }
  func.func @transform_13(%arg0: i32) -> (i32, i32, i32) {
    %c0_i32 = arith.constant 0 : i32
    %c0_i32_0 = arith.constant 0 : i32
    %c0_i32_1 = arith.constant 0 : i32
    %c0_i32_2 = arith.constant 0 : i32
    return %c0_i32, %c0_i32_0, %c0_i32_1 : i32, i32, i32
  }
  func.func @transform_14(%arg0: i32) -> (i32, i32, i32) {
    %c0_i32 = arith.constant 0 : i32
    %c0_i32_0 = arith.constant 0 : i32
    %c0_i32_1 = arith.constant 0 : i32
    %c0_i32_2 = arith.constant 0 : i32
    return %c0_i32, %c0_i32_0, %c0_i32_1 : i32, i32, i32
  }
  func.func @transform_15(%arg0: i32) -> (i32, i32, i32) {
    %c0_i32 = arith.constant 0 : i32
    %c0_i32_0 = arith.constant 0 : i32
    %c0_i32_1 = arith.constant 0 : i32
    return %arg0, %c0_i32, %c0_i32_0 : i32, i32, i32
  }
}

</mosaic_0001>

<llo_original>
// kernel: tile.9
$region0: #{tile.9}
  %s0 = inlined_call_operand.vmem [shape: s32[8,16], index: 0, kind: input, shape index: {}]
  %s1 = inlined_call_operand.vmem [shape: s32[1,128], index: 1, kind: output, shape index: {}]
  $region1: #{tile.9} parent=0
    #allocation0 [shape = 'u8[4096]{0}', space=vmem, size = 0x1000, scoped, tag = 'scoped mem for output reshape']
    %v2 = vld [vmem:[%s0] sm:$0x1]
    %vm3 = vcmask 130048
    %4 = vst.msk [vmem:[#allocation0] sm:$0x1] %vm3, %v2
    %s5 = scalar_lea.vmem %s0, 7
    %v6 = vld [vmem:[%s5] sm:$0x1]
    %7 = vrot.lane.b32.xlu0 %v6, 112
    %v8 = vpop.permute.xlu0 %7
    %vm9 = vcmask 1048448
    %10 = vst.msk [vmem:[#allocation0] sm:$0x1] %vm9, %v8
    %s11 = scalar_lea.vmem %s0, 6
    %v12 = vld [vmem:[%s11] sm:$0x1]
    %13 = vrot.lane.b32.xlu0 %v12, 96
    %v14 = vpop.permute.xlu0 %13
    %vm15 = vcmask 917248
    %16 = vst.msk [vmem:[#allocation0] sm:$0x1] %vm15, %v14
    %s17 = scalar_lea.vmem %s0, 5
    %v18 = vld [vmem:[%s17] sm:$0x1]
    %19 = vrot.lane.b32.xlu0 %v18, 80
    %v20 = vpop.permute.xlu0 %19
    %vm21 = vcmask 786048
    %22 = vst.msk [vmem:[#allocation0] sm:$0x1] %vm21, %v20
    %s23 = scalar_lea.vmem %s0, 4
    %v24 = vld [vmem:[%s23] sm:$0x1]
    %25 = vrot.lane.b32.xlu0 %v24, 64
    %v26 = vpop.permute.xlu0 %25
    %vm27 = vcmask 654848
    %28 = vst.msk [vmem:[#allocation0] sm:$0x1] %vm27, %v26
    %s29 = scalar_lea.vmem %s0, 3
    %v30 = vld [vmem:[%s29] sm:$0x1]
    %31 = vrot.lane.b32.xlu0 %v30, 48
    %v32 = vpop.permute.xlu0 %31
    %vm33 = vcmask 523648
    %34 = vst.msk [vmem:[#allocation0] sm:$0x1] %vm33, %v32
    %s35 = scalar_lea.vmem %s0, 2
    %v36 = vld [vmem:[%s35] sm:$0x1]
    %37 = vrot.lane.b32.xlu0 %v36, 32
    %v38 = vpop.permute.xlu0 %37
    %vm39 = vcmask 392448
    %40 = vst.msk [vmem:[#allocation0] sm:$0x1] %vm39, %v38
    %s41 = scalar_lea.vmem %s0, 1
    %v42 = vld [vmem:[%s41] sm:$0x1]
    %43 = vrot.lane.b32.xlu0 %v42, 16
    %v44 = vpop.permute.xlu0 %43
    %vm45 = vcmask 261248
    %46 = vst.msk [vmem:[#allocation0] sm:$0x1] %vm45, %v44
    %s48 = sshllo.u32 0, 1
    %v50 = vld [vmem:[#allocation0] sm:%s48]
    %s51 = sshllo.u32 0, 1
    %52 = vst [vmem:[%s1] sm:%s51] %v50

// kernel: local_spatial_encoding.1
$region0: #{local_spatial_encoding.1}
  #allocation0 [shape = 'u32[]', space=smem, size = 0x4, offset = 0x4, fixed_abs, tag = 'smem constant byte address 0x4 - core index']
  #allocation1 [shape = 'u32[144,128]{1,0:T(1,128)}', space=vmem, size = 0x12000, scoped, tag = 'internal scratch']
  %s0 = inlined_call_operand.vmem [shape: f32[2,3,16], index: 0, kind: input, shape index: {}]
  %s1 = inlined_call_operand.vmem [shape: f32[2,3,16], index: 1, kind: input, shape index: {}]
  %s2 = inlined_call_operand.vmem [shape: s32[2,1,128], index: 2, kind: input, shape index: {}]
  %s3 = inlined_call_operand.vmem [shape: s32[1,128], index: 3, kind: input, shape index: {}]
  %s4 = inlined_call_operand.vmem [shape: f32[2,3,3], index: 4, kind: input, shape index: {}]
  %s5 = inlined_call_operand.vmem [shape: f32[3,1], index: 5, kind: input, shape index: {}]
  %s6 = inlined_call_operand.vmem [shape: f32[2,3,1], index: 6, kind: input, shape index: {}]
  %s7 = inlined_call_operand.vmem [shape: f32[3,3], index: 7, kind: input, shape index: {}]
  %s8 = inlined_call_operand.vmem [shape: f32[2,3,1], index: 8, kind: input, shape index: {}]
  %s9 = inlined_call_operand.vmem [shape: f32[4,3,3], index: 9, kind: input, shape index: {}]
  %s10 = inlined_call_operand.vmem [shape: f32[2,3,3], index: 10, kind: input, shape index: {}]
  %s11 = inlined_call_operand.vmem [shape: f32[2,3,1], index: 11, kind: input, shape index: {}]
  %s12 = inlined_call_operand.vmem [shape: f32[4,3,3], index: 12, kind: input, shape index: {}]
  %s13 = inlined_call_operand.vmem [shape: f32[2,6,3], index: 13, kind: input, shape index: {}]
  %s14 = inlined_call_operand.vmem [shape: f32[2,6,1], index: 14, kind: input, shape index: {}]
  %s15 = inlined_call_operand.vmem [shape: f32[2,6,16], index: 15, kind: output, shape index: {}]
  %s16 = sld [smem:[#allocation0]]
  $region93: #{local_spatial_encoding.1} parent=0
    _
  %s18 = ssub.s32 1, %s16
  %s19 = scalar_select 0, %s18, %s16
  loop: start=0, step=1, limit=4
  $region2: #{local_spatial_encoding.1} parent=0 // loop_pre_header
    _
  $region3: #{local_spatial_encoding.1} parent=0 // loop_header
    %s21 = sphi 0, %s25
    %p22 = scmp.ge.s32.totalorder %s21, 4
    %s31 = sphi 0, %s33
    %s34 = sphi 0, %s31
    %s35 = sphi 0, %s34
    %s51 = sphi 0, %s35
    %s57 = sphi 0, %s59
    %s60 = sphi 0, %s57
    %s61 = sphi 0, %s60
    %s77 = sphi 0, %s61
    %s83 = sphi 0, %s85
    %s86 = sphi 0, %s83
    %s87 = sphi 0, %s86
    %s103 = sphi 0, %s87
    %s107 = sphi 0, %s107
    %s109 = sphi 0, %s107
    %s110 = sphi 0, %s109
    %s124 = sphi 0, %s110
    %s128 = sphi 0, %s128
    %s130 = sphi 0, %s128
    %s131 = sphi 0, %s130
    %s145 = sphi 0, %s131
    %s149 = sphi 0, %s149
    %s151 = sphi 0, %s149
    %s152 = sphi 0, %s151
    %s166 = sphi 0, %s152
    %s170 = sphi 0, %s170
    %s172 = sphi 0, %s170
    %s173 = sphi 0, %s172
    %s187 = sphi 0, %s173
    %s191 = sphi 0, %s191
    %s193 = sphi 0, %s191
    %s194 = sphi 0, %s193
    %s208 = sphi 0, %s194
    %s212 = sphi 0, %s212
    %s214 = sphi 0, %s212
    %s215 = sphi 0, %s214
    %s229 = sphi 0, %s215
    %s233 = sphi 0, %s233
    %s235 = sphi 0, %s233
    %s236 = sphi 0, %s235
    %s250 = sphi 0, %s236
    %s254 = sphi 0, %s254
    %s256 = sphi 0, %s254
    %s257 = sphi 0, %s256
    %s271 = sphi 0, %s257
    %s275 = sphi 0, %s275
    %s277 = sphi 0, %s275
    %s278 = sphi 0, %s277
    %s292 = sphi 0, %s278
    %s296 = sphi 0, %s296
    %s298 = sphi 0, %s296
    %s299 = sphi 0, %s298
    %s313 = sphi 0, %s299
    %s317 = sphi 0, %s317
    %s319 = sphi 0, %s317
    %s320 = sphi 0, %s319
    %s334 = sphi 0, %s320
    %s338 = sphi 0, %s338
    %s340 = sphi 0, %s338
    %s341 = sphi 0, %s340
    %s355 = sphi 0, %s341
    %s361 = sphi 0, %s363
    %s364 = sphi 0, %s361
    %s365 = sphi 0, %s364
    %s381 = sphi 0, %s365
  $region4: #{local_spatial_encoding.1} parent=0 // loop_header_branch
    %24 = sbr.rel (%p22) target = $region8
  $region5: #{local_spatial_encoding.1} parent=0 // loop_body
    %s26 = ssub.s32 %s21, 1
    %s27 = ssub.s32 %s21, 2
    %s28 = sadd.s32 %s21, 1
    %s29 = ssub.s32 %s21, %s28
    %p30 = scmp.eq.s32.totalorder %s29, 0
    %s32 = sadd.s32 %s31, 1
    %s33 = scalar_select %p30, %s31, %s32
    %p36 = pneg %p30
    %p37 = scmp.eq.s32.totalorder %s21, 1
    %p38 = por %p36, %p37
    %p39 = scmp.ne.s32.totalorder %s31, %s34
    %p40 = scmp.eq.s32.totalorder %s21, 0
    %p41 = por %p39, %p40
    %p42 = scmp.ne.s32.totalorder %s31, %s34
    %p43 = scmp.eq.s32.totalorder %s26, 1
    %p44 = por %p42, %p43
    %p45 = scmp.ne.s32.totalorder %s34, %s35
    %p46 = scmp.eq.s32.totalorder %s26, 0
    %p47 = por %p45, %p46
    %p48 = scmp.ne.s32.totalorder %s34, %s35
    %p49 = scmp.eq.s32.totalorder %s27, 1
    %p50 = por %p48, %p49
    %p52 = scmp.ne.s32.totalorder %s35, %s51
    %p53 = scmp.eq.s32.totalorder %s27, 0
    %p54 = por %p52, %p53
    %s55 = ssub.s32 %s21, %s28
    %p56 = scmp.eq.s32.totalorder %s55, 0
    %s58 = sadd.s32 %s57, 1
    %s59 = scalar_select %p56, %s57, %s58
    %p62 = pneg %p56
    %p63 = scmp.eq.s32.totalorder %s21, 1
    %p64 = por %p62, %p63
    %p65 = scmp.ne.s32.totalorder %s57, %s60
    %p66 = scmp.eq.s32.totalorder %s21, 0
    %p67 = por %p65, %p66
    %p68 = scmp.ne.s32.totalorder %s57, %s60
    %p69 = scmp.eq.s32.totalorder %s26, 1
    %p70 = por %p68, %p69
    %p71 = scmp.ne.s32.totalorder %s60, %s61
    %p72 = scmp.eq.s32.totalorder %s26, 0
    %p73 = por %p71, %p72
    %p74 = scmp.ne.s32.totalorder %s60, %s61
    %p75 = scmp.eq.s32.totalorder %s27, 1
    %p76 = por %p74, %p75
    %p78 = scmp.ne.s32.totalorder %s61, %s77
    %p79 = scmp.eq.s32.totalorder %s27, 0
    %p80 = por %p78, %p79
    %s81 = ssub.s32 %s21, %s28
    %p82 = scmp.eq.s32.totalorder %s81, 0
    %s84 = sadd.s32 %s83, 1
    %s85 = scalar_select %p82, %s83, %s84
    %p88 = pneg %p82
    %p89 = scmp.eq.s32.totalorder %s21, 1
    %p90 = por %p88, %p89
    %p91 = scmp.ne.s32.totalorder %s83, %s86
    %p92 = scmp.eq.s32.totalorder %s21, 0
    %p93 = por %p91, %p92
    %p94 = scmp.ne.s32.totalorder %s83, %s86
    %p95 = scmp.eq.s32.totalorder %s26, 1
    %p96 = por %p94, %p95
    %p97 = scmp.ne.s32.totalorder %s86, %s87
    %p98 = scmp.eq.s32.totalorder %s26, 0
    %p99 = por %p97, %p98
    %p100 = scmp.ne.s32.totalorder %s86, %s87
    %p101 = scmp.eq.s32.totalorder %s27, 1
    %p102 = por %p100, %p101
    %p104 = scmp.ne.s32.totalorder %s87, %s103
    %p105 = scmp.eq.s32.totalorder %s27, 0
    %p106 = por %p104, %p105
    %s108 = sadd.s32 %s107, 1
    %p111 = scmp.eq.s32.totalorder %s21, 1
    %p112 = scmp.ne.s32.totalorder %s107, %s109
    %p113 = scmp.eq.s32.totalorder %s21, 0
    %p114 = por %p112, %p113
    %p115 = scmp.ne.s32.totalorder %s107, %s109
    %p116 = scmp.eq.s32.totalorder %s26, 1
    %p117 = por %p115, %p116
    %p118 = scmp.ne.s32.totalorder %s109, %s110
    %p119 = scmp.eq.s32.totalorder %s26, 0
    %p120 = por %p118, %p119
    %p121 = scmp.ne.s32.totalorder %s109, %s110
    %p122 = scmp.eq.s32.totalorder %s27, 1
    %p123 = por %p121, %p122
    %p125 = scmp.ne.s32.totalorder %s110, %s124
    %p126 = scmp.eq.s32.totalorder %s27, 0
    %p127 = por %p125, %p126
    %s129 = sadd.s32 %s128, 1
    %p132 = scmp.eq.s32.totalorder %s21, 1
    %p133 = scmp.ne.s32.totalorder %s128, %s130
    %p134 = scmp.eq.s32.totalorder %s21, 0
    %p135 = por %p133, %p134
    %p136 = scmp.ne.s32.totalorder %s128, %s130
    %p137 = scmp.eq.s32.totalorder %s26, 1
    %p138 = por %p136, %p137
    %p139 = scmp.ne.s32.totalorder %s130, %s131
    %p140 = scmp.eq.s32.totalorder %s26, 0
    %p141 = por %p139, %p140
    %p142 = scmp.ne.s32.totalorder %s130, %s131
    %p143 = scmp.eq.s32.totalorder %s27, 1
    %p144 = por %p142, %p143
    %p146 = scmp.ne.s32.totalorder %s131, %s145
    %p147 = scmp.eq.s32.totalorder %s27, 0
    %p148 = por %p146, %p147
    %s150 = sadd.s32 %s149, 1
    %p153 = scmp.eq.s32.totalorder %s21, 1
    %p154 = scmp.ne.s32.totalorder %s149, %s151
    %p155 = scmp.eq.s32.totalorder %s21, 0
    %p156 = por %p154, %p155
    %p157 = scmp.ne.s32.totalorder %s149, %s151
    %p158 = scmp.eq.s32.totalorder %s26, 1
    %p159 = por %p157, %p158
    %p160 = scmp.ne.s32.totalorder %s151, %s152
    %p161 = scmp.eq.s32.totalorder %s26, 0
    %p162 = por %p160, %p161
    %p163 = scmp.ne.s32.totalorder %s151, %s152
    %p164 = scmp.eq.s32.totalorder %s27, 1
    %p165 = por %p163, %p164
    %p167 = scmp.ne.s32.totalorder %s152, %s166
    %p168 = scmp.eq.s32.totalorder %s27, 0
    %p169 = por %p167, %p168
    %s171 = sadd.s32 %s170, 1
    %p174 = scmp.eq.s32.totalorder %s21, 1
    %p175 = scmp.ne.s32.totalorder %s170, %s172
    %p176 = scmp.eq.s32.totalorder %s21, 0
    %p177 = por %p175, %p176
    %p178 = scmp.ne.s32.totalorder %s170, %s172
    %p179 = scmp.eq.s32.totalorder %s26, 1
    %p180 = por %p178, %p179
    %p181 = scmp.ne.s32.totalorder %s172, %s173
    %p182 = scmp.eq.s32.totalorder %s26, 0
    %p183 = por %p181, %p182
    %p184 = scmp.ne.s32.totalorder %s172, %s173
    %p185 = scmp.eq.s32.totalorder %s27, 1
    %p186 = por %p184, %p185
    %p188 = scmp.ne.s32.totalorder %s173, %s187
    %p189 = scmp.eq.s32.totalorder %s27, 0
    %p190 = por %p188, %p189
    %s192 = sadd.s32 %s191, 1
    %p195 = scmp.eq.s32.totalorder %s21, 1
    %p196 = scmp.ne.s32.totalorder %s191, %s193
    %p197 = scmp.eq.s32.totalorder %s21, 0
    %p198 = por %p196, %p197
    %p199 = scmp.ne.s32.totalorder %s191, %s193
    %p200 = scmp.eq.s32.totalorder %s26, 1
    %p201 = por %p199, %p200
    %p202 = scmp.ne.s32.totalorder %s193, %s194
    %p203 = scmp.eq.s32.totalorder %s26, 0
    %p204 = por %p202, %p203
    %p205 = scmp.ne.s32.totalorder %s193, %s194
    %p206 = scmp.eq.s32.totalorder %s27, 1
    %p207 = por %p205, %p206
    %p209 = scmp.ne.s32.totalorder %s194, %s208
    %p210 = scmp.eq.s32.totalorder %s27, 0
    %p211 = por %p209, %p210
    %s213 = sadd.s32 %s212, 1
    %p216 = scmp.eq.s32.totalorder %s21, 1
    %p217 = scmp.ne.s32.totalorder %s212, %s214
    %p218 = scmp.eq.s32.totalorder %s21, 0
    %p219 = por %p217, %p218
    %p220 = scmp.ne.s32.totalorder %s212, %s214
    %p221 = scmp.eq.s32.totalorder %s26, 1
    %p222 = por %p220, %p221
    %p223 = scmp.ne.s32.totalorder %s214, %s215
    %p224 = scmp.eq.s32.totalorder %s26, 0
    %p225 = por %p223, %p224
    %p226 = scmp.ne.s32.totalorder %s214, %s215
    %p227 = scmp.eq.s32.totalorder %s27, 1
    %p228 = por %p226, %p227
    %p230 = scmp.ne.s32.totalorder %s215, %s229
    %p231 = scmp.eq.s32.totalorder %s27, 0
    %p232 = por %p230, %p231
    %s234 = sadd.s32 %s233, 1
    %p237 = scmp.eq.s32.totalorder %s21, 1
    %p238 = scmp.ne.s32.totalorder %s233, %s235
    %p239 = scmp.eq.s32.totalorder %s21, 0
    %p240 = por %p238, %p239
    %p241 = scmp.ne.s32.totalorder %s233, %s235
    %p242 = scmp.eq.s32.totalorder %s26, 1
    %p243 = por %p241, %p242
    %p244 = scmp.ne.s32.totalorder %s235, %s236
    %p245 = scmp.eq.s32.totalorder %s26, 0
    %p246 = por %p244, %p245
    %p247 = scmp.ne.s32.totalorder %s235, %s236
    %p248 = scmp.eq.s32.totalorder %s27, 1
    %p249 = por %p247, %p248
    %p251 = scmp.ne.s32.totalorder %s236, %s250
    %p252 = scmp.eq.s32.totalorder %s27, 0
    %p253 = por %p251, %p252
    %s255 = sadd.s32 %s254, 1
    %p258 = scmp.eq.s32.totalorder %s21, 1
    %p259 = scmp.ne.s32.totalorder %s254, %s256
    %p260 = scmp.eq.s32.totalorder %s21, 0
    %p261 = por %p259, %p260
    %p262 = scmp.ne.s32.totalorder %s254, %s256
    %p263 = scmp.eq.s32.totalorder %s26, 1
    %p264 = por %p262, %p263
    %p265 = scmp.ne.s32.totalorder %s256, %s257
    %p266 = scmp.eq.s32.totalorder %s26, 0
    %p267 = por %p265, %p266
    %p268 = scmp.ne.s32.totalorder %s256, %s257
    %p269 = scmp.eq.s32.totalorder %s27, 1
    %p270 = por %p268, %p269
    %p272 = scmp.ne.s32.totalorder %s257, %s271
    %p273 = scmp.eq.s32.totalorder %s27, 0
    %p274 = por %p272, %p273
    %s276 = sadd.s32 %s275, 1
    %p279 = scmp.eq.s32.totalorder %s21, 1
    %p280 = scmp.ne.s32.totalorder %s275, %s277
    %p281 = scmp.eq.s32.totalorder %s21, 0
    %p282 = por %p280, %p281
    %p283 = scmp.ne.s32.totalorder %s275, %s277
    %p284 = scmp.eq.s32.totalorder %s26, 1
    %p285 = por %p283, %p284
    %p286 = scmp.ne.s32.totalorder %s277, %s278
    %p287 = scmp.eq.s32.totalorder %s26, 0
    %p288 = por %p286, %p287
    %p289 = scmp.ne.s32.totalorder %s277, %s278
    %p290 = scmp.eq.s32.totalorder %s27, 1
    %p291 = por %p289, %p290
    %p293 = scmp.ne.s32.totalorder %s278, %s292
    %p294 = scmp.eq.s32.totalorder %s27, 0
    %p295 = por %p293, %p294
    %s297 = sadd.s32 %s296, 1
    %p300 = scmp.eq.s32.totalorder %s21, 1
    %p301 = scmp.ne.s32.totalorder %s296, %s298
    %p302 = scmp.eq.s32.totalorder %s21, 0
    %p303 = por %p301, %p302
    %p304 = scmp.ne.s32.totalorder %s296, %s298
    %p305 = scmp.eq.s32.totalorder %s26, 1
    %p306 = por %p304, %p305
    %p307 = scmp.ne.s32.totalorder %s298, %s299
    %p308 = scmp.eq.s32.totalorder %s26, 0
    %p309 = por %p307, %p308
    %p310 = scmp.ne.s32.totalorder %s298, %s299
    %p311 = scmp.eq.s32.totalorder %s27, 1
    %p312 = por %p310, %p311
    %p314 = scmp.ne.s32.totalorder %s299, %s313
    %p315 = scmp.eq.s32.totalorder %s27, 0
    %p316 = por %p314, %p315
    %s318 = sadd.s32 %s317, 1
    %p321 = scmp.eq.s32.totalorder %s21, 1
    %p322 = scmp.ne.s32.totalorder %s317, %s319
    %p323 = scmp.eq.s32.totalorder %s21, 0
    %p324 = por %p322, %p323
    %p325 = scmp.ne.s32.totalorder %s317, %s319
    %p326 = scmp.eq.s32.totalorder %s26, 1
    %p327 = por %p325, %p326
    %p328 = scmp.ne.s32.totalorder %s319, %s320
    %p329 = scmp.eq.s32.totalorder %s26, 0
    %p330 = por %p328, %p329
    %p331 = scmp.ne.s32.totalorder %s319, %s320
    %p332 = scmp.eq.s32.totalorder %s27, 1
    %p333 = por %p331, %p332
    %p335 = scmp.ne.s32.totalorder %s320, %s334
    %p336 = scmp.eq.s32.totalorder %s27, 0
    %p337 = por %p335, %p336
    %s339 = sadd.s32 %s338, 1
    %p342 = scmp.eq.s32.totalorder %s21, 1
    %p343 = scmp.ne.s32.totalorder %s338, %s340
    %p344 = scmp.eq.s32.totalorder %s21, 0
    %p345 = por %p343, %p344
    %p346 = scmp.ne.s32.totalorder %s338, %s340
    %p347 = scmp.eq.s32.totalorder %s26, 1
    %p348 = por %p346, %p347
    %p349 = scmp.ne.s32.totalorder %s340, %s341
    %p350 = scmp.eq.s32.totalorder %s26, 0
    %p351 = por %p349, %p350
    %p352 = scmp.ne.s32.totalorder %s340, %s341
    %p353 = scmp.eq.s32.totalorder %s27, 1
    %p354 = por %p352, %p353
    %p356 = scmp.ne.s32.totalorder %s341, %s355
    %p357 = scmp.eq.s32.totalorder %s27, 0
    %p358 = por %p356, %p357
    %s359 = ssub.s32 %s21, %s28
    %p360 = scmp.eq.s32.totalorder %s359, 0
    %s362 = sadd.s32 %s361, 1
    %s363 = scalar_select %p360, %s361, %s362
    %p366 = pneg %p360
    %p367 = scmp.eq.s32.totalorder %s21, 1
    %p368 = por %p366, %p367
    %p369 = scmp.ne.s32.totalorder %s361, %s364
    %p370 = scmp.eq.s32.totalorder %s21, 0
    %p371 = por %p369, %p370
    %p372 = scmp.ne.s32.totalorder %s361, %s364
    %p373 = scmp.eq.s32.totalorder %s26, 1
    %p374 = por %p372, %p373
    %p375 = scmp.ne.s32.totalorder %s364, %s365
    %p376 = scmp.eq.s32.totalorder %s26, 0
    %p377 = por %p375, %p376
    %p378 = scmp.ne.s32.totalorder %s364, %s365
    %p379 = scmp.eq.s32.totalorder %s27, 1
    %p380 = por %p378, %p379
    %p382 = scmp.ne.s32.totalorder %s365, %s381
    %p383 = scmp.eq.s32.totalorder %s27, 0
    %p384 = por %p382, %p383
    %p385 = scmp.le.s32.totalorder 1, %s21
    %p386 = scmp.lt.s32.totalorder %s21, 3
    %p387 = pnand %p385, %p386
    %p388 = pneg %p387
    // Predicated region
    $region9: #{local_spatial_encoding.1} parent=5 // pred_check
      _
    $region10: #{local_spatial_encoding.1} parent=5 // pred_check_branch
      %390 = sbr.rel (%p387) target = $region12
    $region11: #{local_spatial_encoding.1} parent=5 // pred_region
      %s391 = ssub.s32 %s21, 1
      // Predicated region
      $region13: #{local_spatial_encoding.1} parent=11 // pred_check
        %p392 = pneg %p120
      $region14: #{local_spatial_encoding.1} parent=11 // pred_check_branch
        %394 = sbr.rel (%p392) target = $region16
      $region15: #{local_spatial_encoding.1} parent=11 // pred_region
        _
      $region16: #{local_spatial_encoding.1} parent=11 // pred_fallthru
        _
      // Predicated region
      $region17: #{local_spatial_encoding.1} parent=11 // pred_check
        %p395 = pneg %p141
      $region18: #{local_spatial_encoding.1} parent=11 // pred_check_branch
        %397 = sbr.rel (%p395) target = $region20
      $region19: #{local_spatial_encoding.1} parent=11 // pred_region
        _
      $region20: #{local_spatial_encoding.1} parent=11 // pred_fallthru
        _
      // Predicated region
      $region21: #{local_spatial_encoding.1} parent=11 // pred_check
        %p398 = pneg %p162
      $region22: #{local_spatial_encoding.1} parent=11 // pred_check_branch
        %400 = sbr.rel (%p398) target = $region24
      $region23: #{local_spatial_encoding.1} parent=11 // pred_region
        _
      $region24: #{local_spatial_encoding.1} parent=11 // pred_fallthru
        _
      // Predicated region
      $region25: #{local_spatial_encoding.1} parent=11 // pred_check
        %p401 = pneg %p183
      $region26: #{local_spatial_encoding.1} parent=11 // pred_check_branch
        %403 = sbr.rel (%p401) target = $region28
      $region27: #{local_spatial_encoding.1} parent=11 // pred_region
        _
      $region28: #{local_spatial_encoding.1} parent=11 // pred_fallthru
        _
      // Predicated region
      $region29: #{local_spatial_encoding.1} parent=11 // pred_check
        %p404 = pneg %p204
      $region30: #{local_spatial_encoding.1} parent=11 // pred_check_branch
        %406 = sbr.rel (%p404) target = $region32
      $region31: #{local_spatial_encoding.1} parent=11 // pred_region
        _
      $region32: #{local_spatial_encoding.1} parent=11 // pred_fallthru
        _
      // Predicated region
      $region33: #{local_spatial_encoding.1} parent=11 // pred_check
        %p407 = pneg %p225
      $region34: #{local_spatial_encoding.1} parent=11 // pred_check_branch
        %409 = sbr.rel (%p407) target = $region36
      $region35: #{local_spatial_encoding.1} parent=11 // pred_region
        _
      $region36: #{local_spatial_encoding.1} parent=11 // pred_fallthru
        _
      // Predicated region
      $region37: #{local_spatial_encoding.1} parent=11 // pred_check
        %p410 = pneg %p246
      $region38: #{local_spatial_encoding.1} parent=11 // pred_check_branch
        %412 = sbr.rel (%p410) target = $region40
      $region39: #{local_spatial_encoding.1} parent=11 // pred_region
        _
      $region40: #{local_spatial_encoding.1} parent=11 // pred_fallthru
        _
      // Predicated region
      $region41: #{local_spatial_encoding.1} parent=11 // pred_check
        %p413 = pneg %p267
      $region42: #{local_spatial_encoding.1} parent=11 // pred_check_branch
        %415 = sbr.rel (%p413) target = $region44
      $region43: #{local_spatial_encoding.1} parent=11 // pred_region
        _
      $region44: #{local_spatial_encoding.1} parent=11 // pred_fallthru
        _
      // Predicated region
      $region45: #{local_spatial_encoding.1} parent=11 // pred_check
        %p416 = pneg %p288
      $region46: #{local_spatial_encoding.1} parent=11 // pred_check_branch
        %418 = sbr.rel (%p416) target = $region48
      $region47: #{local_spatial_encoding.1} parent=11 // pred_region
        _
      $region48: #{local_spatial_encoding.1} parent=11 // pred_fallthru
        _
      // Predicated region
      $region49: #{local_spatial_encoding.1} parent=11 // pred_check
        %p419 = pneg %p309
      $region50: #{local_spatial_encoding.1} parent=11 // pred_check_branch
        %421 = sbr.rel (%p419) target = $region52
      $region51: #{local_spatial_encoding.1} parent=11 // pred_region
        _
      $region52: #{local_spatial_encoding.1} parent=11 // pred_fallthru
        _
      // Predicated region
      $region53: #{local_spatial_encoding.1} parent=11 // pred_check
        %p422 = pneg %p330
      $region54: #{local_spatial_encoding.1} parent=11 // pred_check_branch
        %424 = sbr.rel (%p422) target = $region56
      $region55: #{local_spatial_encoding.1} parent=11 // pred_region
        _
      $region56: #{local_spatial_encoding.1} parent=11 // pred_fallthru
        _
      // Predicated region
      $region57: #{local_spatial_encoding.1} parent=11 // pred_check
        %p425 = pneg %p351
      $region58: #{local_spatial_encoding.1} parent=11 // pred_check_branch
        %427 = sbr.rel (%p425) target = $region60
      $region59: #{local_spatial_encoding.1} parent=11 // pred_region
        _
      $region60: #{local_spatial_encoding.1} parent=11 // pred_fallthru
        _
    $region12: #{local_spatial_encoding.1} parent=5 // pred_fallthru
      _
    %p428 = scmp.lt.s32.totalorder %s21, 2
    // Predicated region
    $region61: #{local_spatial_encoding.1} parent=5 // pred_check
      %p429 = pneg %p428
    $region62: #{local_spatial_encoding.1} parent=5 // pred_check_branch
      %431 = sbr.rel (%p429) target = $region64
    $region63: #{local_spatial_encoding.1} parent=5 // pred_region
      // Predicated region
      $region65: #{local_spatial_encoding.1} parent=63 // pred_check
        %p432 = pneg %p41
      $region66: #{local_spatial_encoding.1} parent=63 // pred_check_branch
        %434 = sbr.rel (%p432) target = $region68
      $region67: #{local_spatial_encoding.1} parent=63 // pred_region
        %p435 = scmp.lt.s32.totalorder %s21, 1
        %s436 = scalar_select %p435, %s21, 1
        %s437 = smul.addr %s436, 4
        %s438 = scalar_lea.vmem %s0, %s437
      $region68: #{local_spatial_encoding.1} parent=63 // pred_fallthru
        _
      // Predicated region
      $region69: #{local_spatial_encoding.1} parent=63 // pred_check
        %p439 = pneg %p67
      $region70: #{local_spatial_encoding.1} parent=63 // pred_check_branch
        %441 = sbr.rel (%p439) target = $region72
      $region71: #{local_spatial_encoding.1} parent=63 // pred_region
        %p442 = scmp.lt.s32.totalorder %s21, 1
        %s443 = scalar_select %p442, %s21, 1
        %s444 = smul.addr %s443, 4
        %s445 = scalar_lea.vmem %s1, %s444
      $region72: #{local_spatial_encoding.1} parent=63 // pred_fallthru
        _
      // Predicated region
      $region73: #{local_spatial_encoding.1} parent=63 // pred_check
        %p446 = pneg %p93
      $region74: #{local_spatial_encoding.1} parent=63 // pred_check_branch
        %448 = sbr.rel (%p446) target = $region76
      $region75: #{local_spatial_encoding.1} parent=63 // pred_region
        %p449 = scmp.lt.s32.totalorder %s21, 1
        %s450 = scalar_select %p449, %s21, 1
        %s451 = scalar_lea.vmem %s2, %s450
      $region76: #{local_spatial_encoding.1} parent=63 // pred_fallthru
        _
    $region64: #{local_spatial_encoding.1} parent=5 // pred_fallthru
      _
    %p452 = scmp.le.s32.totalorder 1, %s21
    %p453 = scmp.lt.s32.totalorder %s21, 3
    %p454 = pnand %p452, %p453
    %p455 = pneg %p454
    // Predicated region
    $region77: #{local_spatial_encoding.1} parent=5 // pred_check
      _
    $region78: #{local_spatial_encoding.1} parent=5 // pred_check_branch
      %457 = sbr.rel (%p454) target = $region80
    $region79: #{local_spatial_encoding.1} parent=5 // pred_region
      %s458 = ssub.s32 %s21, 1
      %p459 = scmp.lt.s32.totalorder %s26, 1
      %s460 = scalar_select %p459, %s26, 1
      %s461 = smul.addr %s460, 4
      %s462 = scalar_lea.vmem %s0, %s461
      %p463 = pneg %p47
      %p464 = pneg %p44
      %p465 = scmp.lt.s32.totalorder %s26, 1
      %s466 = scalar_select %p465, %s26, 1
      %s467 = smul.addr %s466, 4
      %s468 = scalar_lea.vmem %s1, %s467
      %p469 = pneg %p73
      %p470 = pneg %p70
      %p471 = scmp.lt.s32.totalorder %s26, 1
      %s472 = scalar_select %p471, %s26, 1
      %s473 = scalar_lea.vmem %s2, %s472
      %p474 = pneg %p99
      %p475 = pneg %p96
      %p476 = pneg %p120
      %p477 = pneg %p117
      %p478 = pneg %p141
      %p479 = pneg %p138
      %p480 = pneg %p162
      %p481 = pneg %p159
      %p482 = pneg %p183
      %p483 = pneg %p180
      %p484 = pneg %p204
      %p485 = pneg %p201
      %p486 = pneg %p225
      %p487 = pneg %p222
      %p488 = pneg %p246
      %p489 = pneg %p243
      %p490 = pneg %p267
      %p491 = pneg %p264
      %p492 = pneg %p288
      %p493 = pneg %p285
      %p494 = pneg %p309
      %p495 = pneg %p306
      %p496 = pneg %p330
      %p497 = pneg %p327
      %p498 = pneg %p351
      %p499 = pneg %p348
      %p500 = pneg %p377
      %p501 = pneg %p374
      %p502 = scmp.lt.s32.totalorder %s26, 1
      %s503 = scalar_select %p502, %s26, 1
      %s504 = smul.addr %s503, 8
      %s505 = scalar_lea.vmem %s15, %s504
      %p506 = scmp.lt.s32.totalorder %s26, 1
      %s507 = scalar_select %p506, %s26, 1
      %s508 = smul.addr %s507, 4
      %s509 = scalar_lea.vmem %s0, %s508
      %p510 = scmp.lt.s32.totalorder %s26, 1
      %s511 = scalar_select %p510, %s26, 1
      %s512 = smul.addr %s511, 4
      %s513 = scalar_lea.vmem %s1, %s512
      %p514 = scmp.lt.s32.totalorder %s26, 1
      %s515 = scalar_select %p514, %s26, 1
      %s516 = scalar_lea.vmem %s2, %s515
      %p517 = scmp.lt.s32.totalorder %s26, 1
      %s518 = scalar_select %p517, %s26, 1
      %s519 = smul.addr %s518, 8
      %s520 = scalar_lea.vmem %s15, %s519
      %v521 = vld [vmem:[%s509] sm:$0x7]
      %v522 = vld [vmem:[%s513] sm:$0x7]
      %v523 = vld [vmem:[%s516] sm:$0x1]
      %v524 = vld [vmem:[%s3] sm:$0x1]
      %v525 = vlaneseq
      %v526 = vshrl.u32 %v525, 7
      %v527 = vadd.s32 %v526, 8
      %v528 = vlaneseq
      %v529 = vshrl.u32 %v528, 7
      %v530 = vsub.s32 0, %v529
      %v531 = vrot.slane %v523, %v530
      %vm532 = vcmp.eq.s32.totalorder %v526, %v531
      %vm533 = vcmp.eq.s32.totalorder %v527, %v531
      %v534 = vsel %vm532, 1, 0
      %v535 = vsel %vm533, 1, 0
      %v536 = vcvt.s32.f32 %v534
      %v537 = vcvt.s32.f32 %v535
      %v538 = vlaneseq
      %v539 = vshrl.u32 %v538, 7
      %v540 = vsub.s32 0, %v539
      %v541 = vrot.slane %v524, %v540
      %vm542 = vcmp.eq.s32.totalorder %v526, %v541
      %vm543 = vcmp.eq.s32.totalorder %v527, %v541
      %v544 = vsel %vm542, 1, 0
      %v545 = vsel %vm543, 1, 0
      %v546 = vcvt.s32.f32 %v544
      %v547 = vcvt.s32.f32 %v545
      %vm548 = vcmask 130048
      %v550 = vsel %vm548, %v521, 0
      %552 = vmatprep.subr.mxu0 0.0
      %553 = vmatpush1.msra.mxu0 %v546
      %554 = vmatprep.subr.mxu0 0.0
      %555 = vmatpush1.msra.mxu0 %v547
      %556 = vmatprep.subr.mxu0 0.0
      %557 = vmatpush1.msra.mxu0 0.0
      %558 = vmatprep.subr.mxu0 0.0
      %559 = vmatpush1.msra.mxu0 0.0
      %560 = vmatprep.subr.mxu0 0.0
      %561 = vmatpush1.msra.mxu0 0.0
      %562 = vmatprep.subr.mxu0 0.0
      %563 = vmatpush1.msra.mxu0 0.0
      %564 = vmatprep.subr.mxu0 0.0
      %565 = vmatpush1.msra.mxu0 0.0
      %566 = vmatprep.subr.mxu0 0.0
      %567 = vmatpush1.msra.mxu0 0.0
      %568 = vmatprep.subr.mxu0 0.0
      %569 = vmatpush1.msra.mxu0 0.0
      %570 = vmatprep.subr.mxu0 0.0
      %571 = vmatpush1.msra.mxu0 0.0
      %572 = vmatprep.subr.mxu0 0.0
      %573 = vmatpush1.msra.mxu0 0.0
      %574 = vmatprep.subr.mxu0 0.0
      %575 = vmatpush1.msra.mxu0 0.0
      %576 = vmatprep.subr.mxu0 0.0
      %577 = vmatpush1.msra.mxu0 0.0
      %578 = vmatprep.subr.mxu0 0.0
      %579 = vmatpush1.msra.mxu0 0.0
      %580 = vmatprep.subr.mxu0 0.0
      %581 = vmatpush1.msra.mxu0 0.0
      %582 = vmatprep.subr.mxu0 0.0
      %583 = vmatpush1.msra.mxu0 0.0
      %584 = vmatprep.subr.mxu0 0.0
      %585 = vmatpush1.msra.mxu0 0.0
      %586 = vmatprep.subr.mxu0 0.0
      %587 = vmatpush1.msra.mxu0 0.0
      %588 = vmatprep.subr.mxu0 0.0
      %589 = vmatpush1.msra.mxu0 0.0
      %590 = vmatprep.subr.mxu0 0.0
      %591 = vmatpush1.msra.mxu0 0.0
      %592 = vmatprep.subr.mxu0 0.0
      %593 = vmatpush1.msra.mxu0 0.0
      %594 = vmatprep.subr.mxu0 0.0
      %595 = vmatpush1.msra.mxu0 0.0
      %596 = vmatprep.subr.mxu0 0.0
      %597 = vmatpush1.msra.mxu0 0.0
      %598 = vmatprep.subr.mxu0 0.0
      %599 = vmatpush1.msra.mxu0 0.0
      %600 = vmatprep.subr.mxu0 0.0
      %601 = vmatpush1.msra.mxu0 0.0
      %602 = vmatprep.subr.mxu0 0.0
      %603 = vmatpush1.msra.mxu0 0.0
      %604 = vmatprep.subr.mxu0 0.0
      %605 = vmatpush1.msra.mxu0 0.0
      %606 = vmatprep.subr.mxu0 0.0
      %607 = vmatpush1.msra.mxu0 0.0
      %608 = vmatprep.subr.mxu0 0.0
      %609 = vmatpush1.msra.mxu0 0.0
      %610 = vmatprep.subr.mxu0 0.0
      %611 = vmatpush1.msra.mxu0 0.0
      %612 = vmatprep.subr.mxu0 0.0
      %613 = vmatpush1.msra.mxu0 0.0
      %614 = vmatprep.subr.mxu0 0.0
      %615 = vmatpush1.msra.mxu0 0.0
      %616 = vmatprep.mubr.f32.mxu0 0.0
      %617 = vmatmul.mubr.f32.gmra.mrb[0].mxu0 %v550
      %v618 = vpop.f32.mrb[0].mxu0
      %v619 = vadd.f32 0.0, %v618
      %v620 = vpop.f32.mrb[0].mxu0
      %621 = vdwg.mxu0
      %622 = vmatprep.subr.mxu0 0.0
      %623 = vmatpush1.msra.mxu0 %v536
      %624 = vmatprep.subr.mxu0 0.0
      %625 = vmatpush1.msra.mxu0 %v537
      %626 = vmatprep.subr.mxu0 0.0
      %627 = vmatpush1.msra.mxu0 0.0
      %628 = vmatprep.subr.mxu0 0.0
      %629 = vmatpush1.msra.mxu0 0.0
      %630 = vmatprep.subr.mxu0 0.0
      %631 = vmatpush1.msra.mxu0 0.0
      %632 = vmatprep.subr.mxu0 0.0
      %633 = vmatpush1.msra.mxu0 0.0
      %634 = vmatprep.subr.mxu0 0.0
      %635 = vmatpush1.msra.mxu0 0.0
      %636 = vmatprep.subr.mxu0 0.0
      %637 = vmatpush1.msra.mxu0 0.0
      %638 = vmatprep.subr.mxu0 0.0
      %639 = vmatpush1.msra.mxu0 0.0
      %640 = vmatprep.subr.mxu0 0.0
      %641 = vmatpush1.msra.mxu0 0.0
      %642 = vmatprep.subr.mxu0 0.0
      %643 = vmatpush1.msra.mxu0 0.0
      %644 = vmatprep.subr.mxu0 0.0
      %645 = vmatpush1.msra.mxu0 0.0
      %646 = vmatprep.subr.mxu0 0.0
      %647 = vmatpush1.msra.mxu0 0.0
      %648 = vmatprep.subr.mxu0 0.0
      %649 = vmatpush1.msra.mxu0 0.0
      %650 = vmatprep.subr.mxu0 0.0
      %651 = vmatpush1.msra.mxu0 0.0
      %652 = vmatprep.subr.mxu0 0.0
      %653 = vmatpush1.msra.mxu0 0.0
      %654 = vmatprep.subr.mxu0 0.0
      %655 = vmatpush1.msra.mxu0 0.0
      %656 = vmatprep.subr.mxu0 0.0
      %657 = vmatpush1.msra.mxu0 0.0
      %658 = vmatprep.subr.mxu0 0.0
      %659 = vmatpush1.msra.mxu0 0.0
      %660 = vmatprep.subr.mxu0 0.0
      %661 = vmatpush1.msra.mxu0 0.0
      %662 = vmatprep.subr.mxu0 0.0
      %663 = vmatpush1.msra.mxu0 0.0
      %664 = vmatprep.subr.mxu0 0.0
      %665 = vmatpush1.msra.mxu0 0.0
      %666 = vmatprep.subr.mxu0 0.0
      %667 = vmatpush1.msra.mxu0 0.0
      %668 = vmatprep.subr.mxu0 0.0
      %669 = vmatpush1.msra.mxu0 0.0
      %670 = vmatprep.subr.mxu0 0.0
      %671 = vmatpush1.msra.mxu0 0.0
      %672 = vmatprep.subr.mxu0 0.0
      %673 = vmatpush1.msra.mxu0 0.0
      %674 = vmatprep.subr.mxu0 0.0
      %675 = vmatpush1.msra.mxu0 0.0
      %676 = vmatprep.subr.mxu0 0.0
      %677 = vmatpush1.msra.mxu0 0.0
      %678 = vmatprep.subr.mxu0 0.0
      %679 = vmatpush1.msra.mxu0 0.0
      %680 = vmatprep.subr.mxu0 0.0
      %681 = vmatpush1.msra.mxu0 0.0
      %682 = vmatprep.subr.mxu0 0.0
      %683 = vmatpush1.msra.mxu0 0.0
      %684 = vmatprep.subr.mxu0 0.0
      %685 = vmatpush1.msra.mxu0 0.0
      %686 = vmatprep.mubr.f32.mxu0 0.0
      %687 = vmatmul.mubr.f32.gmra.mrb[0].mxu0 %v550
      %v688 = vpop.f32.mrb[0].mxu0
      %v689 = vadd.f32 0.0, %v688
      %v690 = vpop.f32.mrb[0].mxu0
      %691 = vdwg.mxu0
      %v692 = vsub.f32 %v619, %v689
      %v693 = vmul.f32 %v692, %v692
      %v695 = vrot.slane %v693, 1
      %v697 = vadd.f32 %v693, %v695
      %v698 = vrot.slane %v693, 2
      %v700 = vadd.f32 %v697, %v698
      %v701 = vrsqrt.pop %v700
      %v702 = vmul.f32 %v700, %v701
      %vm703 = vcmp.eq.f32.partialorder %v700, inf
      %v704 = vsel %vm703, %v700, %v702
      %vm705 = vcmp.eq.f32.partialorder %v700, 0.0
      %v706 = vand.u32 %v700, 2147483648
      %v707 = vsel %vm705, %v706, %v704
      %v708 = vld [vmem:[%s4] sm:$0x7]
      %s709 = scalar_lea.vmem %s4, 4
      %v710 = vld [vmem:[%s709] sm:$0x7]
      %vm711 = vcmask 23552
      %v713 = vsel %vm711, %v710, 0
      %vm715 = vcmask 1042432
      %v717 = vsel %vm715, %v689, 0
      %719 = vmatprep.subr.mxu0 0.0
      %720 = vmatpush1.msra.mxu0 %v717
      %721 = vmatprep.subr.mxu0 0.0
      %722 = vmatpush1.msra.mxu0 0.0
      %723 = vmatprep.subr.mxu0 0.0
      %724 = vmatpush1.msra.mxu0 0.0
      %725 = vmatprep.subr.mxu0 0.0
      %726 = vmatpush1.msra.mxu0 0.0
      %727 = vmatprep.subr.mxu0 0.0
      %728 = vmatpush1.msra.mxu0 0.0
      %729 = vmatprep.subr.mxu0 0.0
      %730 = vmatpush1.msra.mxu0 0.0
      %731 = vmatprep.subr.mxu0 0.0
      %732 = vmatpush1.msra.mxu0 0.0
      %733 = vmatprep.subr.mxu0 0.0
      %734 = vmatpush1.msra.mxu0 0.0
      %735 = vmatprep.subr.mxu0 0.0
      %736 = vmatpush1.msra.mxu0 0.0
      %737 = vmatprep.subr.mxu0 0.0
      %738 = vmatpush1.msra.mxu0 0.0
      %739 = vmatprep.subr.mxu0 0.0
      %740 = vmatpush1.msra.mxu0 0.0
      %741 = vmatprep.subr.mxu0 0.0
      %742 = vmatpush1.msra.mxu0 0.0
      %743 = vmatprep.subr.mxu0 0.0
      %744 = vmatpush1.msra.mxu0 0.0
      %745 = vmatprep.subr.mxu0 0.0
      %746 = vmatpush1.msra.mxu0 0.0
      %747 = vmatprep.subr.mxu0 0.0
      %748 = vmatpush1.msra.mxu0 0.0
      %749 = vmatprep.subr.mxu0 0.0
      %750 = vmatpush1.msra.mxu0 0.0
      %751 = vmatprep.subr.mxu0 0.0
      %752 = vmatpush1.msra.mxu0 0.0
      %753 = vmatprep.subr.mxu0 0.0
      %754 = vmatpush1.msra.mxu0 0.0
      %755 = vmatprep.subr.mxu0 0.0
      %756 = vmatpush1.msra.mxu0 0.0
      %757 = vmatprep.subr.mxu0 0.0
      %758 = vmatpush1.msra.mxu0 0.0
      %759 = vmatprep.subr.mxu0 0.0
      %760 = vmatpush1.msra.mxu0 0.0
      %761 = vmatprep.subr.mxu0 0.0
      %762 = vmatpush1.msra.mxu0 0.0
      %763 = vmatprep.subr.mxu0 0.0
      %764 = vmatpush1.msra.mxu0 0.0
      %765 = vmatprep.subr.mxu0 0.0
      %766 = vmatpush1.msra.mxu0 0.0
      %767 = vmatprep.subr.mxu0 0.0
      %768 = vmatpush1.msra.mxu0 0.0
      %769 = vmatprep.subr.mxu0 0.0
      %770 = vmatpush1.msra.mxu0 0.0
      %771 = vmatprep.subr.mxu0 0.0
      %772 = vmatpush1.msra.mxu0 0.0
      %773 = vmatprep.subr.mxu0 0.0
      %774 = vmatpush1.msra.mxu0 0.0
      %775 = vmatprep.subr.mxu0 0.0
      %776 = vmatpush1.msra.mxu0 0.0
      %777 = vmatprep.subr.mxu0 0.0
      %778 = vmatpush1.msra.mxu0 0.0
      %779 = vmatprep.subr.mxu0 0.0
      %780 = vmatpush1.msra.mxu0 0.0
      %781 = vmatprep.subr.mxu0 0.0
      %782 = vmatpush1.msra.mxu0 0.0
      %783 = vmatprep.mubr.f32.mxu0 0.0
      %784 = vmatmul.mubr.f32.gmra.mrb[0].mxu0 %v713
      %v785 = vpop.f32.mrb[0].mxu0
      %v786 = vadd.f32 0.0, %v785
      %v787 = vpop.f32.mrb[0].mxu0
      %788 = vdwg.mxu0
      %v790 = vsel %vm711, %v708, 0
      %v793 = vsel %vm715, %v619, 0
      %795 = vmatprep.subr.mxu0 0.0
      %796 = vmatpush1.msra.mxu0 %v793
      %797 = vmatprep.subr.mxu0 0.0
      %798 = vmatpush1.msra.mxu0 0.0
      %799 = vmatprep.subr.mxu0 0.0
      %800 = vmatpush1.msra.mxu0 0.0
      %801 = vmatprep.subr.mxu0 0.0
      %802 = vmatpush1.msra.mxu0 0.0
      %803 = vmatprep.subr.mxu0 0.0
      %804 = vmatpush1.msra.mxu0 0.0
      %805 = vmatprep.subr.mxu0 0.0
      %806 = vmatpush1.msra.mxu0 0.0
      %807 = vmatprep.subr.mxu0 0.0
      %808 = vmatpush1.msra.mxu0 0.0
      %809 = vmatprep.subr.mxu0 0.0
      %810 = vmatpush1.msra.mxu0 0.0
      %811 = vmatprep.subr.mxu0 0.0
      %812 = vmatpush1.msra.mxu0 0.0
      %813 = vmatprep.subr.mxu0 0.0
      %814 = vmatpush1.msra.mxu0 0.0
      %815 = vmatprep.subr.mxu0 0.0
      %816 = vmatpush1.msra.mxu0 0.0
      %817 = vmatprep.subr.mxu0 0.0
      %818 = vmatpush1.msra.mxu0 0.0
      %819 = vmatprep.subr.mxu0 0.0
      %820 = vmatpush1.msra.mxu0 0.0
      %821 = vmatprep.subr.mxu0 0.0
      %822 = vmatpush1.msra.mxu0 0.0
      %823 = vmatprep.subr.mxu0 0.0
      %824 = vmatpush1.msra.mxu0 0.0
      %825 = vmatprep.subr.mxu0 0.0
      %826 = vmatpush1.msra.mxu0 0.0
      %827 = vmatprep.subr.mxu0 0.0
      %828 = vmatpush1.msra.mxu0 0.0
      %829 = vmatprep.subr.mxu0 0.0
      %830 = vmatpush1.msra.mxu0 0.0
      %831 = vmatprep.subr.mxu0 0.0
      %832 = vmatpush1.msra.mxu0 0.0
      %833 = vmatprep.subr.mxu0 0.0
      %834 = vmatpush1.msra.mxu0 0.0
      %835 = vmatprep.subr.mxu0 0.0
      %836 = vmatpush1.msra.mxu0 0.0
      %837 = vmatprep.subr.mxu0 0.0
      %838 = vmatpush1.msra.mxu0 0.0
      %839 = vmatprep.subr.mxu0 0.0
      %840 = vmatpush1.msra.mxu0 0.0
      %841 = vmatprep.subr.mxu0 0.0
      %842 = vmatpush1.msra.mxu0 0.0
      %843 = vmatprep.subr.mxu0 0.0
      %844 = vmatpush1.msra.mxu0 0.0
      %845 = vmatprep.subr.mxu0 0.0
      %846 = vmatpush1.msra.mxu0 0.0
      %847 = vmatprep.subr.mxu0 0.0
      %848 = vmatpush1.msra.mxu0 0.0
      %849 = vmatprep.subr.mxu0 0.0
      %850 = vmatpush1.msra.mxu0 0.0
      %851 = vmatprep.subr.mxu0 0.0
      %852 = vmatpush1.msra.mxu0 0.0
      %853 = vmatprep.subr.mxu0 0.0
      %854 = vmatpush1.msra.mxu0 0.0
      %855 = vmatprep.subr.mxu0 0.0
      %856 = vmatpush1.msra.mxu0 0.0
      %857 = vmatprep.subr.mxu0 0.0
      %858 = vmatpush1.msra.mxu0 0.0
      %859 = vmatprep.mubr.f32.mxu0 0.0
      %860 = vmatmul.mubr.f32.gmra.mrb[0].mxu0 %v790
      %v861 = vpop.f32.mrb[0].mxu0
      %v862 = vadd.f32 %v786, %v861
      %v863 = vpop.f32.mrb[0].mxu0
      %864 = vdwg.mxu0
      %v865 = vld [vmem:[%s5] sm:$0x7]
      %867 = vset.pattern.permute.xlu0 0
      %868 = vperm.xlu0 %867, %v865
      %v869 = vpop.permute.xlu0 %868
      %v871 = vlaneseq
      %v872 = vshrl.u32 %v871, 7
      %v873 = vsub.s32 0, %v872
      %v874 = vrot.slane %v707, %v873
      %v875 = vmul.f32 %v869, %v874
      %v876 = vadd.f32 %v862, %v875
      %v877 = vld [vmem:[%s6] sm:$0x7]
      %879 = vset.pattern.permute.xlu0 0
      %880 = vperm.xlu0 %879, %v877
      %v881 = vpop.permute.xlu0 %880
      %v883 = vmul.f32 %v876, %v881
      %s884 = scalar_lea.vmem %s6, 4
      %v885 = vld [vmem:[%s884] sm:$0x7]
      %887 = vset.pattern.permute.xlu0 0
      %888 = vperm.xlu0 %887, %v885
      %v889 = vpop.permute.xlu0 %888
      %v891 = vadd.f32 %v883, %v889
      %v892 = vmax.f32 %v891, 0.0
      %v894 = vsel %vm548, %v522, 0
      %896 = vmatprep.subr.mxu0 0.0
      %897 = vmatpush1.msra.mxu0 %v536
      %898 = vmatprep.subr.mxu0 0.0
      %899 = vmatpush1.msra.mxu0 %v537
      %900 = vmatprep.subr.mxu0 0.0
      %901 = vmatpush1.msra.mxu0 0.0
      %902 = vmatprep.subr.mxu0 0.0
      %903 = vmatpush1.msra.mxu0 0.0
      %904 = vmatprep.subr.mxu0 0.0
      %905 = vmatpush1.msra.mxu0 0.0
      %906 = vmatprep.subr.mxu0 0.0
      %907 = vmatpush1.msra.mxu0 0.0
      %908 = vmatprep.subr.mxu0 0.0
      %909 = vmatpush1.msra.mxu0 0.0
      %910 = vmatprep.subr.mxu0 0.0
      %911 = vmatpush1.msra.mxu0 0.0
      %912 = vmatprep.subr.mxu0 0.0
      %913 = vmatpush1.msra.mxu0 0.0
      %914 = vmatprep.subr.mxu0 0.0
      %915 = vmatpush1.msra.mxu0 0.0
      %916 = vmatprep.subr.mxu0 0.0
      %917 = vmatpush1.msra.mxu0 0.0
      %918 = vmatprep.subr.mxu0 0.0
      %919 = vmatpush1.msra.mxu0 0.0
      %920 = vmatprep.subr.mxu0 0.0
      %921 = vmatpush1.msra.mxu0 0.0
      %922 = vmatprep.subr.mxu0 0.0
      %923 = vmatpush1.msra.mxu0 0.0
      %924 = vmatprep.subr.mxu0 0.0
      %925 = vmatpush1.msra.mxu0 0.0
      %926 = vmatprep.subr.mxu0 0.0
      %927 = vmatpush1.msra.mxu0 0.0
      %928 = vmatprep.subr.mxu0 0.0
      %929 = vmatpush1.msra.mxu0 0.0
      %930 = vmatprep.subr.mxu0 0.0
      %931 = vmatpush1.msra.mxu0 0.0
      %932 = vmatprep.subr.mxu0 0.0
      %933 = vmatpush1.msra.mxu0 0.0
      %934 = vmatprep.subr.mxu0 0.0
      %935 = vmatpush1.msra.mxu0 0.0
      %936 = vmatprep.subr.mxu0 0.0
      %937 = vmatpush1.msra.mxu0 0.0
      %938 = vmatprep.subr.mxu0 0.0
      %939 = vmatpush1.msra.mxu0 0.0
      %940 = vmatprep.subr.mxu0 0.0
      %941 = vmatpush1.msra.mxu0 0.0
      %942 = vmatprep.subr.mxu0 0.0
      %943 = vmatpush1.msra.mxu0 0.0
      %944 = vmatprep.subr.mxu0 0.0
      %945 = vmatpush1.msra.mxu0 0.0
      %946 = vmatprep.subr.mxu0 0.0
      %947 = vmatpush1.msra.mxu0 0.0
      %948 = vmatprep.subr.mxu0 0.0
      %949 = vmatpush1.msra.mxu0 0.0
      %950 = vmatprep.subr.mxu0 0.0
      %951 = vmatpush1.msra.mxu0 0.0
      %952 = vmatprep.subr.mxu0 0.0
      %953 = vmatpush1.msra.mxu0 0.0
      %954 = vmatprep.subr.mxu0 0.0
      %955 = vmatpush1.msra.mxu0 0.0
      %956 = vmatprep.subr.mxu0 0.0
      %957 = vmatpush1.msra.mxu0 0.0
      %958 = vmatprep.subr.mxu0 0.0
      %959 = vmatpush1.msra.mxu0 0.0
      %960 = vmatprep.mubr.f32.mxu0 0.0
      %961 = vmatmul.mubr.f32.gmra.mrb[0].mxu0 %v894
      %v962 = vpop.f32.mrb[0].mxu0
      %v963 = vadd.f32 0.0, %v962
      %v964 = vpop.f32.mrb[0].mxu0
      %965 = vdwg.mxu0
      %v966 = vld [vmem:[%s9] sm:$0x7]
      %s967 = scalar_lea.vmem %s9, 4
      %v968 = vld [vmem:[%s967] sm:$0x7]
      %s969 = scalar_lea.vmem %s9, 8
      %v970 = vld [vmem:[%s969] sm:$0x7]
      %s971 = scalar_lea.vmem %s9, 12
      %v972 = vld [vmem:[%s971] sm:$0x7]
      %v973 = vld [vmem:[%s10] sm:$0x7]
      %s974 = scalar_lea.vmem %s10, 4
      %v975 = vld [vmem:[%s974] sm:$0x7]
      %v976 = vld [vmem:[%s11] sm:$0x7]
      %s977 = scalar_lea.vmem %s11, 4
      %v978 = vld [vmem:[%s977] sm:$0x7]
      %v980 = vsel %vm711, %v968, 0
      %v983 = vsel %vm715, %v892, 0
      %985 = vmatprep.subr.mxu0 0.0
      %986 = vmatpush1.msra.mxu0 %v983
      %987 = vmatprep.subr.mxu0 0.0
      %988 = vmatpush1.msra.mxu0 0.0
      %989 = vmatprep.subr.mxu0 0.0
      %990 = vmatpush1.msra.mxu0 0.0
      %991 = vmatprep.subr.mxu0 0.0
      %992 = vmatpush1.msra.mxu0 0.0
      %993 = vmatprep.subr.mxu0 0.0
      %994 = vmatpush1.msra.mxu0 0.0
      %995 = vmatprep.subr.mxu0 0.0
      %996 = vmatpush1.msra.mxu0 0.0
      %997 = vmatprep.subr.mxu0 0.0
      %998 = vmatpush1.msra.mxu0 0.0
      %999 = vmatprep.subr.mxu0 0.0
      %1000 = vmatpush1.msra.mxu0 0.0
      %1001 = vmatprep.subr.mxu0 0.0
      %1002 = vmatpush1.msra.mxu0 0.0
      %1003 = vmatprep.subr.mxu0 0.0
      %1004 = vmatpush1.msra.mxu0 0.0
      %1005 = vmatprep.subr.mxu0 0.0
      %1006 = vmatpush1.msra.mxu0 0.0
      %1007 = vmatprep.subr.mxu0 0.0
      %1008 = vmatpush1.msra.mxu0 0.0
      %1009 = vmatprep.subr.mxu0 0.0
      %1010 = vmatpush1.msra.mxu0 0.0
      %1011 = vmatprep.subr.mxu0 0.0
      %1012 = vmatpush1.msra.mxu0 0.0
      %1013 = vmatprep.subr.mxu0 0.0
      %1014 = vmatpush1.msra.mxu0 0.0
      %1015 = vmatprep.subr.mxu0 0.0
      %1016 = vmatpush1.msra.mxu0 0.0
      %1017 = vmatprep.subr.mxu0 0.0
      %1018 = vmatpush1.msra.mxu0 0.0
      %1019 = vmatprep.subr.mxu0 0.0
      %1020 = vmatpush1.msra.mxu0 0.0
      %1021 = vmatprep.subr.mxu0 0.0
      %1022 = vmatpush1.msra.mxu0 0.0
      %1023 = vmatprep.subr.mxu0 0.0
      %1024 = vmatpush1.msra.mxu0 0.0
      %1025 = vmatprep.subr.mxu0 0.0
      %1026 = vmatpush1.msra.mxu0 0.0
      %1027 = vmatprep.subr.mxu0 0.0
      %1028 = vmatpush1.msra.mxu0 0.0
      %1029 = vmatprep.subr.mxu0 0.0
      %1030 = vmatpush1.msra.mxu0 0.0
      %1031 = vmatprep.subr.mxu0 0.0
      %1032 = vmatpush1.msra.mxu0 0.0
      %1033 = vmatprep.subr.mxu0 0.0
      %1034 = vmatpush1.msra.mxu0 0.0
      %1035 = vmatprep.subr.mxu0 0.0
      %1036 = vmatpush1.msra.mxu0 0.0
      %1037 = vmatprep.subr.mxu0 0.0
      %1038 = vmatpush1.msra.mxu0 0.0
      %1039 = vmatprep.subr.mxu0 0.0
      %1040 = vmatpush1.msra.mxu0 0.0
      %1041 = vmatprep.subr.mxu0 0.0
      %1042 = vmatpush1.msra.mxu0 0.0
      %1043 = vmatprep.subr.mxu0 0.0
      %1044 = vmatpush1.msra.mxu0 0.0
      %1045 = vmatprep.subr.mxu0 0.0
      %1046 = vmatpush1.msra.mxu0 0.0
      %1047 = vmatprep.subr.mxu0 0.0
      %1048 = vmatpush1.msra.mxu0 0.0
      %1049 = vmatprep.mubr.f32.mxu0 0.0
      %1050 = vmatmul.mubr.f32.gmra.mrb[0].mxu0 %v980
      %v1051 = vpop.f32.mrb[0].mxu0
      %v1052 = vadd.f32 0.0, %v1051
      %v1053 = vpop.f32.mrb[0].mxu0
      %1054 = vdwg.mxu0
      %v1056 = vsel %vm711, %v966, 0
      %v1059 = vsel %vm715, %v963, 0
      %1061 = vmatprep.subr.mxu0 0.0
      %1062 = vmatpush1.msra.mxu0 %v1059
      %1063 = vmatprep.subr.mxu0 0.0
      %1064 = vmatpush1.msra.mxu0 0.0
      %1065 = vmatprep.subr.mxu0 0.0
      %1066 = vmatpush1.msra.mxu0 0.0
      %1067 = vmatprep.subr.mxu0 0.0
      %1068 = vmatpush1.msra.mxu0 0.0
      %1069 = vmatprep.subr.mxu0 0.0
      %1070 = vmatpush1.msra.mxu0 0.0
      %1071 = vmatprep.subr.mxu0 0.0
      %1072 = vmatpush1.msra.mxu0 0.0
      %1073 = vmatprep.subr.mxu0 0.0
      %1074 = vmatpush1.msra.mxu0 0.0
      %1075 = vmatprep.subr.mxu0 0.0
      %1076 = vmatpush1.msra.mxu0 0.0
      %1077 = vmatprep.subr.mxu0 0.0
      %1078 = vmatpush1.msra.mxu0 0.0
      %1079 = vmatprep.subr.mxu0 0.0
      %1080 = vmatpush1.msra.mxu0 0.0
      %1081 = vmatprep.subr.mxu0 0.0
      %1082 = vmatpush1.msra.mxu0 0.0
      %1083 = vmatprep.subr.mxu0 0.0
      %1084 = vmatpush1.msra.mxu0 0.0
      %1085 = vmatprep.subr.mxu0 0.0
      %1086 = vmatpush1.msra.mxu0 0.0
      %1087 = vmatprep.subr.mxu0 0.0
      %1088 = vmatpush1.msra.mxu0 0.0
      %1089 = vmatprep.subr.mxu0 0.0
      %1090 = vmatpush1.msra.mxu0 0.0
      %1091 = vmatprep.subr.mxu0 0.0
      %1092 = vmatpush1.msra.mxu0 0.0
      %1093 = vmatprep.subr.mxu0 0.0
      %1094 = vmatpush1.msra.mxu0 0.0
      %1095 = vmatprep.subr.mxu0 0.0
      %1096 = vmatpush1.msra.mxu0 0.0
      %1097 = vmatprep.subr.mxu0 0.0
      %1098 = vmatpush1.msra.mxu0 0.0
      %1099 = vmatprep.subr.mxu0 0.0
      %1100 = vmatpush1.msra.mxu0 0.0
      %1101 = vmatprep.subr.mxu0 0.0
      %1102 = vmatpush1.msra.mxu0 0.0
      %1103 = vmatprep.subr.mxu0 0.0
      %1104 = vmatpush1.msra.mxu0 0.0
      %1105 = vmatprep.subr.mxu0 0.0
      %1106 = vmatpush1.msra.mxu0 0.0
      %1107 = vmatprep.subr.mxu0 0.0
      %1108 = vmatpush1.msra.mxu0 0.0
      %1109 = vmatprep.subr.mxu0 0.0
      %1110 = vmatpush1.msra.mxu0 0.0
      %1111 = vmatprep.subr.mxu0 0.0
      %1112 = vmatpush1.msra.mxu0 0.0
      %1113 = vmatprep.subr.mxu0 0.0
      %1114 = vmatpush1.msra.mxu0 0.0
      %1115 = vmatprep.subr.mxu0 0.0
      %1116 = vmatpush1.msra.mxu0 0.0
      %1117 = vmatprep.subr.mxu0 0.0
      %1118 = vmatpush1.msra.mxu0 0.0
      %1119 = vmatprep.subr.mxu0 0.0
      %1120 = vmatpush1.msra.mxu0 0.0
      %1121 = vmatprep.subr.mxu0 0.0
      %1122 = vmatpush1.msra.mxu0 0.0
      %1123 = vmatprep.subr.mxu0 0.0
      %1124 = vmatpush1.msra.mxu0 0.0
      %1125 = vmatprep.mubr.f32.mxu0 0.0
      %1126 = vmatmul.mubr.f32.gmra.mrb[0].mxu0 %v1056
      %v1127 = vpop.f32.mrb[0].mxu0
      %v1128 = vadd.f32 %v1052, %v1127
      %v1129 = vpop.f32.mrb[0].mxu0
      %1130 = vdwg.mxu0
      %v1132 = vsel %vm711, %v972, 0
      %1134 = vmatprep.subr.mxu0 0.0
      %1135 = vmatpush1.msra.mxu0 %v983
      %1136 = vmatprep.subr.mxu0 0.0
      %1137 = vmatpush1.msra.mxu0 0.0
      %1138 = vmatprep.subr.mxu0 0.0
      %1139 = vmatpush1.msra.mxu0 0.0
      %1140 = vmatprep.subr.mxu0 0.0
      %1141 = vmatpush1.msra.mxu0 0.0
      %1142 = vmatprep.subr.mxu0 0.0
      %1143 = vmatpush1.msra.mxu0 0.0
      %1144 = vmatprep.subr.mxu0 0.0
      %1145 = vmatpush1.msra.mxu0 0.0
      %1146 = vmatprep.subr.mxu0 0.0
      %1147 = vmatpush1.msra.mxu0 0.0
      %1148 = vmatprep.subr.mxu0 0.0
      %1149 = vmatpush1.msra.mxu0 0.0
      %1150 = vmatprep.subr.mxu0 0.0
      %1151 = vmatpush1.msra.mxu0 0.0
      %1152 = vmatprep.subr.mxu0 0.0
      %1153 = vmatpush1.msra.mxu0 0.0
      %1154 = vmatprep.subr.mxu0 0.0
      %1155 = vmatpush1.msra.mxu0 0.0
      %1156 = vmatprep.subr.mxu0 0.0
      %1157 = vmatpush1.msra.mxu0 0.0
      %1158 = vmatprep.subr.mxu0 0.0
      %1159 = vmatpush1.msra.mxu0 0.0
      %1160 = vmatprep.subr.mxu0 0.0
      %1161 = vmatpush1.msra.mxu0 0.0
      %1162 = vmatprep.subr.mxu0 0.0
      %1163 = vmatpush1.msra.mxu0 0.0
      %1164 = vmatprep.subr.mxu0 0.0
      %1165 = vmatpush1.msra.mxu0 0.0
      %1166 = vmatprep.subr.mxu0 0.0
      %1167 = vmatpush1.msra.mxu0 0.0
      %1168 = vmatprep.subr.mxu0 0.0
      %1169 = vmatpush1.msra.mxu0 0.0
      %1170 = vmatprep.subr.mxu0 0.0
      %1171 = vmatpush1.msra.mxu0 0.0
      %1172 = vmatprep.subr.mxu0 0.0
      %1173 = vmatpush1.msra.mxu0 0.0
      %1174 = vmatprep.subr.mxu0 0.0
      %1175 = vmatpush1.msra.mxu0 0.0
      %1176 = vmatprep.subr.mxu0 0.0
      %1177 = vmatpush1.msra.mxu0 0.0
      %1178 = vmatprep.subr.mxu0 0.0
      %1179 = vmatpush1.msra.mxu0 0.0
      %1180 = vmatprep.subr.mxu0 0.0
      %1181 = vmatpush1.msra.mxu0 0.0
      %1182 = vmatprep.subr.mxu0 0.0
      %1183 = vmatpush1.msra.mxu0 0.0
      %1184 = vmatprep.subr.mxu0 0.0
      %1185 = vmatpush1.msra.mxu0 0.0
      %1186 = vmatprep.subr.mxu0 0.0
      %1187 = vmatpush1.msra.mxu0 0.0
      %1188 = vmatprep.subr.mxu0 0.0
      %1189 = vmatpush1.msra.mxu0 0.0
      %1190 = vmatprep.subr.mxu0 0.0
      %1191 = vmatpush1.msra.mxu0 0.0
      %1192 = vmatprep.subr.mxu0 0.0
      %1193 = vmatpush1.msra.mxu0 0.0
      %1194 = vmatprep.subr.mxu0 0.0
      %1195 = vmatpush1.msra.mxu0 0.0
      %1196 = vmatprep.subr.mxu0 0.0
      %1197 = vmatpush1.msra.mxu0 0.0
      %1198 = vmatprep.mubr.f32.mxu0 0.0
      %1199 = vmatmul.mubr.f32.gmra.mrb[0].mxu0 %v1132
      %v1200 = vpop.f32.mrb[0].mxu0
      %v1201 = vadd.f32 0.0, %v1200
      %v1202 = vpop.f32.mrb[0].mxu0
      %1203 = vdwg.mxu0
      %v1205 = vsel %vm711, %v970, 0
      %1207 = vmatprep.subr.mxu0 0.0
      %1208 = vmatpush1.msra.mxu0 %v1059
      %1209 = vmatprep.subr.mxu0 0.0
      %1210 = vmatpush1.msra.mxu0 0.0
      %1211 = vmatprep.subr.mxu0 0.0
      %1212 = vmatpush1.msra.mxu0 0.0
      %1213 = vmatprep.subr.mxu0 0.0
      %1214 = vmatpush1.msra.mxu0 0.0
      %1215 = vmatprep.subr.mxu0 0.0
      %1216 = vmatpush1.msra.mxu0 0.0
      %1217 = vmatprep.subr.mxu0 0.0
      %1218 = vmatpush1.msra.mxu0 0.0
      %1219 = vmatprep.subr.mxu0 0.0
      %1220 = vmatpush1.msra.mxu0 0.0
      %1221 = vmatprep.subr.mxu0 0.0
      %1222 = vmatpush1.msra.mxu0 0.0
      %1223 = vmatprep.subr.mxu0 0.0
      %1224 = vmatpush1.msra.mxu0 0.0
      %1225 = vmatprep.subr.mxu0 0.0
      %1226 = vmatpush1.msra.mxu0 0.0
      %1227 = vmatprep.subr.mxu0 0.0
      %1228 = vmatpush1.msra.mxu0 0.0
      %1229 = vmatprep.subr.mxu0 0.0
      %1230 = vmatpush1.msra.mxu0 0.0
      %1231 = vmatprep.subr.mxu0 0.0
      %1232 = vmatpush1.msra.mxu0 0.0
      %1233 = vmatprep.subr.mxu0 0.0
      %1234 = vmatpush1.msra.mxu0 0.0
      %1235 = vmatprep.subr.mxu0 0.0
      %1236 = vmatpush1.msra.mxu0 0.0
      %1237 = vmatprep.subr.mxu0 0.0
      %1238 = vmatpush1.msra.mxu0 0.0
      %1239 = vmatprep.subr.mxu0 0.0
      %1240 = vmatpush1.msra.mxu0 0.0
      %1241 = vmatprep.subr.mxu0 0.0
      %1242 = vmatpush1.msra.mxu0 0.0
      %1243 = vmatprep.subr.mxu0 0.0
      %1244 = vmatpush1.msra.mxu0 0.0
      %1245 = vmatprep.subr.mxu0 0.0
      %1246 = vmatpush1.msra.mxu0 0.0
      %1247 = vmatprep.subr.mxu0 0.0
      %1248 = vmatpush1.msra.mxu0 0.0
      %1249 = vmatprep.subr.mxu0 0.0
      %1250 = vmatpush1.msra.mxu0 0.0
      %1251 = vmatprep.subr.mxu0 0.0
      %1252 = vmatpush1.msra.mxu0 0.0
      %1253 = vmatprep.subr.mxu0 0.0
      %1254 = vmatpush1.msra.mxu0 0.0
      %1255 = vmatprep.subr.mxu0 0.0
      %1256 = vmatpush1.msra.mxu0 0.0
      %1257 = vmatprep.subr.mxu0 0.0
      %1258 = vmatpush1.msra.mxu0 0.0
      %1259 = vmatprep.subr.mxu0 0.0
      %1260 = vmatpush1.msra.mxu0 0.0
      %1261 = vmatprep.subr.mxu0 0.0
      %1262 = vmatpush1.msra.mxu0 0.0
      %1263 = vmatprep.subr.mxu0 0.0
      %1264 = vmatpush1.msra.mxu0 0.0
      %1265 = vmatprep.subr.mxu0 0.0
      %1266 = vmatpush1.msra.mxu0 0.0
      %1267 = vmatprep.subr.mxu0 0.0
      %1268 = vmatpush1.msra.mxu0 0.0
      %1269 = vmatprep.subr.mxu0 0.0
      %1270 = vmatpush1.msra.mxu0 0.0
      %1271 = vmatprep.mubr.f32.mxu0 0.0
      %1272 = vmatmul.mubr.f32.gmra.mrb[0].mxu0 %v1205
      %v1273 = vpop.f32.mrb[0].mxu0
      %v1274 = vadd.f32 %v1201, %v1273
      %v1275 = vpop.f32.mrb[0].mxu0
      %1276 = vdwg.mxu0
      %1278 = vrot.lane.b32.xlu0 %v1128, 112
      %v1279 = vpop.permute.xlu0 %1278
      %v1281 = vmax.f32 %v1128, %v1279
      %1283 = vrot.lane.b32.xlu0 %v1274, 112
      %v1284 = vpop.permute.xlu0 %1283
      %v1286 = vmax.f32 %v1274, %v1284
      %1287 = vrot.lane.b32.xlu0 %v1128, 96
      %v1288 = vpop.permute.xlu0 %1287
      %v1290 = vmax.f32 %v1281, %v1288
      %1291 = vrot.lane.b32.xlu0 %v1274, 96
      %v1292 = vpop.permute.xlu0 %1291
      %v1294 = vmax.f32 %v1286, %v1292
      %1295 = vrot.lane.b32.xlu0 %v1128, 80
      %v1296 = vpop.permute.xlu0 %1295
      %v1298 = vmax.f32 %v1290, %v1296
      %1299 = vrot.lane.b32.xlu0 %v1274, 80
      %v1300 = vpop.permute.xlu0 %1299
      %v1302 = vmax.f32 %v1294, %v1300
      %1303 = vrot.lane.b32.xlu0 %v1128, 64
      %v1304 = vpop.permute.xlu0 %1303
      %v1306 = vmax.f32 %v1298, %v1304
      %1307 = vrot.lane.b32.xlu0 %v1274, 64
      %v1308 = vpop.permute.xlu0 %1307
      %v1310 = vmax.f32 %v1302, %v1308
      %1311 = vrot.lane.b32.xlu0 %v1128, 48
      %v1312 = vpop.permute.xlu0 %1311
      %v1314 = vmax.f32 %v1306, %v1312
      %1315 = vrot.lane.b32.xlu0 %v1274, 48
      %v1316 = vpop.permute.xlu0 %1315
      %v1318 = vmax.f32 %v1310, %v1316
      %1319 = vrot.lane.b32.xlu0 %v1128, 32
      %v1320 = vpop.permute.xlu0 %1319
      %v1322 = vmax.f32 %v1314, %v1320
      %1323 = vrot.lane.b32.xlu0 %v1274, 32
      %v1324 = vpop.permute.xlu0 %1323
      %v1326 = vmax.f32 %v1318, %v1324
      %1327 = vrot.lane.b32.xlu0 %v1128, 16
      %v1328 = vpop.permute.xlu0 %1327
      %v1330 = vmax.f32 %v1322, %v1328
      %1331 = vrot.lane.b32.xlu0 %v1274, 16
      %v1332 = vpop.permute.xlu0 %1331
      %v1334 = vmax.f32 %v1326, %v1332
      %v1335 = vsub.f32 %v1128, %v1330
      %v1336 = vmul.f32 %v1335, 1.442695
      %v1337 = vpow.pop %v1336
      %v1338 = vsub.f32 %v1274, %v1334
      %v1339 = vmul.f32 %v1338, 1.442695
      %v1340 = vpow.pop %v1339
      %v1341 = vadd.f32 %v1337, 0.0
      %v1342 = vadd.f32 %v1340, 0.0
      %v1343 = vmul.f32 %v963, %v1337
      %v1344 = vadd.f32 %v1343, 0.0
      %v1345 = vmul.f32 %v892, %v1340
      %v1346 = vadd.f32 %v1345, 0.0
      %1348 = vrot.lane.b32.xlu0 %v1330, 16
      %v1349 = vpop.permute.xlu0 %1348
      %v1351 = vsub.f32 %v1128, %v1349
      %v1352 = vmul.f32 %v1351, 1.442695
      %v1353 = vpow.pop %v1352
      %1355 = vrot.lane.b32.xlu0 %v1334, 16
      %v1356 = vpop.permute.xlu0 %1355
      %v1358 = vsub.f32 %v1274, %v1356
      %v1359 = vmul.f32 %v1358, 1.442695
      %v1360 = vpow.pop %v1359
      %1362 = vrot.lane.b32.xlu0 %v1353, 112
      %v1363 = vpop.permute.xlu0 %1362
      %v1365 = vadd.f32 %v1341, %v1363
      %1367 = vrot.lane.b32.xlu0 %v1360, 112
      %v1368 = vpop.permute.xlu0 %1367
      %v1370 = vadd.f32 %v1342, %v1368
      %v1371 = vmul.f32 %v963, %v1353
      %1373 = vrot.lane.b32.xlu0 %v1371, 112
      %v1374 = vpop.permute.xlu0 %1373
      %v1376 = vadd.f32 %v1344, %v1374
      %v1377 = vmul.f32 %v892, %v1360
      %1379 = vrot.lane.b32.xlu0 %v1377, 112
      %v1380 = vpop.permute.xlu0 %1379
      %v1382 = vadd.f32 %v1346, %v1380
      %1383 = vrot.lane.b32.xlu0 %v1330, 32
      %v1384 = vpop.permute.xlu0 %1383
      %v1386 = vsub.f32 %v1128, %v1384
      %v1387 = vmul.f32 %v1386, 1.442695
      %v1388 = vpow.pop %v1387
      %1389 = vrot.lane.b32.xlu0 %v1334, 32
      %v1390 = vpop.permute.xlu0 %1389
      %v1392 = vsub.f32 %v1274, %v1390
      %v1393 = vmul.f32 %v1392, 1.442695
      %v1394 = vpow.pop %v1393
      %1396 = vrot.lane.b32.xlu0 %v1388, 96
      %v1397 = vpop.permute.xlu0 %1396
      %v1399 = vadd.f32 %v1365, %v1397
      %1401 = vrot.lane.b32.xlu0 %v1394, 96
      %v1402 = vpop.permute.xlu0 %1401
      %v1404 = vadd.f32 %v1370, %v1402
      %v1405 = vmul.f32 %v963, %v1388
      %1407 = vrot.lane.b32.xlu0 %v1405, 96
      %v1408 = vpop.permute.xlu0 %1407
      %v1410 = vadd.f32 %v1376, %v1408
      %v1411 = vmul.f32 %v892, %v1394
      %1413 = vrot.lane.b32.xlu0 %v1411, 96
      %v1414 = vpop.permute.xlu0 %1413
      %v1416 = vadd.f32 %v1382, %v1414
      %1417 = vrot.lane.b32.xlu0 %v1330, 48
      %v1418 = vpop.permute.xlu0 %1417
      %v1420 = vsub.f32 %v1128, %v1418
      %v1421 = vmul.f32 %v1420, 1.442695
      %v1422 = vpow.pop %v1421
      %1423 = vrot.lane.b32.xlu0 %v1334, 48
      %v1424 = vpop.permute.xlu0 %1423
      %v1426 = vsub.f32 %v1274, %v1424
      %v1427 = vmul.f32 %v1426, 1.442695
      %v1428 = vpow.pop %v1427
      %1430 = vrot.lane.b32.xlu0 %v1422, 80
      %v1431 = vpop.permute.xlu0 %1430
      %v1433 = vadd.f32 %v1399, %v1431
      %1435 = vrot.lane.b32.xlu0 %v1428, 80
      %v1436 = vpop.permute.xlu0 %1435
      %v1438 = vadd.f32 %v1404, %v1436
      %v1439 = vmul.f32 %v963, %v1422
      %1441 = vrot.lane.b32.xlu0 %v1439, 80
      %v1442 = vpop.permute.xlu0 %1441
      %v1444 = vadd.f32 %v1410, %v1442
      %v1445 = vmul.f32 %v892, %v1428
      %1447 = vrot.lane.b32.xlu0 %v1445, 80
      %v1448 = vpop.permute.xlu0 %1447
      %v1450 = vadd.f32 %v1416, %v1448
      %1451 = vrot.lane.b32.xlu0 %v1330, 64
      %v1452 = vpop.permute.xlu0 %1451
      %v1454 = vsub.f32 %v1128, %v1452
      %v1455 = vmul.f32 %v1454, 1.442695
      %v1456 = vpow.pop %v1455
      %1457 = vrot.lane.b32.xlu0 %v1334, 64
      %v1458 = vpop.permute.xlu0 %1457
      %v1460 = vsub.f32 %v1274, %v1458
      %v1461 = vmul.f32 %v1460, 1.442695
      %v1462 = vpow.pop %v1461
      %1464 = vrot.lane.b32.xlu0 %v1456, 64
      %v1465 = vpop.permute.xlu0 %1464
      %v1467 = vadd.f32 %v1433, %v1465
      %1469 = vrot.lane.b32.xlu0 %v1462, 64
      %v1470 = vpop.permute.xlu0 %1469
      %v1472 = vadd.f32 %v1438, %v1470
      %v1473 = vmul.f32 %v963, %v1456
      %1475 = vrot.lane.b32.xlu0 %v1473, 64
      %v1476 = vpop.permute.xlu0 %1475
      %v1478 = vadd.f32 %v1444, %v1476
      %v1479 = vmul.f32 %v892, %v1462
      %1481 = vrot.lane.b32.xlu0 %v1479, 64
      %v1482 = vpop.permute.xlu0 %1481
      %v1484 = vadd.f32 %v1450, %v1482
      %1485 = vrot.lane.b32.xlu0 %v1330, 80
      %v1486 = vpop.permute.xlu0 %1485
      %v1488 = vsub.f32 %v1128, %v1486
      %v1489 = vmul.f32 %v1488, 1.442695
      %v1490 = vpow.pop %v1489
      %1491 = vrot.lane.b32.xlu0 %v1334, 80
      %v1492 = vpop.permute.xlu0 %1491
      %v1494 = vsub.f32 %v1274, %v1492
      %v1495 = vmul.f32 %v1494, 1.442695
      %v1496 = vpow.pop %v1495
      %1498 = vrot.lane.b32.xlu0 %v1490, 48
      %v1499 = vpop.permute.xlu0 %1498
      %v1501 = vadd.f32 %v1467, %v1499
      %1503 = vrot.lane.b32.xlu0 %v1496, 48
      %v1504 = vpop.permute.xlu0 %1503
      %v1506 = vadd.f32 %v1472, %v1504
      %v1507 = vmul.f32 %v963, %v1490
      %1509 = vrot.lane.b32.xlu0 %v1507, 48
      %v1510 = vpop.permute.xlu0 %1509
      %v1512 = vadd.f32 %v1478, %v1510
      %v1513 = vmul.f32 %v892, %v1496
      %1515 = vrot.lane.b32.xlu0 %v1513, 48
      %v1516 = vpop.permute.xlu0 %1515
      %v1518 = vadd.f32 %v1484, %v1516
      %1519 = vrot.lane.b32.xlu0 %v1330, 96
      %v1520 = vpop.permute.xlu0 %1519
      %v1522 = vsub.f32 %v1128, %v1520
      %v1523 = vmul.f32 %v1522, 1.442695
      %v1524 = vpow.pop %v1523
      %1525 = vrot.lane.b32.xlu0 %v1334, 96
      %v1526 = vpop.permute.xlu0 %1525
      %v1528 = vsub.f32 %v1274, %v1526
      %v1529 = vmul.f32 %v1528, 1.442695
      %v1530 = vpow.pop %v1529
      %1532 = vrot.lane.b32.xlu0 %v1524, 32
      %v1533 = vpop.permute.xlu0 %1532
      %v1535 = vadd.f32 %v1501, %v1533
      %1537 = vrot.lane.b32.xlu0 %v1530, 32
      %v1538 = vpop.permute.xlu0 %1537
      %v1540 = vadd.f32 %v1506, %v1538
      %v1541 = vmul.f32 %v963, %v1524
      %1543 = vrot.lane.b32.xlu0 %v1541, 32
      %v1544 = vpop.permute.xlu0 %1543
      %v1546 = vadd.f32 %v1512, %v1544
      %v1547 = vmul.f32 %v892, %v1530
      %1549 = vrot.lane.b32.xlu0 %v1547, 32
      %v1550 = vpop.permute.xlu0 %1549
      %v1552 = vadd.f32 %v1518, %v1550
      %1553 = vrot.lane.b32.xlu0 %v1330, 112
      %v1554 = vpop.permute.xlu0 %1553
      %v1556 = vsub.f32 %v1128, %v1554
      %v1557 = vmul.f32 %v1556, 1.442695
      %v1558 = vpow.pop %v1557
      %1559 = vrot.lane.b32.xlu0 %v1334, 112
      %v1560 = vpop.permute.xlu0 %1559
      %v1562 = vsub.f32 %v1274, %v1560
      %v1563 = vmul.f32 %v1562, 1.442695
      %v1564 = vpow.pop %v1563
      %1566 = vrot.lane.b32.xlu0 %v1558, 16
      %v1567 = vpop.permute.xlu0 %1566
      %v1569 = vadd.f32 %v1535, %v1567
      %1571 = vrot.lane.b32.xlu0 %v1564, 16
      %v1572 = vpop.permute.xlu0 %1571
      %v1574 = vadd.f32 %v1540, %v1572
      %v1575 = vmul.f32 %v963, %v1558
      %1577 = vrot.lane.b32.xlu0 %v1575, 16
      %v1578 = vpop.permute.xlu0 %1577
      %v1580 = vadd.f32 %v1546, %v1578
      %v1581 = vmul.f32 %v892, %v1564
      %1583 = vrot.lane.b32.xlu0 %v1581, 16
      %v1584 = vpop.permute.xlu0 %1583
      %v1586 = vadd.f32 %v1552, %v1584
      %v1587 = vrcp.pop %v1569
      %v1588 = vmul.f32 %v1580, %v1587
      %v1589 = vrcp.pop %v1574
      %v1590 = vmul.f32 %v1586, %v1589
      %v1592 = vsel %vm711, %v975, 0
      %v1595 = vsel %vm715, %v1590, 0
      %1597 = vmatprep.subr.mxu0 0.0
      %1598 = vmatpush1.msra.mxu0 %v1595
      %1599 = vmatprep.subr.mxu0 0.0
      %1600 = vmatpush1.msra.mxu0 0.0
      %1601 = vmatprep.subr.mxu0 0.0
      %1602 = vmatpush1.msra.mxu0 0.0
      %1603 = vmatprep.subr.mxu0 0.0
      %1604 = vmatpush1.msra.mxu0 0.0
      %1605 = vmatprep.subr.mxu0 0.0
      %1606 = vmatpush1.msra.mxu0 0.0
      %1607 = vmatprep.subr.mxu0 0.0
      %1608 = vmatpush1.msra.mxu0 0.0
      %1609 = vmatprep.subr.mxu0 0.0
      %1610 = vmatpush1.msra.mxu0 0.0
      %1611 = vmatprep.subr.mxu0 0.0
      %1612 = vmatpush1.msra.mxu0 0.0
      %1613 = vmatprep.subr.mxu0 0.0
      %1614 = vmatpush1.msra.mxu0 0.0
      %1615 = vmatprep.subr.mxu0 0.0
      %1616 = vmatpush1.msra.mxu0 0.0
      %1617 = vmatprep.subr.mxu0 0.0
      %1618 = vmatpush1.msra.mxu0 0.0
      %1619 = vmatprep.subr.mxu0 0.0
      %1620 = vmatpush1.msra.mxu0 0.0
      %1621 = vmatprep.subr.mxu0 0.0
      %1622 = vmatpush1.msra.mxu0 0.0
      %1623 = vmatprep.subr.mxu0 0.0
      %1624 = vmatpush1.msra.mxu0 0.0
      %1625 = vmatprep.subr.mxu0 0.0
      %1626 = vmatpush1.msra.mxu0 0.0
      %1627 = vmatprep.subr.mxu0 0.0
      %1628 = vmatpush1.msra.mxu0 0.0
      %1629 = vmatprep.subr.mxu0 0.0
      %1630 = vmatpush1.msra.mxu0 0.0
      %1631 = vmatprep.subr.mxu0 0.0
      %1632 = vmatpush1.msra.mxu0 0.0
      %1633 = vmatprep.subr.mxu0 0.0
      %1634 = vmatpush1.msra.mxu0 0.0
      %1635 = vmatprep.subr.mxu0 0.0
      %1636 = vmatpush1.msra.mxu0 0.0
      %1637 = vmatprep.subr.mxu0 0.0
      %1638 = vmatpush1.msra.mxu0 0.0
      %1639 = vmatprep.subr.mxu0 0.0
      %1640 = vmatpush1.msra.mxu0 0.0
      %1641 = vmatprep.subr.mxu0 0.0
      %1642 = vmatpush1.msra.mxu0 0.0
      %1643 = vmatprep.subr.mxu0 0.0
      %1644 = vmatpush1.msra.mxu0 0.0
      %1645 = vmatprep.subr.mxu0 0.0
      %1646 = vmatpush1.msra.mxu0 0.0
      %1647 = vmatprep.subr.mxu0 0.0
      %1648 = vmatpush1.msra.mxu0 0.0
      %1649 = vmatprep.subr.mxu0 0.0
      %1650 = vmatpush1.msra.mxu0 0.0
      %1651 = vmatprep.subr.mxu0 0.0
      %1652 = vmatpush1.msra.mxu0 0.0
      %1653 = vmatprep.subr.mxu0 0.0
      %1654 = vmatpush1.msra.mxu0 0.0
      %1655 = vmatprep.subr.mxu0 0.0
      %1656 = vmatpush1.msra.mxu0 0.0
      %1657 = vmatprep.subr.mxu0 0.0
      %1658 = vmatpush1.msra.mxu0 0.0
      %1659 = vmatprep.subr.mxu0 0.0
      %1660 = vmatpush1.msra.mxu0 0.0
      %1661 = vmatprep.mubr.f32.mxu0 0.0
      %1662 = vmatmul.mubr.f32.gmra.mrb[0].mxu0 %v1592
      %v1663 = vpop.f32.mrb[0].mxu0
      %v1664 = vadd.f32 0.0, %v1663
      %v1665 = vpop.f32.mrb[0].mxu0
      %1666 = vdwg.mxu0
      %v1668 = vsel %vm711, %v973, 0
      %v1671 = vsel %vm715, %v1588, 0
      %1673 = vmatprep.subr.mxu0 0.0
      %1674 = vmatpush1.msra.mxu0 %v1671
      %1675 = vmatprep.subr.mxu0 0.0
      %1676 = vmatpush1.msra.mxu0 0.0
      %1677 = vmatprep.subr.mxu0 0.0
      %1678 = vmatpush1.msra.mxu0 0.0
      %1679 = vmatprep.subr.mxu0 0.0
      %1680 = vmatpush1.msra.mxu0 0.0
      %1681 = vmatprep.subr.mxu0 0.0
      %1682 = vmatpush1.msra.mxu0 0.0
      %1683 = vmatprep.subr.mxu0 0.0
      %1684 = vmatpush1.msra.mxu0 0.0
      %1685 = vmatprep.subr.mxu0 0.0
      %1686 = vmatpush1.msra.mxu0 0.0
      %1687 = vmatprep.subr.mxu0 0.0
      %1688 = vmatpush1.msra.mxu0 0.0
      %1689 = vmatprep.subr.mxu0 0.0
      %1690 = vmatpush1.msra.mxu0 0.0
      %1691 = vmatprep.subr.mxu0 0.0
      %1692 = vmatpush1.msra.mxu0 0.0
      %1693 = vmatprep.subr.mxu0 0.0
      %1694 = vmatpush1.msra.mxu0 0.0
      %1695 = vmatprep.subr.mxu0 0.0
      %1696 = vmatpush1.msra.mxu0 0.0
      %1697 = vmatprep.subr.mxu0 0.0
      %1698 = vmatpush1.msra.mxu0 0.0
      %1699 = vmatprep.subr.mxu0 0.0
      %1700 = vmatpush1.msra.mxu0 0.0
      %1701 = vmatprep.subr.mxu0 0.0
      %1702 = vmatpush1.msra.mxu0 0.0
      %1703 = vmatprep.subr.mxu0 0.0
      %1704 = vmatpush1.msra.mxu0 0.0
      %1705 = vmatprep.subr.mxu0 0.0
      %1706 = vmatpush1.msra.mxu0 0.0
      %1707 = vmatprep.subr.mxu0 0.0
      %1708 = vmatpush1.msra.mxu0 0.0
      %1709 = vmatprep.subr.mxu0 0.0
      %1710 = vmatpush1.msra.mxu0 0.0
      %1711 = vmatprep.subr.mxu0 0.0
      %1712 = vmatpush1.msra.mxu0 0.0
      %1713 = vmatprep.subr.mxu0 0.0
      %1714 = vmatpush1.msra.mxu0 0.0
      %1715 = vmatprep.subr.mxu0 0.0
      %1716 = vmatpush1.msra.mxu0 0.0
      %1717 = vmatprep.subr.mxu0 0.0
      %1718 = vmatpush1.msra.mxu0 0.0
      %1719 = vmatprep.subr.mxu0 0.0
      %1720 = vmatpush1.msra.mxu0 0.0
      %1721 = vmatprep.subr.mxu0 0.0
      %1722 = vmatpush1.msra.mxu0 0.0
      %1723 = vmatprep.subr.mxu0 0.0
      %1724 = vmatpush1.msra.mxu0 0.0
      %1725 = vmatprep.subr.mxu0 0.0
      %1726 = vmatpush1.msra.mxu0 0.0
      %1727 = vmatprep.subr.mxu0 0.0
      %1728 = vmatpush1.msra.mxu0 0.0
      %1729 = vmatprep.subr.mxu0 0.0
      %1730 = vmatpush1.msra.mxu0 0.0
      %1731 = vmatprep.subr.mxu0 0.0
      %1732 = vmatpush1.msra.mxu0 0.0
      %1733 = vmatprep.subr.mxu0 0.0
      %1734 = vmatpush1.msra.mxu0 0.0
      %1735 = vmatprep.subr.mxu0 0.0
      %1736 = vmatpush1.msra.mxu0 0.0
      %1737 = vmatprep.mubr.f32.mxu0 0.0
      %1738 = vmatmul.mubr.f32.gmra.mrb[0].mxu0 %v1668
      %v1739 = vpop.f32.mrb[0].mxu0
      %v1740 = vadd.f32 %v1664, %v1739
      %v1741 = vpop.f32.mrb[0].mxu0
      %1742 = vdwg.mxu0
      %1744 = vset.pattern.permute.xlu0 0
      %1745 = vperm.xlu0 %1744, %v976
      %v1746 = vpop.permute.xlu0 %1745
      %v1748 = vmul.f32 %v1740, %v1746
      %1750 = vset.pattern.permute.xlu0 0
      %1751 = vperm.xlu0 %1750, %v978
      %v1752 = vpop.permute.xlu0 %1751
      %v1754 = vadd.f32 %v1748, %v1752
      %v1755 = vmax.f32 %v1754, 0.0
      %v1756 = vld [vmem:[%s7] sm:$0x7]
      %v1758 = vsel %vm711, %v1756, 0
      %1760 = vmatprep.subr.mxu0 0.0
      %1761 = vmatpush1.msra.mxu0 %v983
      %1762 = vmatprep.subr.mxu0 0.0
      %1763 = vmatpush1.msra.mxu0 0.0
      %1764 = vmatprep.subr.mxu0 0.0
      %1765 = vmatpush1.msra.mxu0 0.0
      %1766 = vmatprep.subr.mxu0 0.0
      %1767 = vmatpush1.msra.mxu0 0.0
      %1768 = vmatprep.subr.mxu0 0.0
      %1769 = vmatpush1.msra.mxu0 0.0
      %1770 = vmatprep.subr.mxu0 0.0
      %1771 = vmatpush1.msra.mxu0 0.0
      %1772 = vmatprep.subr.mxu0 0.0
      %1773 = vmatpush1.msra.mxu0 0.0
      %1774 = vmatprep.subr.mxu0 0.0
      %1775 = vmatpush1.msra.mxu0 0.0
      %1776 = vmatprep.subr.mxu0 0.0
      %1777 = vmatpush1.msra.mxu0 0.0
      %1778 = vmatprep.subr.mxu0 0.0
      %1779 = vmatpush1.msra.mxu0 0.0
      %1780 = vmatprep.subr.mxu0 0.0
      %1781 = vmatpush1.msra.mxu0 0.0
      %1782 = vmatprep.subr.mxu0 0.0
      %1783 = vmatpush1.msra.mxu0 0.0
      %1784 = vmatprep.subr.mxu0 0.0
      %1785 = vmatpush1.msra.mxu0 0.0
      %1786 = vmatprep.subr.mxu0 0.0
      %1787 = vmatpush1.msra.mxu0 0.0
      %1788 = vmatprep.subr.mxu0 0.0
      %1789 = vmatpush1.msra.mxu0 0.0
      %1790 = vmatprep.subr.mxu0 0.0
      %1791 = vmatpush1.msra.mxu0 0.0
      %1792 = vmatprep.subr.mxu0 0.0
      %1793 = vmatpush1.msra.mxu0 0.0
      %1794 = vmatprep.subr.mxu0 0.0
      %1795 = vmatpush1.msra.mxu0 0.0
      %1796 = vmatprep.subr.mxu0 0.0
      %1797 = vmatpush1.msra.mxu0 0.0
      %1798 = vmatprep.subr.mxu0 0.0
      %1799 = vmatpush1.msra.mxu0 0.0
      %1800 = vmatprep.subr.mxu0 0.0
      %1801 = vmatpush1.msra.mxu0 0.0
      %1802 = vmatprep.subr.mxu0 0.0
      %1803 = vmatpush1.msra.mxu0 0.0
      %1804 = vmatprep.subr.mxu0 0.0
      %1805 = vmatpush1.msra.mxu0 0.0
      %1806 = vmatprep.subr.mxu0 0.0
      %1807 = vmatpush1.msra.mxu0 0.0
      %1808 = vmatprep.subr.mxu0 0.0
      %1809 = vmatpush1.msra.mxu0 0.0
      %1810 = vmatprep.subr.mxu0 0.0
      %1811 = vmatpush1.msra.mxu0 0.0
      %1812 = vmatprep.subr.mxu0 0.0
      %1813 = vmatpush1.msra.mxu0 0.0
      %1814 = vmatprep.subr.mxu0 0.0
      %1815 = vmatpush1.msra.mxu0 0.0
      %1816 = vmatprep.subr.mxu0 0.0
      %1817 = vmatpush1.msra.mxu0 0.0
      %1818 = vmatprep.subr.mxu0 0.0
      %1819 = vmatpush1.msra.mxu0 0.0
      %1820 = vmatprep.subr.mxu0 0.0
      %1821 = vmatpush1.msra.mxu0 0.0
      %1822 = vmatprep.subr.mxu0 0.0
      %1823 = vmatpush1.msra.mxu0 0.0
      %1824 = vmatprep.mubr.f32.mxu0 0.0
      %1825 = vmatmul.mubr.f32.gmra.mrb[0].mxu0 %v1758
      %v1826 = vpop.f32.mrb[0].mxu0
      %v1827 = vadd.f32 0.0, %v1826
      %v1828 = vpop.f32.mrb[0].mxu0
      %1829 = vdwg.mxu0
      %v1830 = vld [vmem:[%s8] sm:$0x7]
      %1832 = vset.pattern.permute.xlu0 0
      %1833 = vperm.xlu0 %1832, %v1830
      %v1834 = vpop.permute.xlu0 %1833
      %v1836 = vmul.f32 %v1827, %v1834
      %s1837 = scalar_lea.vmem %s8, 4
      %v1838 = vld [vmem:[%s1837] sm:$0x7]
      %1840 = vset.pattern.permute.xlu0 0
      %1841 = vperm.xlu0 %1840, %v1838
      %v1842 = vpop.permute.xlu0 %1841
      %v1844 = vadd.f32 %v1836, %v1842
      %v1845 = vmax.f32 %v1844, 0.0
      %v1847 = vsel %vm548, %v1755, 0
      %1849 = vmatprep.subr.mxu0 0.0
      %1850 = vmatpush1.msra.mxu0 %v536
      %1851 = vmatprep.subr.mxu0 0.0
      %1852 = vmatpush1.msra.mxu0 %v537
      %1853 = vmatprep.subr.mxu0 0.0
      %1854 = vmatpush1.msra.mxu0 0.0
      %1855 = vmatprep.subr.mxu0 0.0
      %1856 = vmatpush1.msra.mxu0 0.0
      %1857 = vmatprep.subr.mxu0 0.0
      %1858 = vmatpush1.msra.mxu0 0.0
      %1859 = vmatprep.subr.mxu0 0.0
      %1860 = vmatpush1.msra.mxu0 0.0
      %1861 = vmatprep.subr.mxu0 0.0
      %1862 = vmatpush1.msra.mxu0 0.0
      %1863 = vmatprep.subr.mxu0 0.0
      %1864 = vmatpush1.msra.mxu0 0.0
      %1865 = vmatprep.subr.mxu0 0.0
      %1866 = vmatpush1.msra.mxu0 0.0
      %1867 = vmatprep.subr.mxu0 0.0
      %1868 = vmatpush1.msra.mxu0 0.0
      %1869 = vmatprep.subr.mxu0 0.0
      %1870 = vmatpush1.msra.mxu0 0.0
      %1871 = vmatprep.subr.mxu0 0.0
      %1872 = vmatpush1.msra.mxu0 0.0
      %1873 = vmatprep.subr.mxu0 0.0
      %1874 = vmatpush1.msra.mxu0 0.0
      %1875 = vmatprep.subr.mxu0 0.0
      %1876 = vmatpush1.msra.mxu0 0.0
      %1877 = vmatprep.subr.mxu0 0.0
      %1878 = vmatpush1.msra.mxu0 0.0
      %1879 = vmatprep.subr.mxu0 0.0
      %1880 = vmatpush1.msra.mxu0 0.0
      %1881 = vmatprep.subr.mxu0 0.0
      %1882 = vmatpush1.msra.mxu0 0.0
      %1883 = vmatprep.subr.mxu0 0.0
      %1884 = vmatpush1.msra.mxu0 0.0
      %1885 = vmatprep.subr.mxu0 0.0
      %1886 = vmatpush1.msra.mxu0 0.0
      %1887 = vmatprep.subr.mxu0 0.0
      %1888 = vmatpush1.msra.mxu0 0.0
      %1889 = vmatprep.subr.mxu0 0.0
      %1890 = vmatpush1.msra.mxu0 0.0
      %1891 = vmatprep.subr.mxu0 0.0
      %1892 = vmatpush1.msra.mxu0 0.0
      %1893 = vmatprep.subr.mxu0 0.0
      %1894 = vmatpush1.msra.mxu0 0.0
      %1895 = vmatprep.subr.mxu0 0.0
      %1896 = vmatpush1.msra.mxu0 0.0
      %1897 = vmatprep.subr.mxu0 0.0
      %1898 = vmatpush1.msra.mxu0 0.0
      %1899 = vmatprep.subr.mxu0 0.0
      %1900 = vmatpush1.msra.mxu0 0.0
      %1901 = vmatprep.subr.mxu0 0.0
      %1902 = vmatpush1.msra.mxu0 0.0
      %1903 = vmatprep.subr.mxu0 0.0
      %1904 = vmatpush1.msra.mxu0 0.0
      %1905 = vmatprep.subr.mxu0 0.0
      %1906 = vmatpush1.msra.mxu0 0.0
      %1907 = vmatprep.subr.mxu0 0.0
      %1908 = vmatpush1.msra.mxu0 0.0
      %1909 = vmatprep.subr.mxu0 0.0
      %1910 = vmatpush1.msra.mxu0 0.0
      %1911 = vmatprep.subr.mxu0 0.0
      %1912 = vmatpush1.msra.mxu0 0.0
      %1913 = vmatprep.mubr.f32.mxu0 0.0
      %1914 = vmatmul.mubr.f32.gmra.mrb[0].mxu0 %v1847
      %v1915 = vpop.f32.mrb[0].mxu0
      %v1916 = vadd.f32 0.0, %v1915
      %v1917 = vpop.f32.mrb[0].mxu0
      %1918 = vdwg.mxu0
      %v1919 = vld [vmem:[%s12] sm:$0x7]
      %s1920 = scalar_lea.vmem %s12, 4
      %v1921 = vld [vmem:[%s1920] sm:$0x7]
      %s1922 = scalar_lea.vmem %s12, 8
      %v1923 = vld [vmem:[%s1922] sm:$0x7]
      %s1924 = scalar_lea.vmem %s12, 12
      %v1925 = vld [vmem:[%s1924] sm:$0x7]
      %v1926 = vld [vmem:[%s13] sm:$0x3f]
      %s1927 = scalar_lea.vmem %s13, 8
      %v1928 = vld [vmem:[%s1927] sm:$0x3f]
      %v1929 = vld [vmem:[%s14] sm:$0x3f]
      %s1930 = scalar_lea.vmem %s14, 8
      %v1931 = vld [vmem:[%s1930] sm:$0x3f]
      %v1933 = vsel %vm711, %v1921, 0
      %v1936 = vsel %vm715, %v1845, 0
      %1938 = vmatprep.subr.mxu0 0.0
      %1939 = vmatpush1.msra.mxu0 %v1936
      %1940 = vmatprep.subr.mxu0 0.0
      %1941 = vmatpush1.msra.mxu0 0.0
      %1942 = vmatprep.subr.mxu0 0.0
      %1943 = vmatpush1.msra.mxu0 0.0
      %1944 = vmatprep.subr.mxu0 0.0
      %1945 = vmatpush1.msra.mxu0 0.0
      %1946 = vmatprep.subr.mxu0 0.0
      %1947 = vmatpush1.msra.mxu0 0.0
      %1948 = vmatprep.subr.mxu0 0.0
      %1949 = vmatpush1.msra.mxu0 0.0
      %1950 = vmatprep.subr.mxu0 0.0
      %1951 = vmatpush1.msra.mxu0 0.0
      %1952 = vmatprep.subr.mxu0 0.0
      %1953 = vmatpush1.msra.mxu0 0.0
      %1954 = vmatprep.subr.mxu0 0.0
      %1955 = vmatpush1.msra.mxu0 0.0
      %1956 = vmatprep.subr.mxu0 0.0
      %1957 = vmatpush1.msra.mxu0 0.0
      %1958 = vmatprep.subr.mxu0 0.0
      %1959 = vmatpush1.msra.mxu0 0.0
      %1960 = vmatprep.subr.mxu0 0.0
      %1961 = vmatpush1.msra.mxu0 0.0
      %1962 = vmatprep.subr.mxu0 0.0
      %1963 = vmatpush1.msra.mxu0 0.0
      %1964 = vmatprep.subr.mxu0 0.0
      %1965 = vmatpush1.msra.mxu0 0.0
      %1966 = vmatprep.subr.mxu0 0.0
      %1967 = vmatpush1.msra.mxu0 0.0
      %1968 = vmatprep.subr.mxu0 0.0
      %1969 = vmatpush1.msra.mxu0 0.0
      %1970 = vmatprep.subr.mxu0 0.0
      %1971 = vmatpush1.msra.mxu0 0.0
      %1972 = vmatprep.subr.mxu0 0.0
      %1973 = vmatpush1.msra.mxu0 0.0
      %1974 = vmatprep.subr.mxu0 0.0
      %1975 = vmatpush1.msra.mxu0 0.0
      %1976 = vmatprep.subr.mxu0 0.0
      %1977 = vmatpush1.msra.mxu0 0.0
      %1978 = vmatprep.subr.mxu0 0.0
      %1979 = vmatpush1.msra.mxu0 0.0
      %1980 = vmatprep.subr.mxu0 0.0
      %1981 = vmatpush1.msra.mxu0 0.0
      %1982 = vmatprep.subr.mxu0 0.0
      %1983 = vmatpush1.msra.mxu0 0.0
      %1984 = vmatprep.subr.mxu0 0.0
      %1985 = vmatpush1.msra.mxu0 0.0
      %1986 = vmatprep.subr.mxu0 0.0
      %1987 = vmatpush1.msra.mxu0 0.0
      %1988 = vmatprep.subr.mxu0 0.0
      %1989 = vmatpush1.msra.mxu0 0.0
      %1990 = vmatprep.subr.mxu0 0.0
      %1991 = vmatpush1.msra.mxu0 0.0
      %1992 = vmatprep.subr.mxu0 0.0
      %1993 = vmatpush1.msra.mxu0 0.0
      %1994 = vmatprep.subr.mxu0 0.0
      %1995 = vmatpush1.msra.mxu0 0.0
      %1996 = vmatprep.subr.mxu0 0.0
      %1997 = vmatpush1.msra.mxu0 0.0
      %1998 = vmatprep.subr.mxu0 0.0
      %1999 = vmatpush1.msra.mxu0 0.0
      %2000 = vmatprep.subr.mxu0 0.0
      %2001 = vmatpush1.msra.mxu0 0.0
      %2002 = vmatprep.mubr.f32.mxu0 0.0
      %2003 = vmatmul.mubr.f32.gmra.mrb[0].mxu0 %v1933
      %v2004 = vpop.f32.mrb[0].mxu0
      %v2005 = vadd.f32 0.0, %v2004
      %v2006 = vpop.f32.mrb[0].mxu0
      %2007 = vdwg.mxu0
      %v2009 = vsel %vm711, %v1919, 0
      %v2012 = vsel %vm715, %v1916, 0
      %2014 = vmatprep.subr.mxu0 0.0
      %2015 = vmatpush1.msra.mxu0 %v2012
      %2016 = vmatprep.subr.mxu0 0.0
      %2017 = vmatpush1.msra.mxu0 0.0
      %2018 = vmatprep.subr.mxu0 0.0
      %2019 = vmatpush1.msra.mxu0 0.0
      %2020 = vmatprep.subr.mxu0 0.0
      %2021 = vmatpush1.msra.mxu0 0.0
      %2022 = vmatprep.subr.mxu0 0.0
      %2023 = vmatpush1.msra.mxu0 0.0
      %2024 = vmatprep.subr.mxu0 0.0
      %2025 = vmatpush1.msra.mxu0 0.0
      %2026 = vmatprep.subr.mxu0 0.0
      %2027 = vmatpush1.msra.mxu0 0.0
      %2028 = vmatprep.subr.mxu0 0.0
      %2029 = vmatpush1.msra.mxu0 0.0
      %2030 = vmatprep.subr.mxu0 0.0
      %2031 = vmatpush1.msra.mxu0 0.0
      %2032 = vmatprep.subr.mxu0 0.0
      %2033 = vmatpush1.msra.mxu0 0.0
      %2034 = vmatprep.subr.mxu0 0.0
      %2035 = vmatpush1.msra.mxu0 0.0
      %2036 = vmatprep.subr.mxu0 0.0
      %2037 = vmatpush1.msra.mxu0 0.0
      %2038 = vmatprep.subr.mxu0 0.0
      %2039 = vmatpush1.msra.mxu0 0.0
      %2040 = vmatprep.subr.mxu0 0.0
      %2041 = vmatpush1.msra.mxu0 0.0
      %2042 = vmatprep.subr.mxu0 0.0
      %2043 = vmatpush1.msra.mxu0 0.0
      %2044 = vmatprep.subr.mxu0 0.0
      %2045 = vmatpush1.msra.mxu0 0.0
      %2046 = vmatprep.subr.mxu0 0.0
      %2047 = vmatpush1.msra.mxu0 0.0
      %2048 = vmatprep.subr.mxu0 0.0
      %2049 = vmatpush1.msra.mxu0 0.0
      %2050 = vmatprep.subr.mxu0 0.0
      %2051 = vmatpush1.msra.mxu0 0.0
      %2052 = vmatprep.subr.mxu0 0.0
      %2053 = vmatpush1.msra.mxu0 0.0
      %2054 = vmatprep.subr.mxu0 0.0
      %2055 = vmatpush1.msra.mxu0 0.0
      %2056 = vmatprep.subr.mxu0 0.0
      %2057 = vmatpush1.msra.mxu0 0.0
      %2058 = vmatprep.subr.mxu0 0.0
      %2059 = vmatpush1.msra.mxu0 0.0
      %2060 = vmatprep.subr.mxu0 0.0
      %2061 = vmatpush1.msra.mxu0 0.0
      %2062 = vmatprep.subr.mxu0 0.0
      %2063 = vmatpush1.msra.mxu0 0.0
      %2064 = vmatprep.subr.mxu0 0.0
      %2065 = vmatpush1.msra.mxu0 0.0
      %2066 = vmatprep.subr.mxu0 0.0
      %2067 = vmatpush1.msra.mxu0 0.0
      %2068 = vmatprep.subr.mxu0 0.0
      %2069 = vmatpush1.msra.mxu0 0.0
      %2070 = vmatprep.subr.mxu0 0.0
      %2071 = vmatpush1.msra.mxu0 0.0
      %2072 = vmatprep.subr.mxu0 0.0
      %2073 = vmatpush1.msra.mxu0 0.0
      %2074 = vmatprep.subr.mxu0 0.0
      %2075 = vmatpush1.msra.mxu0 0.0
      %2076 = vmatprep.subr.mxu0 0.0
      %2077 = vmatpush1.msra.mxu0 0.0
      %2078 = vmatprep.mubr.f32.mxu0 0.0
      %2079 = vmatmul.mubr.f32.gmra.mrb[0].mxu0 %v2009
      %v2080 = vpop.f32.mrb[0].mxu0
      %v2081 = vadd.f32 %v2005, %v2080
      %v2082 = vpop.f32.mrb[0].mxu0
      %2083 = vdwg.mxu0
      %v2085 = vsel %vm711, %v1925, 0
      %2087 = vmatprep.subr.mxu0 0.0
      %2088 = vmatpush1.msra.mxu0 %v1936
      %2089 = vmatprep.subr.mxu0 0.0
      %2090 = vmatpush1.msra.mxu0 0.0
      %2091 = vmatprep.subr.mxu0 0.0
      %2092 = vmatpush1.msra.mxu0 0.0
      %2093 = vmatprep.subr.mxu0 0.0
      %2094 = vmatpush1.msra.mxu0 0.0
      %2095 = vmatprep.subr.mxu0 0.0
      %2096 = vmatpush1.msra.mxu0 0.0
      %2097 = vmatprep.subr.mxu0 0.0
      %2098 = vmatpush1.msra.mxu0 0.0
      %2099 = vmatprep.subr.mxu0 0.0
      %2100 = vmatpush1.msra.mxu0 0.0
      %2101 = vmatprep.subr.mxu0 0.0
      %2102 = vmatpush1.msra.mxu0 0.0
      %2103 = vmatprep.subr.mxu0 0.0
      %2104 = vmatpush1.msra.mxu0 0.0
      %2105 = vmatprep.subr.mxu0 0.0
      %2106 = vmatpush1.msra.mxu0 0.0
      %2107 = vmatprep.subr.mxu0 0.0
      %2108 = vmatpush1.msra.mxu0 0.0
      %2109 = vmatprep.subr.mxu0 0.0
      %2110 = vmatpush1.msra.mxu0 0.0
      %2111 = vmatprep.subr.mxu0 0.0
      %2112 = vmatpush1.msra.mxu0 0.0
      %2113 = vmatprep.subr.mxu0 0.0
      %2114 = vmatpush1.msra.mxu0 0.0
      %2115 = vmatprep.subr.mxu0 0.0
      %2116 = vmatpush1.msra.mxu0 0.0
      %2117 = vmatprep.subr.mxu0 0.0
      %2118 = vmatpush1.msra.mxu0 0.0
      %2119 = vmatprep.subr.mxu0 0.0
      %2120 = vmatpush1.msra.mxu0 0.0
      %2121 = vmatprep.subr.mxu0 0.0
      %2122 = vmatpush1.msra.mxu0 0.0
      %2123 = vmatprep.subr.mxu0 0.0
      %2124 = vmatpush1.msra.mxu0 0.0
      %2125 = vmatprep.subr.mxu0 0.0
      %2126 = vmatpush1.msra.mxu0 0.0
      %2127 = vmatprep.subr.mxu0 0.0
      %2128 = vmatpush1.msra.mxu0 0.0
      %2129 = vmatprep.subr.mxu0 0.0
      %2130 = vmatpush1.msra.mxu0 0.0
      %2131 = vmatprep.subr.mxu0 0.0
      %2132 = vmatpush1.msra.mxu0 0.0
      %2133 = vmatprep.subr.mxu0 0.0
      %2134 = vmatpush1.msra.mxu0 0.0
      %2135 = vmatprep.subr.mxu0 0.0
      %2136 = vmatpush1.msra.mxu0 0.0
      %2137 = vmatprep.subr.mxu0 0.0
      %2138 = vmatpush1.msra.mxu0 0.0
      %2139 = vmatprep.subr.mxu0 0.0
      %2140 = vmatpush1.msra.mxu0 0.0
      %2141 = vmatprep.subr.mxu0 0.0
      %2142 = vmatpush1.msra.mxu0 0.0
      %2143 = vmatprep.subr.mxu0 0.0
      %2144 = vmatpush1.msra.mxu0 0.0
      %2145 = vmatprep.subr.mxu0 0.0
      %2146 = vmatpush1.msra.mxu0 0.0
      %2147 = vmatprep.subr.mxu0 0.0
      %2148 = vmatpush1.msra.mxu0 0.0
      %2149 = vmatprep.subr.mxu0 0.0
      %2150 = vmatpush1.msra.mxu0 0.0
      %2151 = vmatprep.mubr.f32.mxu0 0.0
      %2152 = vmatmul.mubr.f32.gmra.mrb[0].mxu0 %v2085
      %v2153 = vpop.f32.mrb[0].mxu0
      %v2154 = vadd.f32 0.0, %v2153
      %v2155 = vpop.f32.mrb[0].mxu0
      %2156 = vdwg.mxu0
      %v2158 = vsel %vm711, %v1923, 0
      %2160 = vmatprep.subr.mxu0 0.0
      %2161 = vmatpush1.msra.mxu0 %v2012
      %2162 = vmatprep.subr.mxu0 0.0
      %2163 = vmatpush1.msra.mxu0 0.0
      %2164 = vmatprep.subr.mxu0 0.0
      %2165 = vmatpush1.msra.mxu0 0.0
      %2166 = vmatprep.subr.mxu0 0.0
      %2167 = vmatpush1.msra.mxu0 0.0
      %2168 = vmatprep.subr.mxu0 0.0
      %2169 = vmatpush1.msra.mxu0 0.0
      %2170 = vmatprep.subr.mxu0 0.0
      %2171 = vmatpush1.msra.mxu0 0.0
      %2172 = vmatprep.subr.mxu0 0.0
      %2173 = vmatpush1.msra.mxu0 0.0
      %2174 = vmatprep.subr.mxu0 0.0
      %2175 = vmatpush1.msra.mxu0 0.0
      %2176 = vmatprep.subr.mxu0 0.0
      %2177 = vmatpush1.msra.mxu0 0.0
      %2178 = vmatprep.subr.mxu0 0.0
      %2179 = vmatpush1.msra.mxu0 0.0
      %2180 = vmatprep.subr.mxu0 0.0
      %2181 = vmatpush1.msra.mxu0 0.0
      %2182 = vmatprep.subr.mxu0 0.0
      %2183 = vmatpush1.msra.mxu0 0.0
      %2184 = vmatprep.subr.mxu0 0.0
      %2185 = vmatpush1.msra.mxu0 0.0
      %2186 = vmatprep.subr.mxu0 0.0
      %2187 = vmatpush1.msra.mxu0 0.0
      %2188 = vmatprep.subr.mxu0 0.0
      %2189 = vmatpush1.msra.mxu0 0.0
      %2190 = vmatprep.subr.mxu0 0.0
      %2191 = vmatpush1.msra.mxu0 0.0
      %2192 = vmatprep.subr.mxu0 0.0
      %2193 = vmatpush1.msra.mxu0 0.0
      %2194 = vmatprep.subr.mxu0 0.0
      %2195 = vmatpush1.msra.mxu0 0.0
      %2196 = vmatprep.subr.mxu0 0.0
      %2197 = vmatpush1.msra.mxu0 0.0
      %2198 = vmatprep.subr.mxu0 0.0
      %2199 = vmatpush1.msra.mxu0 0.0
      %2200 = vmatprep.subr.mxu0 0.0
      %2201 = vmatpush1.msra.mxu0 0.0
      %2202 = vmatprep.subr.mxu0 0.0
      %2203 = vmatpush1.msra.mxu0 0.0
      %2204 = vmatprep.subr.mxu0 0.0
      %2205 = vmatpush1.msra.mxu0 0.0
      %2206 = vmatprep.subr.mxu0 0.0
      %2207 = vmatpush1.msra.mxu0 0.0
      %2208 = vmatprep.subr.mxu0 0.0
      %2209 = vmatpush1.msra.mxu0 0.0
      %2210 = vmatprep.subr.mxu0 0.0
      %2211 = vmatpush1.msra.mxu0 0.0
      %2212 = vmatprep.subr.mxu0 0.0
      %2213 = vmatpush1.msra.mxu0 0.0
      %2214 = vmatprep.subr.mxu0 0.0
      %2215 = vmatpush1.msra.mxu0 0.0
      %2216 = vmatprep.subr.mxu0 0.0
      %2217 = vmatpush1.msra.mxu0 0.0
      %2218 = vmatprep.subr.mxu0 0.0
      %2219 = vmatpush1.msra.mxu0 0.0
      %2220 = vmatprep.subr.mxu0 0.0
      %2221 = vmatpush1.msra.mxu0 0.0
      %2222 = vmatprep.subr.mxu0 0.0
      %2223 = vmatpush1.msra.mxu0 0.0
      %2224 = vmatprep.mubr.f32.mxu0 0.0
      %2225 = vmatmul.mubr.f32.gmra.mrb[0].mxu0 %v2158
      %v2226 = vpop.f32.mrb[0].mxu0
      %v2227 = vadd.f32 %v2154, %v2226
      %v2228 = vpop.f32.mrb[0].mxu0
      %2229 = vdwg.mxu0
      %2231 = vrot.lane.b32.xlu0 %v2081, 112
      %v2232 = vpop.permute.xlu0 %2231
      %v2234 = vmax.f32 %v2081, %v2232
      %2236 = vrot.lane.b32.xlu0 %v2227, 112
      %v2237 = vpop.permute.xlu0 %2236
      %v2239 = vmax.f32 %v2227, %v2237
      %2240 = vrot.lane.b32.xlu0 %v2081, 96
      %v2241 = vpop.permute.xlu0 %2240
      %v2243 = vmax.f32 %v2234, %v2241
      %2244 = vrot.lane.b32.xlu0 %v2227, 96
      %v2245 = vpop.permute.xlu0 %2244
      %v2247 = vmax.f32 %v2239, %v2245
      %2248 = vrot.lane.b32.xlu0 %v2081, 80
      %v2249 = vpop.permute.xlu0 %2248
      %v2251 = vmax.f32 %v2243, %v2249
      %2252 = vrot.lane.b32.xlu0 %v2227, 80
      %v2253 = vpop.permute.xlu0 %2252
      %v2255 = vmax.f32 %v2247, %v2253
      %2256 = vrot.lane.b32.xlu0 %v2081, 64
      %v2257 = vpop.permute.xlu0 %2256
      %v2259 = vmax.f32 %v2251, %v2257
      %2260 = vrot.lane.b32.xlu0 %v2227, 64
      %v2261 = vpop.permute.xlu0 %2260
      %v2263 = vmax.f32 %v2255, %v2261
      %2264 = vrot.lane.b32.xlu0 %v2081, 48
      %v2265 = vpop.permute.xlu0 %2264
      %v2267 = vmax.f32 %v2259, %v2265
      %2268 = vrot.lane.b32.xlu0 %v2227, 48
      %v2269 = vpop.permute.xlu0 %2268
      %v2271 = vmax.f32 %v2263, %v2269
      %2272 = vrot.lane.b32.xlu0 %v2081, 32
      %v2273 = vpop.permute.xlu0 %2272
      %v2275 = vmax.f32 %v2267, %v2273
      %2276 = vrot.lane.b32.xlu0 %v2227, 32
      %v2277 = vpop.permute.xlu0 %2276
      %v2279 = vmax.f32 %v2271, %v2277
      %2280 = vrot.lane.b32.xlu0 %v2081, 16
      %v2281 = vpop.permute.xlu0 %2280
      %v2283 = vmax.f32 %v2275, %v2281
      %2284 = vrot.lane.b32.xlu0 %v2227, 16
      %v2285 = vpop.permute.xlu0 %2284
      %v2287 = vmax.f32 %v2279, %v2285
      %v2288 = vsub.f32 %v2081, %v2283
      %v2289 = vmul.f32 %v2288, 1.442695
      %v2290 = vpow.pop %v2289
      %v2291 = vsub.f32 %v2227, %v2287
      %v2292 = vmul.f32 %v2291, 1.442695
      %v2293 = vpow.pop %v2292
      %v2294 = vadd.f32 %v2290, 0.0
      %v2295 = vadd.f32 %v2293, 0.0
      %v2296 = vmul.f32 %v1916, %v2290
      %v2297 = vadd.f32 %v2296, 0.0
      %v2298 = vmul.f32 %v1845, %v2293
      %v2299 = vadd.f32 %v2298, 0.0
      %2301 = vrot.lane.b32.xlu0 %v2283, 16
      %v2302 = vpop.permute.xlu0 %2301
      %v2304 = vsub.f32 %v2081, %v2302
      %v2305 = vmul.f32 %v2304, 1.442695
      %v2306 = vpow.pop %v2305
      %2308 = vrot.lane.b32.xlu0 %v2287, 16
      %v2309 = vpop.permute.xlu0 %2308
      %v2311 = vsub.f32 %v2227, %v2309
      %v2312 = vmul.f32 %v2311, 1.442695
      %v2313 = vpow.pop %v2312
      %2315 = vrot.lane.b32.xlu0 %v2306, 112
      %v2316 = vpop.permute.xlu0 %2315
      %v2318 = vadd.f32 %v2294, %v2316
      %2320 = vrot.lane.b32.xlu0 %v2313, 112
      %v2321 = vpop.permute.xlu0 %2320
      %v2323 = vadd.f32 %v2295, %v2321
      %v2324 = vmul.f32 %v1916, %v2306
      %2326 = vrot.lane.b32.xlu0 %v2324, 112
      %v2327 = vpop.permute.xlu0 %2326
      %v2329 = vadd.f32 %v2297, %v2327
      %v2330 = vmul.f32 %v1845, %v2313
      %2332 = vrot.lane.b32.xlu0 %v2330, 112
      %v2333 = vpop.permute.xlu0 %2332
      %v2335 = vadd.f32 %v2299, %v2333
      %2336 = vrot.lane.b32.xlu0 %v2283, 32
      %v2337 = vpop.permute.xlu0 %2336
      %v2339 = vsub.f32 %v2081, %v2337
      %v2340 = vmul.f32 %v2339, 1.442695
      %v2341 = vpow.pop %v2340
      %2342 = vrot.lane.b32.xlu0 %v2287, 32
      %v2343 = vpop.permute.xlu0 %2342
      %v2345 = vsub.f32 %v2227, %v2343
      %v2346 = vmul.f32 %v2345, 1.442695
      %v2347 = vpow.pop %v2346
      %2349 = vrot.lane.b32.xlu0 %v2341, 96
      %v2350 = vpop.permute.xlu0 %2349
      %v2352 = vadd.f32 %v2318, %v2350
      %2354 = vrot.lane.b32.xlu0 %v2347, 96
      %v2355 = vpop.permute.xlu0 %2354
      %v2357 = vadd.f32 %v2323, %v2355
      %v2358 = vmul.f32 %v1916, %v2341
      %2360 = vrot.lane.b32.xlu0 %v2358, 96
      %v2361 = vpop.permute.xlu0 %2360
      %v2363 = vadd.f32 %v2329, %v2361
      %v2364 = vmul.f32 %v1845, %v2347
      %2366 = vrot.lane.b32.xlu0 %v2364, 96
      %v2367 = vpop.permute.xlu0 %2366
      %v2369 = vadd.f32 %v2335, %v2367
      %2370 = vrot.lane.b32.xlu0 %v2283, 48
      %v2371 = vpop.permute.xlu0 %2370
      %v2373 = vsub.f32 %v2081, %v2371
      %v2374 = vmul.f32 %v2373, 1.442695
      %v2375 = vpow.pop %v2374
      %2376 = vrot.lane.b32.xlu0 %v2287, 48
      %v2377 = vpop.permute.xlu0 %2376
      %v2379 = vsub.f32 %v2227, %v2377
      %v2380 = vmul.f32 %v2379, 1.442695
      %v2381 = vpow.pop %v2380
      %2383 = vrot.lane.b32.xlu0 %v2375, 80
      %v2384 = vpop.permute.xlu0 %2383
      %v2386 = vadd.f32 %v2352, %v2384
      %2388 = vrot.lane.b32.xlu0 %v2381, 80
      %v2389 = vpop.permute.xlu0 %2388
      %v2391 = vadd.f32 %v2357, %v2389
      %v2392 = vmul.f32 %v1916, %v2375
      %2394 = vrot.lane.b32.xlu0 %v2392, 80
      %v2395 = vpop.permute.xlu0 %2394
      %v2397 = vadd.f32 %v2363, %v2395
      %v2398 = vmul.f32 %v1845, %v2381
      %2400 = vrot.lane.b32.xlu0 %v2398, 80
      %v2401 = vpop.permute.xlu0 %2400
      %v2403 = vadd.f32 %v2369, %v2401
      %2404 = vrot.lane.b32.xlu0 %v2283, 64
      %v2405 = vpop.permute.xlu0 %2404
      %v2407 = vsub.f32 %v2081, %v2405
      %v2408 = vmul.f32 %v2407, 1.442695
      %v2409 = vpow.pop %v2408
      %2410 = vrot.lane.b32.xlu0 %v2287, 64
      %v2411 = vpop.permute.xlu0 %2410
      %v2413 = vsub.f32 %v2227, %v2411
      %v2414 = vmul.f32 %v2413, 1.442695
      %v2415 = vpow.pop %v2414
      %2417 = vrot.lane.b32.xlu0 %v2409, 64
      %v2418 = vpop.permute.xlu0 %2417
      %v2420 = vadd.f32 %v2386, %v2418
      %2422 = vrot.lane.b32.xlu0 %v2415, 64
      %v2423 = vpop.permute.xlu0 %2422
      %v2425 = vadd.f32 %v2391, %v2423
      %v2426 = vmul.f32 %v1916, %v2409
      %2428 = vrot.lane.b32.xlu0 %v2426, 64
      %v2429 = vpop.permute.xlu0 %2428
      %v2431 = vadd.f32 %v2397, %v2429
      %v2432 = vmul.f32 %v1845, %v2415
      %2434 = vrot.lane.b32.xlu0 %v2432, 64
      %v2435 = vpop.permute.xlu0 %2434
      %v2437 = vadd.f32 %v2403, %v2435
      %2438 = vrot.lane.b32.xlu0 %v2283, 80
      %v2439 = vpop.permute.xlu0 %2438
      %v2441 = vsub.f32 %v2081, %v2439
      %v2442 = vmul.f32 %v2441, 1.442695
      %v2443 = vpow.pop %v2442
      %2444 = vrot.lane.b32.xlu0 %v2287, 80
      %v2445 = vpop.permute.xlu0 %2444
      %v2447 = vsub.f32 %v2227, %v2445
      %v2448 = vmul.f32 %v2447, 1.442695
      %v2449 = vpow.pop %v2448
      %2451 = vrot.lane.b32.xlu0 %v2443, 48
      %v2452 = vpop.permute.xlu0 %2451
      %v2454 = vadd.f32 %v2420, %v2452
      %2456 = vrot.lane.b32.xlu0 %v2449, 48
      %v2457 = vpop.permute.xlu0 %2456
      %v2459 = vadd.f32 %v2425, %v2457
      %v2460 = vmul.f32 %v1916, %v2443
      %2462 = vrot.lane.b32.xlu0 %v2460, 48
      %v2463 = vpop.permute.xlu0 %2462
      %v2465 = vadd.f32 %v2431, %v2463
      %v2466 = vmul.f32 %v1845, %v2449
      %2468 = vrot.lane.b32.xlu0 %v2466, 48
      %v2469 = vpop.permute.xlu0 %2468
      %v2471 = vadd.f32 %v2437, %v2469
      %2472 = vrot.lane.b32.xlu0 %v2283, 96
      %v2473 = vpop.permute.xlu0 %2472
      %v2475 = vsub.f32 %v2081, %v2473
      %v2476 = vmul.f32 %v2475, 1.442695
      %v2477 = vpow.pop %v2476
      %2478 = vrot.lane.b32.xlu0 %v2287, 96
      %v2479 = vpop.permute.xlu0 %2478
      %v2481 = vsub.f32 %v2227, %v2479
      %v2482 = vmul.f32 %v2481, 1.442695
      %v2483 = vpow.pop %v2482
      %2485 = vrot.lane.b32.xlu0 %v2477, 32
      %v2486 = vpop.permute.xlu0 %2485
      %v2488 = vadd.f32 %v2454, %v2486
      %2490 = vrot.lane.b32.xlu0 %v2483, 32
      %v2491 = vpop.permute.xlu0 %2490
      %v2493 = vadd.f32 %v2459, %v2491
      %v2494 = vmul.f32 %v1916, %v2477
      %2496 = vrot.lane.b32.xlu0 %v2494, 32
      %v2497 = vpop.permute.xlu0 %2496
      %v2499 = vadd.f32 %v2465, %v2497
      %v2500 = vmul.f32 %v1845, %v2483
      %2502 = vrot.lane.b32.xlu0 %v2500, 32
      %v2503 = vpop.permute.xlu0 %2502
      %v2505 = vadd.f32 %v2471, %v2503
      %2506 = vrot.lane.b32.xlu0 %v2283, 112
      %v2507 = vpop.permute.xlu0 %2506
      %v2509 = vsub.f32 %v2081, %v2507
      %v2510 = vmul.f32 %v2509, 1.442695
      %v2511 = vpow.pop %v2510
      %2512 = vrot.lane.b32.xlu0 %v2287, 112
      %v2513 = vpop.permute.xlu0 %2512
      %v2515 = vsub.f32 %v2227, %v2513
      %v2516 = vmul.f32 %v2515, 1.442695
      %v2517 = vpow.pop %v2516
      %2519 = vrot.lane.b32.xlu0 %v2511, 16
      %v2520 = vpop.permute.xlu0 %2519
      %v2522 = vadd.f32 %v2488, %v2520
      %2524 = vrot.lane.b32.xlu0 %v2517, 16
      %v2525 = vpop.permute.xlu0 %2524
      %v2527 = vadd.f32 %v2493, %v2525
      %v2528 = vmul.f32 %v1916, %v2511
      %2530 = vrot.lane.b32.xlu0 %v2528, 16
      %v2531 = vpop.permute.xlu0 %2530
      %v2533 = vadd.f32 %v2499, %v2531
      %v2534 = vmul.f32 %v1845, %v2517
      %2536 = vrot.lane.b32.xlu0 %v2534, 16
      %v2537 = vpop.permute.xlu0 %2536
      %v2539 = vadd.f32 %v2505, %v2537
      %v2540 = vrcp.pop %v2522
      %v2541 = vmul.f32 %v2533, %v2540
      %v2542 = vrcp.pop %v2527
      %v2543 = vmul.f32 %v2539, %v2542
      %v2545 = vsel %vm711, %v1928, 0
      %v2548 = vsel %vm715, %v2543, 0
      %2550 = vmatprep.subr.mxu0 0.0
      %2551 = vmatpush1.msra.mxu0 %v2548
      %2552 = vmatprep.subr.mxu0 0.0
      %2553 = vmatpush1.msra.mxu0 0.0
      %2554 = vmatprep.subr.mxu0 0.0
      %2555 = vmatpush1.msra.mxu0 0.0
      %2556 = vmatprep.subr.mxu0 0.0
      %2557 = vmatpush1.msra.mxu0 0.0
      %2558 = vmatprep.subr.mxu0 0.0
      %2559 = vmatpush1.msra.mxu0 0.0
      %2560 = vmatprep.subr.mxu0 0.0
      %2561 = vmatpush1.msra.mxu0 0.0
      %2562 = vmatprep.subr.mxu0 0.0
      %2563 = vmatpush1.msra.mxu0 0.0
      %2564 = vmatprep.subr.mxu0 0.0
      %2565 = vmatpush1.msra.mxu0 0.0
      %2566 = vmatprep.subr.mxu0 0.0
      %2567 = vmatpush1.msra.mxu0 0.0
      %2568 = vmatprep.subr.mxu0 0.0
      %2569 = vmatpush1.msra.mxu0 0.0
      %2570 = vmatprep.subr.mxu0 0.0
      %2571 = vmatpush1.msra.mxu0 0.0
      %2572 = vmatprep.subr.mxu0 0.0
      %2573 = vmatpush1.msra.mxu0 0.0
      %2574 = vmatprep.subr.mxu0 0.0
      %2575 = vmatpush1.msra.mxu0 0.0
      %2576 = vmatprep.subr.mxu0 0.0
      %2577 = vmatpush1.msra.mxu0 0.0
      %2578 = vmatprep.subr.mxu0 0.0
      %2579 = vmatpush1.msra.mxu0 0.0
      %2580 = vmatprep.subr.mxu0 0.0
      %2581 = vmatpush1.msra.mxu0 0.0
      %2582 = vmatprep.subr.mxu0 0.0
      %2583 = vmatpush1.msra.mxu0 0.0
      %2584 = vmatprep.subr.mxu0 0.0
      %2585 = vmatpush1.msra.mxu0 0.0
      %2586 = vmatprep.subr.mxu0 0.0
      %2587 = vmatpush1.msra.mxu0 0.0
      %2588 = vmatprep.subr.mxu0 0.0
      %2589 = vmatpush1.msra.mxu0 0.0
      %2590 = vmatprep.subr.mxu0 0.0
      %2591 = vmatpush1.msra.mxu0 0.0
      %2592 = vmatprep.subr.mxu0 0.0
      %2593 = vmatpush1.msra.mxu0 0.0
      %2594 = vmatprep.subr.mxu0 0.0
      %2595 = vmatpush1.msra.mxu0 0.0
      %2596 = vmatprep.subr.mxu0 0.0
      %2597 = vmatpush1.msra.mxu0 0.0
      %2598 = vmatprep.subr.mxu0 0.0
      %2599 = vmatpush1.msra.mxu0 0.0
      %2600 = vmatprep.subr.mxu0 0.0
      %2601 = vmatpush1.msra.mxu0 0.0
      %2602 = vmatprep.subr.mxu0 0.0
      %2603 = vmatpush1.msra.mxu0 0.0
      %2604 = vmatprep.subr.mxu0 0.0
      %2605 = vmatpush1.msra.mxu0 0.0
      %2606 = vmatprep.subr.mxu0 0.0
      %2607 = vmatpush1.msra.mxu0 0.0
      %2608 = vmatprep.subr.mxu0 0.0
      %2609 = vmatpush1.msra.mxu0 0.0
      %2610 = vmatprep.subr.mxu0 0.0
      %2611 = vmatpush1.msra.mxu0 0.0
      %2612 = vmatprep.subr.mxu0 0.0
      %2613 = vmatpush1.msra.mxu0 0.0
      %2614 = vmatprep.mubr.f32.mxu0 0.0
      %2615 = vmatmul.mubr.f32.gmra.mrb[0].mxu0 %v2545
      %v2616 = vpop.f32.mrb[0].mxu0
      %v2617 = vadd.f32 0.0, %v2616
      %v2618 = vpop.f32.mrb[0].mxu0
      %2619 = vdwg.mxu0
      %v2621 = vsel %vm711, %v1926, 0
      %v2624 = vsel %vm715, %v2541, 0
      %2626 = vmatprep.subr.mxu0 0.0
      %2627 = vmatpush1.msra.mxu0 %v2624
      %2628 = vmatprep.subr.mxu0 0.0
      %2629 = vmatpush1.msra.mxu0 0.0
      %2630 = vmatprep.subr.mxu0 0.0
      %2631 = vmatpush1.msra.mxu0 0.0
      %2632 = vmatprep.subr.mxu0 0.0
      %2633 = vmatpush1.msra.mxu0 0.0
      %2634 = vmatprep.subr.mxu0 0.0
      %2635 = vmatpush1.msra.mxu0 0.0
      %2636 = vmatprep.subr.mxu0 0.0
      %2637 = vmatpush1.msra.mxu0 0.0
      %2638 = vmatprep.subr.mxu0 0.0
      %2639 = vmatpush1.msra.mxu0 0.0
      %2640 = vmatprep.subr.mxu0 0.0
      %2641 = vmatpush1.msra.mxu0 0.0
      %2642 = vmatprep.subr.mxu0 0.0
      %2643 = vmatpush1.msra.mxu0 0.0
      %2644 = vmatprep.subr.mxu0 0.0
      %2645 = vmatpush1.msra.mxu0 0.0
      %2646 = vmatprep.subr.mxu0 0.0
      %2647 = vmatpush1.msra.mxu0 0.0
      %2648 = vmatprep.subr.mxu0 0.0
      %2649 = vmatpush1.msra.mxu0 0.0
      %2650 = vmatprep.subr.mxu0 0.0
      %2651 = vmatpush1.msra.mxu0 0.0
      %2652 = vmatprep.subr.mxu0 0.0
      %2653 = vmatpush1.msra.mxu0 0.0
      %2654 = vmatprep.subr.mxu0 0.0
      %2655 = vmatpush1.msra.mxu0 0.0
      %2656 = vmatprep.subr.mxu0 0.0
      %2657 = vmatpush1.msra.mxu0 0.0
      %2658 = vmatprep.subr.mxu0 0.0
      %2659 = vmatpush1.msra.mxu0 0.0
      %2660 = vmatprep.subr.mxu0 0.0
      %2661 = vmatpush1.msra.mxu0 0.0
      %2662 = vmatprep.subr.mxu0 0.0
      %2663 = vmatpush1.msra.mxu0 0.0
      %2664 = vmatprep.subr.mxu0 0.0
      %2665 = vmatpush1.msra.mxu0 0.0
      %2666 = vmatprep.subr.mxu0 0.0
      %2667 = vmatpush1.msra.mxu0 0.0
      %2668 = vmatprep.subr.mxu0 0.0
      %2669 = vmatpush1.msra.mxu0 0.0
      %2670 = vmatprep.subr.mxu0 0.0
      %2671 = vmatpush1.msra.mxu0 0.0
      %2672 = vmatprep.subr.mxu0 0.0
      %2673 = vmatpush1.msra.mxu0 0.0
      %2674 = vmatprep.subr.mxu0 0.0
      %2675 = vmatpush1.msra.mxu0 0.0
      %2676 = vmatprep.subr.mxu0 0.0
      %2677 = vmatpush1.msra.mxu0 0.0
      %2678 = vmatprep.subr.mxu0 0.0
      %2679 = vmatpush1.msra.mxu0 0.0
      %2680 = vmatprep.subr.mxu0 0.0
      %2681 = vmatpush1.msra.mxu0 0.0
      %2682 = vmatprep.subr.mxu0 0.0
      %2683 = vmatpush1.msra.mxu0 0.0
      %2684 = vmatprep.subr.mxu0 0.0
      %2685 = vmatpush1.msra.mxu0 0.0
      %2686 = vmatprep.subr.mxu0 0.0
      %2687 = vmatpush1.msra.mxu0 0.0
      %2688 = vmatprep.subr.mxu0 0.0
      %2689 = vmatpush1.msra.mxu0 0.0
      %2690 = vmatprep.mubr.f32.mxu0 0.0
      %2691 = vmatmul.mubr.f32.gmra.mrb[0].mxu0 %v2621
      %v2692 = vpop.f32.mrb[0].mxu0
      %v2693 = vadd.f32 %v2617, %v2692
      %v2694 = vpop.f32.mrb[0].mxu0
      %2695 = vdwg.mxu0
      %2697 = vset.pattern.permute.xlu0 0
      %2698 = vperm.xlu0 %2697, %v1929
      %v2699 = vpop.permute.xlu0 %2698
      %v2701 = vmul.f32 %v2693, %v2699
      %2703 = vset.pattern.permute.xlu0 0
      %2704 = vperm.xlu0 %2703, %v1931
      %v2705 = vpop.permute.xlu0 %2704
      %v2707 = vadd.f32 %v2701, %v2705
      %v2708 = vmax.f32 %v2707, 0.0
      %vm2709 = vcmask 128000
      %2710 = vst.msk [vmem:[%s520] sm:$0x3f] %vm2709, %v2708
      %p2711 = scmp.lt.s32.totalorder %s26, 1
      %s2712 = scalar_select %p2711, %s26, 1
      %s2713 = smul.addr %s2712, 8
      %s2714 = scalar_lea.vmem %s15, %s2713
      // Predicated region
      $region81: #{local_spatial_encoding.1} parent=79 // pred_check
        %p2715 = pneg %p374
      $region82: #{local_spatial_encoding.1} parent=79 // pred_check_branch
        %2717 = sbr.rel (%p2715) target = $region84
      $region83: #{local_spatial_encoding.1} parent=79 // pred_region
        _
      $region84: #{local_spatial_encoding.1} parent=79 // pred_fallthru
        _
    $region80: #{local_spatial_encoding.1} parent=5 // pred_fallthru
      _
    %p2718 = scmp.le.s32.totalorder 2, %s21
    // Predicated region
    $region85: #{local_spatial_encoding.1} parent=5 // pred_check
      %p2719 = pneg %p2718
    $region86: #{local_spatial_encoding.1} parent=5 // pred_check_branch
      %2721 = sbr.rel (%p2719) target = $region88
    $region87: #{local_spatial_encoding.1} parent=5 // pred_region
      %s2722 = ssub.s32 %s21, 2
      // Predicated region
      $region89: #{local_spatial_encoding.1} parent=87 // pred_check
        %p2723 = pneg %p380
      $region90: #{local_spatial_encoding.1} parent=87 // pred_check_branch
        %2725 = sbr.rel (%p2723) target = $region92
      $region91: #{local_spatial_encoding.1} parent=87 // pred_region
        %p2726 = scmp.lt.s32.totalorder %s27, 1
        %s2727 = scalar_select %p2726, %s27, 1
        %s2728 = smul.addr %s2727, 8
        %s2729 = scalar_lea.vmem %s15, %s2728
      $region92: #{local_spatial_encoding.1} parent=87 // pred_fallthru
        _
    $region88: #{local_spatial_encoding.1} parent=5 // pred_fallthru
      _
  $region6: #{local_spatial_encoding.1} parent=0 // loop_footer
    %s25 = sadd.s32 1, %s21
  $region7: #{local_spatial_encoding.1} parent=0 // loop_footer_branch
    %20 = sbr.rel target = $region3
  $region8: #{local_spatial_encoding.1} parent=0 // loop_exit
    _

</llo_original>
